<compile_context>
chip_gen: v7x
topology: tpu7x:2x2x1
jax: 0.10.0
libtpu: 0.0.40
codegen_flags: <defaults>
</compile_context>

<pallas_src>
import functools

import numpy as np
import jax
import jax.numpy as jnp
from jax.experimental import pallas as pl
from jax.experimental.pallas import tpu as pltpu

LANES = 128


def _round_up(x, m):
    return (x + m - 1) // m * m


# ----------------------------------------------------------------------------
# Pallas kernel: fused (bf16) matmul + bias + activation, gridded over (G, M)
# ----------------------------------------------------------------------------
def _mm_bias_act_kernel(act, x_ref, w_ref, b_ref, a_ref, o_ref):
    # x: (1, tm, K) bf16 | w: (1, K, 128) bf16 | b, a: (1, 1, 128) f32
    y = jnp.dot(x_ref[0], w_ref[0], preferred_element_type=jnp.float32)
    y = y + b_ref[0]                                   # (1,128) broadcast over tm
    if act == "prelu":
        y = jnp.where(y >= 0.0, y, a_ref[0] * y)       # per-channel alpha
    elif act == "sigmoid":
        y = jax.nn.sigmoid(y)
    o_ref[0] = y.astype(o_ref.dtype)                   # lane-dense (tm, 128) store


def fused_matmul_act(patches, weight, bias, alpha, act, *, tm_target=256):
    """Batched fused matmul: (G,M,K) @ (G,K,N) + bias, fused activation.

    Inputs are padded to K%16==0, N->128 lanes, M->tile multiple, cast to bf16
    for the MXU; accumulation and epilogue stay f32.
    Returns (G, M_pad, 128) f32; caller slices [:, :M, :N].
    """
    G, M, K = patches.shape
    N = weight.shape[-1]
    KP = _round_up(K, 16)                 # sublane-aligned K (bf16 packs 16 rows)
    NP = LANES                            # lane-dense output store
    tm = min(tm_target, _round_up(M, 16))
    MP = _round_up(M, tm)

    x = jnp.pad(patches, ((0, 0), (0, MP - M), (0, KP - K))).astype(jnp.bfloat16)
    w = jnp.pad(weight, ((0, 0), (0, KP - K), (0, NP - N))).astype(jnp.bfloat16)
    b = jnp.pad(bias, ((0, 0), (0, NP - N))).astype(jnp.float32).reshape(G, 1, NP)
    a = jnp.pad(alpha, ((0, 0), (0, NP - N))).astype(jnp.float32).reshape(G, 1, NP)

    grid = (G, MP // tm)
    return pl.pallas_call(
        functools.partial(_mm_bias_act_kernel, act),
        out_shape=jax.ShapeDtypeStruct((G, MP, NP), jnp.float32),
        grid_spec=pltpu.PrefetchScalarGridSpec(
            num_scalar_prefetch=0,
            grid=grid,
            in_specs=[
                pl.BlockSpec((1, tm, KP), lambda g, m: (g, m, 0)),
                pl.BlockSpec((1, KP, NP), lambda g, m: (g, 0, 0)),
                pl.BlockSpec((1, 1, NP), lambda g, m: (g, 0, 0)),
                pl.BlockSpec((1, 1, NP), lambda g, m: (g, 0, 0)),
            ],
            out_specs=pl.BlockSpec((1, tm, NP), lambda g, m: (g, m, 0)),
        ),
        compiler_params=pltpu.CompilerParams(
            dimension_semantics=("parallel", "parallel")),
        cost_estimate=pl.CostEstimate(
            flops=2 * G * MP * KP * NP,
            transcendentals=(G * MP * NP) if act == "sigmoid" else 0,
            bytes_accessed=2 * (x.size + w.size) + 4 * (b.size + a.size)
                           + 4 * G * MP * NP),
    )(x, w, b, a)


# ----------------------------------------------------------------------------
# im2col glue (NHWC, tap-major K ordering; pure XLA slices/concat)
# ----------------------------------------------------------------------------
def _im2col_nhwc(x, kh, kw, stride, pad_t, pad_b, pad_l, pad_r):
    B, H, W, C = x.shape
    xp = jnp.pad(x, ((0, 0), (pad_t, pad_b), (pad_l, pad_r), (0, 0)))
    Ho = (H + pad_t + pad_b - kh) // stride + 1
    Wo = (W + pad_l + pad_r - kw) // stride + 1
    taps = []
    for i in range(kh):
        for j in range(kw):
            taps.append(xp[:, i:i + stride * Ho:stride,
                           j:j + stride * Wo:stride, :])
    patches = jnp.concatenate(taps, axis=-1)            # (B,Ho,Wo, kh*kw*C)
    return patches.reshape(B * Ho * Wo, kh * kw * C), Ho, Wo


def conv2d_act(x, layer, *, stride, pad, act):
    """PyTorch Conv2d (weight (Cout,Cin,kh,kw)) on NHWC input + fused act."""
    w, b, alpha = layer["w"], layer["b"], layer["alpha"]
    B = x.shape[0]
    Cout, Cin, kh, kw = w.shape
    patches, Ho, Wo = _im2col_nhwc(x, kh, kw, stride, pad, pad, pad, pad)
    # tap-major K ordering to match the patches: (kh, kw, Cin, Cout)
    w2 = w.transpose(2, 3, 1, 0).reshape(kh * kw * Cin, Cout)
    out = fused_matmul_act(patches[None], w2[None], b[None], alpha[None], act)
    return out[0, :B * Ho * Wo, :Cout].reshape(B, Ho, Wo, Cout)


def conv_transpose2d_act(x, layer, *, act):
    """PyTorch ConvTranspose2d(Cin,Cout,4,stride=2,pad=1) on NHWC input,
    lowered as four dense 2x2 phase convolutions (no zero-dilated input),
    all batched into one pallas_call."""
    wt, b, alpha = layer["w"], layer["b"], layer["alpha"]   # wt: (Cin,Cout,4,4)
    B, H, W, Cin = x.shape
    Cout = wt.shape[1]

    def taps(r):            # 4x4 kernel tap indices feeding output parity r
        return (3, 1) if r == 0 else (2, 0)

    patches_all, weights_all = [], []
    for rh in (0, 1):
        for rw in (0, 1):
            pt, pb = ((1, 0) if rh == 0 else (0, 1))
            pleft, pright = ((1, 0) if rw == 0 else (0, 1))
            p, _, _ = _im2col_nhwc(x, 2, 2, 1, pt, pb, pleft, pright)
            patches_all.append(p)                            # (B*H*W, 4*Cin)
            it = jnp.array(taps(rh))
            jt = jnp.array(taps(rw))
            wsel = wt[:, :, it, :][:, :, :, jt]              # (Cin,Cout,2,2)
            weights_all.append(
                wsel.transpose(2, 3, 0, 1).reshape(4 * Cin, Cout))

    patches = jnp.stack(patches_all)                         # (4, B*H*W, 4*Cin)
    weights = jnp.stack(weights_all)                         # (4, 4*Cin, Cout)
    bias4 = jnp.broadcast_to(b, (4, Cout))
    alpha4 = jnp.broadcast_to(alpha, (4, Cout))

    out = fused_matmul_act(patches, weights, bias4, alpha4, act)
    out = out[:, :B * H * W, :Cout].reshape(2, 2, B, H, W, Cout)
    # interleave phases: phase (rh, rw), pixel (a, c) -> output (2a+rh, 2c+rw)
    return out.transpose(2, 3, 0, 4, 1, 5).reshape(B, 2 * H, 2 * W, Cout)


# ----------------------------------------------------------------------------
# Bilinear upsample (align_corners=False), matching F.interpolate exactly.
# ----------------------------------------------------------------------------
def _bilinear_matrix(in_size, out_size):
    scale = in_size / out_size
    M = np.zeros((out_size, in_size), np.float32)
    for i in range(out_size):
        src = max((i + 0.5) * scale - 0.5, 0.0)
        i0 = int(np.floor(src))
        lam = src - i0
        i1 = min(i0 + 1, in_size - 1)
        M[i, i0] += 1.0 - lam
        M[i, i1] += lam
    return jnp.asarray(M)


def bilinear_upsample_nhwc(x, scale):
    B, H, W, C = x.shape
    Mh = _bilinear_matrix(H, int(round(H * scale)))
    Mw = _bilinear_matrix(W, int(round(W * scale)))
    return jnp.einsum("oh,bhwc,pw->bopc", Mh, x, Mw)


# ----------------------------------------------------------------------------
# Parameter construction (deterministic, synthetic; PyTorch layouts)
# ----------------------------------------------------------------------------
def _init_conv(key, cin, cout, k):
    k1, k2 = jax.random.split(key)
    fan_in = cin * k * k
    w = jax.random.normal(k1, (cout, cin, k, k), jnp.float32) / np.sqrt(fan_in)
    b = 0.01 * jax.random.normal(k2, (cout,), jnp.float32)
    return w, b


def make_params(key):
    keys = jax.random.split(key, 6)
    p = {}
    cins = [3, 32, 32, 32]
    for i in range(4):      # Conv2d(Cin, 32, 3, 2, 1) + PReLU(32) (init 0.25)
        w, b = _init_conv(keys[i], cins[i], 32, 3)
        p[f"conv{i}"] = dict(w=w, b=b, alpha=0.25 * jnp.ones((32,), jnp.float32))
    # ConvTranspose2d(128, 32, 4, 2, 1) + PReLU(32)
    k1, k2 = jax.random.split(keys[4])
    fan_in = 128 * 4 * 4
    p["deconv"] = dict(
        w=jax.random.normal(k1, (128, 32, 4, 4), jnp.float32) / np.sqrt(fan_in),
        b=0.01 * jax.random.normal(k2, (32,), jnp.float32),
        alpha=0.25 * jnp.ones((32,), jnp.float32),
    )
    # final Conv2d(32, 3, 3, 1, 1) + Sigmoid
    w, b = _init_conv(keys[5], 32, 3, 3)
    p["out"] = dict(w=w, b=b, alpha=jnp.zeros((3,), jnp.float32))  # alpha unused
    return p


# ----------------------------------------------------------------------------
# DegCNN forward (NCHW at the boundary, NHWC internally)
# ----------------------------------------------------------------------------
def degcnn_forward(params, x_nchw):
    x = x_nchw.transpose(0, 2, 3, 1)                          # -> NHWC
    f0 = conv2d_act(x,  params["conv0"], stride=2, pad=1, act="prelu")
    f1 = conv2d_act(f0, params["conv1"], stride=2, pad=1, act="prelu")
    f2 = conv2d_act(f1, params["conv2"], stride=2, pad=1, act="prelu")
    f3 = conv2d_act(f2, params["conv3"], stride=2, pad=1, act="prelu")

    f1u = bilinear_upsample_nhwc(f1, 2.0)
    f2u = bilinear_upsample_nhwc(f2, 4.0)
    f3u = bilinear_upsample_nhwc(f3, 8.0)
    cat = jnp.concatenate((f0, f1u, f2u, f3u), axis=-1)       # (B, H/2, W/2, 128)

    # TODO(synk): Dropout2d(0.95) is identity in eval/inference mode; stochastic
    # training-mode channel dropout is not implemented.
    d = conv_transpose2d_act(cat, params["deconv"], act="prelu")
    y = conv2d_act(d, params["out"], stride=1, pad=1, act="sigmoid")
    return y.transpose(0, 3, 1, 2)                            # -> NCHW


if __name__ == "__main__":
    key = jax.random.PRNGKey(0)
    kx, kp = jax.random.split(key)
    x = jax.random.normal(kx, (2, 3, 16, 16), jnp.float32)    # NCHW, like PyTorch
    params = make_params(kp)

    fwd = jax.jit(degcnn_forward)
    y = fwd(params, x)
    y = jax.block_until_ready(y)

    assert y.shape == (2, 3, 16, 16), y.shape
    assert bool(jnp.all(jnp.isfinite(y)))
    assert bool(jnp.all((y >= 0.0) & (y <= 1.0)))             # sigmoid output range
    print("KERNEL_OK")
</pallas_src>

<mosaic_0001>
module attributes {stable_mosaic.version = 11 : i64} {
  func.func @_mm_bias_act_kernel(%arg0: i32, %arg1: i32, %arg2: memref<1x128x32xbf16, #tpu.memory_space<vmem>>, %arg3: memref<1x32x128xbf16, #tpu.memory_space<vmem>>, %arg4: memref<1x1x128xf32, #tpu.memory_space<vmem>>, %arg5: memref<1x1x128xf32, #tpu.memory_space<vmem>>, %arg6: memref<1x128x128xf32, #tpu.memory_space<vmem>>) attributes {dimension_semantics = [#tpu.dimension_semantics<parallel>, #tpu.dimension_semantics<parallel>], iteration_bounds = array<i64: 1, 1>, scalar_prefetch = 0 : i64, scratch_operands = 0 : i64, tpu.core_type = #tpu.core_type<tc>, window_params = [{transform_indices = @transform_0, window_bounds = array<i64: 1, 128, 32>}, {transform_indices = @transform_1, window_bounds = array<i64: 1, 32, 128>}, {transform_indices = @transform_2, window_bounds = array<i64: 1, 1, 128>}, {transform_indices = @transform_3, window_bounds = array<i64: 1, 1, 128>}, {transform_indices = @transform_4, window_bounds = array<i64: 1, 128, 128>}]} {
    %c0 = arith.constant 0 : index
    %c0_0 = arith.constant 0 : index
    %c0_1 = arith.constant 0 : index
    %0 = vector.load %arg2[%c0, %c0_0, %c0_1] : memref<1x128x32xbf16, #tpu.memory_space<vmem>>, vector<1x128x32xbf16>
    %1 = vector.shape_cast %0 : vector<1x128x32xbf16> to vector<128x32xbf16>
    %c0_2 = arith.constant 0 : index
    %c0_3 = arith.constant 0 : index
    %c0_4 = arith.constant 0 : index
    %2 = vector.load %arg3[%c0_2, %c0_3, %c0_4] : memref<1x32x128xbf16, #tpu.memory_space<vmem>>, vector<1x32x128xbf16>
    %3 = vector.shape_cast %2 : vector<1x32x128xbf16> to vector<32x128xbf16>
    %cst = arith.constant dense<0.000000e+00> : vector<128x128xf32>
    %4 = tpu.matmul %1, %3, %cst {dimension_numbers = #tpu.dot_dimension_numbers<[1], [0], [0], [1], [0, 0, 1, 1], [], []>} : vector<128x32xbf16>, vector<32x128xbf16>, vector<128x128xf32> -> vector<128x128xf32>
    %c0_5 = arith.constant 0 : index
    %c0_6 = arith.constant 0 : index
    %c0_7 = arith.constant 0 : index
    %5 = vector.load %arg4[%c0_5, %c0_6, %c0_7] : memref<1x1x128xf32, #tpu.memory_space<vmem>>, vector<1x1x128xf32>
    %6 = vector.shape_cast %5 : vector<1x1x128xf32> to vector<1x128xf32>
    %7 = vector.broadcast %6 : vector<1x128xf32> to vector<128x128xf32>
    %8 = arith.addf %4, %7 : vector<128x128xf32>
    %cst_8 = arith.constant 0.000000e+00 : f32
    %9 = vector.broadcast %cst_8 : f32 to vector<128x128xf32>
    %10 = arith.cmpf oge, %8, %9 : vector<128x128xf32>
    %c0_9 = arith.constant 0 : index
    %c0_10 = arith.constant 0 : index
    %c0_11 = arith.constant 0 : index
    %11 = vector.load %arg5[%c0_9, %c0_10, %c0_11] : memref<1x1x128xf32, #tpu.memory_space<vmem>>, vector<1x1x128xf32>
    %12 = vector.shape_cast %11 : vector<1x1x128xf32> to vector<1x128xf32>
    %13 = vector.broadcast %12 : vector<1x128xf32> to vector<128x128xf32>
    %14 = arith.mulf %13, %8 : vector<128x128xf32>
    %15 = arith.select %10, %8, %14 : vector<128x128xi1>, vector<128x128xf32>
    %c0_12 = arith.constant 0 : index
    %c0_13 = arith.constant 0 : index
    %c0_14 = arith.constant 0 : index
    %16 = vector.load %arg6[%c0_12, %c0_13, %c0_14] : memref<1x128x128xf32, #tpu.memory_space<vmem>>, vector<1x128x128xf32>
    %17 = vector.shape_cast %16 : vector<1x128x128xf32> to vector<128x128xf32>
    %18 = vector.shape_cast %15 : vector<128x128xf32> to vector<1x128x128xf32>
    tpu.vector_store %arg6[%c0_12, %c0_13, %c0_14], %18 {strides = array<i32>} : memref<1x128x128xf32, #tpu.memory_space<vmem>>, vector<1x128x128xf32>,
    return
  }
  func.func @transform_0(%arg0: i32, %arg1: i32) -> (i32, i32, i32) {
    %c0_i32 = arith.constant 0 : i32
    %c0_i32_0 = arith.constant 0 : i32
    return %arg0, %arg1, %c0_i32 : i32, i32, i32
  }
  func.func @transform_1(%arg0: i32, %arg1: i32) -> (i32, i32, i32) {
    %c0_i32 = arith.constant 0 : i32
    %c0_i32_0 = arith.constant 0 : i32
    %c0_i32_1 = arith.constant 0 : i32
    return %arg0, %c0_i32, %c0_i32_0 : i32, i32, i32
  }
  func.func @transform_2(%arg0: i32, %arg1: i32) -> (i32, i32, i32) {
    %c0_i32 = arith.constant 0 : i32
    %c0_i32_0 = arith.constant 0 : i32
    %c0_i32_1 = arith.constant 0 : i32
    return %arg0, %c0_i32, %c0_i32_0 : i32, i32, i32
  }
  func.func @transform_3(%arg0: i32, %arg1: i32) -> (i32, i32, i32) {
    %c0_i32 = arith.constant 0 : i32
    %c0_i32_0 = arith.constant 0 : i32
    %c0_i32_1 = arith.constant 0 : i32
    return %arg0, %c0_i32, %c0_i32_0 : i32, i32, i32
  }
  func.func @transform_4(%arg0: i32, %arg1: i32) -> (i32, i32, i32) {
    %c0_i32 = arith.constant 0 : i32
    %c0_i32_0 = arith.constant 0 : i32
    return %arg0, %arg1, %c0_i32 : i32, i32, i32
  }
}

module attributes {stable_mosaic.version = 11 : i64} {
  func.func @_mm_bias_act_kernel(%arg0: i32, %arg1: i32, %arg2: memref<1x32x288xbf16, #tpu.memory_space<vmem>>, %arg3: memref<1x288x128xbf16, #tpu.memory_space<vmem>>, %arg4: memref<1x1x128xf32, #tpu.memory_space<vmem>>, %arg5: memref<1x1x128xf32, #tpu.memory_space<vmem>>, %arg6: memref<1x32x128xf32, #tpu.memory_space<vmem>>) attributes {dimension_semantics = [#tpu.dimension_semantics<parallel>, #tpu.dimension_semantics<parallel>], iteration_bounds = array<i64: 1, 1>, scalar_prefetch = 0 : i64, scratch_operands = 0 : i64, tpu.core_type = #tpu.core_type<tc>, window_params = [{transform_indices = @transform_0, window_bounds = array<i64: 1, 32, 288>}, {transform_indices = @transform_1, window_bounds = array<i64: 1, 288, 128>}, {transform_indices = @transform_2, window_bounds = array<i64: 1, 1, 128>}, {transform_indices = @transform_3, window_bounds = array<i64: 1, 1, 128>}, {transform_indices = @transform_4, window_bounds = array<i64: 1, 32, 128>}]} {
    %c0 = arith.constant 0 : index
    %c0_0 = arith.constant 0 : index
    %c0_1 = arith.constant 0 : index
    %0 = vector.load %arg2[%c0, %c0_0, %c0_1] : memref<1x32x288xbf16, #tpu.memory_space<vmem>>, vector<1x32x288xbf16>
    %1 = vector.shape_cast %0 : vector<1x32x288xbf16> to vector<32x288xbf16>
    %c0_2 = arith.constant 0 : index
    %c0_3 = arith.constant 0 : index
    %c0_4 = arith.constant 0 : index
    %2 = vector.load %arg3[%c0_2, %c0_3, %c0_4] : memref<1x288x128xbf16, #tpu.memory_space<vmem>>, vector<1x288x128xbf16>
    %3 = vector.shape_cast %2 : vector<1x288x128xbf16> to vector<288x128xbf16>
    %cst = arith.constant dense<0.000000e+00> : vector<32x128xf32>
    %4 = tpu.matmul %1, %3, %cst {dimension_numbers = #tpu.dot_dimension_numbers<[1], [0], [0], [1], [0, 0, 1, 1], [], []>} : vector<32x288xbf16>, vector<288x128xbf16>, vector<32x128xf32> -> vector<32x128xf32>
    %c0_5 = arith.constant 0 : index
    %c0_6 = arith.constant 0 : index
    %c0_7 = arith.constant 0 : index
    %5 = vector.load %arg4[%c0_5, %c0_6, %c0_7] : memref<1x1x128xf32, #tpu.memory_space<vmem>>, vector<1x1x128xf32>
    %6 = vector.shape_cast %5 : vector<1x1x128xf32> to vector<1x128xf32>
    %7 = vector.broadcast %6 : vector<1x128xf32> to vector<32x128xf32>
    %8 = arith.addf %4, %7 : vector<32x128xf32>
    %cst_8 = arith.constant 0.000000e+00 : f32
    %9 = vector.broadcast %cst_8 : f32 to vector<32x128xf32>
    %10 = arith.cmpf oge, %8, %9 : vector<32x128xf32>
    %c0_9 = arith.constant 0 : index
    %c0_10 = arith.constant 0 : index
    %c0_11 = arith.constant 0 : index
    %11 = vector.load %arg5[%c0_9, %c0_10, %c0_11] : memref<1x1x128xf32, #tpu.memory_space<vmem>>, vector<1x1x128xf32>
    %12 = vector.shape_cast %11 : vector<1x1x128xf32> to vector<1x128xf32>
    %13 = vector.broadcast %12 : vector<1x128xf32> to vector<32x128xf32>
    %14 = arith.mulf %13, %8 : vector<32x128xf32>
    %15 = arith.select %10, %8, %14 : vector<32x128xi1>, vector<32x128xf32>
    %c0_12 = arith.constant 0 : index
    %c0_13 = arith.constant 0 : index
    %c0_14 = arith.constant 0 : index
    %16 = vector.load %arg6[%c0_12, %c0_13, %c0_14] : memref<1x32x128xf32, #tpu.memory_space<vmem>>, vector<1x32x128xf32>
    %17 = vector.shape_cast %16 : vector<1x32x128xf32> to vector<32x128xf32>
    %18 = vector.shape_cast %15 : vector<32x128xf32> to vector<1x32x128xf32>
    tpu.vector_store %arg6[%c0_12, %c0_13, %c0_14], %18 {strides = array<i32>} : memref<1x32x128xf32, #tpu.memory_space<vmem>>, vector<1x32x128xf32>,
    return
  }
  func.func @transform_0(%arg0: i32, %arg1: i32) -> (i32, i32, i32) {
    %c0_i32 = arith.constant 0 : i32
    %c0_i32_0 = arith.constant 0 : i32
    return %arg0, %arg1, %c0_i32 : i32, i32, i32
  }
  func.func @transform_1(%arg0: i32, %arg1: i32) -> (i32, i32, i32) {
    %c0_i32 = arith.constant 0 : i32
    %c0_i32_0 = arith.constant 0 : i32
    %c0_i32_1 = arith.constant 0 : i32
    return %arg0, %c0_i32, %c0_i32_0 : i32, i32, i32
  }
  func.func @transform_2(%arg0: i32, %arg1: i32) -> (i32, i32, i32) {
    %c0_i32 = arith.constant 0 : i32
    %c0_i32_0 = arith.constant 0 : i32
    %c0_i32_1 = arith.constant 0 : i32
    return %arg0, %c0_i32, %c0_i32_0 : i32, i32, i32
  }
  func.func @transform_3(%arg0: i32, %arg1: i32) -> (i32, i32, i32) {
    %c0_i32 = arith.constant 0 : i32
    %c0_i32_0 = arith.constant 0 : i32
    %c0_i32_1 = arith.constant 0 : i32
    return %arg0, %c0_i32, %c0_i32_0 : i32, i32, i32
  }
  func.func @transform_4(%arg0: i32, %arg1: i32) -> (i32, i32, i32) {
    %c0_i32 = arith.constant 0 : i32
    %c0_i32_0 = arith.constant 0 : i32
    return %arg0, %arg1, %c0_i32 : i32, i32, i32
  }
}

module attributes {stable_mosaic.version = 11 : i64} {
  func.func @_mm_bias_act_kernel(%arg0: i32, %arg1: i32, %arg2: memref<1x16x288xbf16, #tpu.memory_space<vmem>>, %arg3: memref<1x288x128xbf16, #tpu.memory_space<vmem>>, %arg4: memref<1x1x128xf32, #tpu.memory_space<vmem>>, %arg5: memref<1x1x128xf32, #tpu.memory_space<vmem>>, %arg6: memref<1x16x128xf32, #tpu.memory_space<vmem>>) attributes {dimension_semantics = [#tpu.dimension_semantics<parallel>, #tpu.dimension_semantics<parallel>], iteration_bounds = array<i64: 1, 1>, scalar_prefetch = 0 : i64, scratch_operands = 0 : i64, tpu.core_type = #tpu.core_type<tc>, window_params = [{transform_indices = @transform_0, window_bounds = array<i64: 1, 16, 288>}, {transform_indices = @transform_1, window_bounds = array<i64: 1, 288, 128>}, {transform_indices = @transform_2, window_bounds = array<i64: 1, 1, 128>}, {transform_indices = @transform_3, window_bounds = array<i64: 1, 1, 128>}, {transform_indices = @transform_4, window_bounds = array<i64: 1, 16, 128>}]} {
    %c0 = arith.constant 0 : index
    %c0_0 = arith.constant 0 : index
    %c0_1 = arith.constant 0 : index
    %0 = vector.load %arg2[%c0, %c0_0, %c0_1] : memref<1x16x288xbf16, #tpu.memory_space<vmem>>, vector<1x16x288xbf16>
    %1 = vector.shape_cast %0 : vector<1x16x288xbf16> to vector<16x288xbf16>
    %c0_2 = arith.constant 0 : index
    %c0_3 = arith.constant 0 : index
    %c0_4 = arith.constant 0 : index
    %2 = vector.load %arg3[%c0_2, %c0_3, %c0_4] : memref<1x288x128xbf16, #tpu.memory_space<vmem>>, vector<1x288x128xbf16>
    %3 = vector.shape_cast %2 : vector<1x288x128xbf16> to vector<288x128xbf16>
    %cst = arith.constant dense<0.000000e+00> : vector<16x128xf32>
    %4 = tpu.matmul %1, %3, %cst {dimension_numbers = #tpu.dot_dimension_numbers<[1], [0], [0], [1], [0, 0, 1, 1], [], []>} : vector<16x288xbf16>, vector<288x128xbf16>, vector<16x128xf32> -> vector<16x128xf32>
    %c0_5 = arith.constant 0 : index
    %c0_6 = arith.constant 0 : index
    %c0_7 = arith.constant 0 : index
    %5 = vector.load %arg4[%c0_5, %c0_6, %c0_7] : memref<1x1x128xf32, #tpu.memory_space<vmem>>, vector<1x1x128xf32>
    %6 = vector.shape_cast %5 : vector<1x1x128xf32> to vector<1x128xf32>
    %7 = vector.broadcast %6 : vector<1x128xf32> to vector<16x128xf32>
    %8 = arith.addf %4, %7 : vector<16x128xf32>
    %cst_8 = arith.constant 0.000000e+00 : f32
    %9 = vector.broadcast %cst_8 : f32 to vector<16x128xf32>
    %10 = arith.cmpf oge, %8, %9 : vector<16x128xf32>
    %c0_9 = arith.constant 0 : index
    %c0_10 = arith.constant 0 : index
    %c0_11 = arith.constant 0 : index
    %11 = vector.load %arg5[%c0_9, %c0_10, %c0_11] : memref<1x1x128xf32, #tpu.memory_space<vmem>>, vector<1x1x128xf32>
    %12 = vector.shape_cast %11 : vector<1x1x128xf32> to vector<1x128xf32>
    %13 = vector.broadcast %12 : vector<1x128xf32> to vector<16x128xf32>
    %14 = arith.mulf %13, %8 : vector<16x128xf32>
    %15 = arith.select %10, %8, %14 : vector<16x128xi1>, vector<16x128xf32>
    %c0_12 = arith.constant 0 : index
    %c0_13 = arith.constant 0 : index
    %c0_14 = arith.constant 0 : index
    %16 = vector.load %arg6[%c0_12, %c0_13, %c0_14] : memref<1x16x128xf32, #tpu.memory_space<vmem>>, vector<1x16x128xf32>
    %17 = vector.shape_cast %16 : vector<1x16x128xf32> to vector<16x128xf32>
    %18 = vector.shape_cast %15 : vector<16x128xf32> to vector<1x16x128xf32>
    tpu.vector_store %arg6[%c0_12, %c0_13, %c0_14], %18 {strides = array<i32>} : memref<1x16x128xf32, #tpu.memory_space<vmem>>, vector<1x16x128xf32>,
    return
  }
  func.func @transform_0(%arg0: i32, %arg1: i32) -> (i32, i32, i32) {
    %c0_i32 = arith.constant 0 : i32
    %c0_i32_0 = arith.constant 0 : i32
    return %arg0, %arg1, %c0_i32 : i32, i32, i32
  }
  func.func @transform_1(%arg0: i32, %arg1: i32) -> (i32, i32, i32) {
    %c0_i32 = arith.constant 0 : i32
    %c0_i32_0 = arith.constant 0 : i32
    %c0_i32_1 = arith.constant 0 : i32
    return %arg0, %c0_i32, %c0_i32_0 : i32, i32, i32
  }
  func.func @transform_2(%arg0: i32, %arg1: i32) -> (i32, i32, i32) {
    %c0_i32 = arith.constant 0 : i32
    %c0_i32_0 = arith.constant 0 : i32
    %c0_i32_1 = arith.constant 0 : i32
    return %arg0, %c0_i32, %c0_i32_0 : i32, i32, i32
  }
  func.func @transform_3(%arg0: i32, %arg1: i32) -> (i32, i32, i32) {
    %c0_i32 = arith.constant 0 : i32
    %c0_i32_0 = arith.constant 0 : i32
    %c0_i32_1 = arith.constant 0 : i32
    return %arg0, %c0_i32, %c0_i32_0 : i32, i32, i32
  }
  func.func @transform_4(%arg0: i32, %arg1: i32) -> (i32, i32, i32) {
    %c0_i32 = arith.constant 0 : i32
    %c0_i32_0 = arith.constant 0 : i32
    return %arg0, %arg1, %c0_i32 : i32, i32, i32
  }
}

module attributes {stable_mosaic.version = 11 : i64} {
  func.func @_mm_bias_act_kernel(%arg0: i32, %arg1: i32, %arg2: memref<1x128x512xbf16, #tpu.memory_space<vmem>>, %arg3: memref<1x512x128xbf16, #tpu.memory_space<vmem>>, %arg4: memref<1x1x128xf32, #tpu.memory_space<vmem>>, %arg5: memref<1x1x128xf32, #tpu.memory_space<vmem>>, %arg6: memref<1x128x128xf32, #tpu.memory_space<vmem>>) attributes {dimension_semantics = [#tpu.dimension_semantics<parallel>, #tpu.dimension_semantics<parallel>], iteration_bounds = array<i64: 4, 1>, scalar_prefetch = 0 : i64, scratch_operands = 0 : i64, tpu.core_type = #tpu.core_type<tc>, window_params = [{transform_indices = @transform_0, window_bounds = array<i64: 1, 128, 512>}, {transform_indices = @transform_1, window_bounds = array<i64: 1, 512, 128>}, {transform_indices = @transform_2, window_bounds = array<i64: 1, 1, 128>}, {transform_indices = @transform_3, window_bounds = array<i64: 1, 1, 128>}, {transform_indices = @transform_4, window_bounds = array<i64: 1, 128, 128>}]} {
    %c0 = arith.constant 0 : index
    %c0_0 = arith.constant 0 : index
    %c0_1 = arith.constant 0 : index
    %0 = vector.load %arg2[%c0, %c0_0, %c0_1] : memref<1x128x512xbf16, #tpu.memory_space<vmem>>, vector<1x128x512xbf16>
    %1 = vector.shape_cast %0 : vector<1x128x512xbf16> to vector<128x512xbf16>
    %c0_2 = arith.constant 0 : index
    %c0_3 = arith.constant 0 : index
    %c0_4 = arith.constant 0 : index
    %2 = vector.load %arg3[%c0_2, %c0_3, %c0_4] : memref<1x512x128xbf16, #tpu.memory_space<vmem>>, vector<1x512x128xbf16>
    %3 = vector.shape_cast %2 : vector<1x512x128xbf16> to vector<512x128xbf16>
    %cst = arith.constant dense<0.000000e+00> : vector<128x128xf32>
    %4 = tpu.matmul %1, %3, %cst {dimension_numbers = #tpu.dot_dimension_numbers<[1], [0], [0], [1], [0, 0, 1, 1], [], []>} : vector<128x512xbf16>, vector<512x128xbf16>, vector<128x128xf32> -> vector<128x128xf32>
    %c0_5 = arith.constant 0 : index
    %c0_6 = arith.constant 0 : index
    %c0_7 = arith.constant 0 : index
    %5 = vector.load %arg4[%c0_5, %c0_6, %c0_7] : memref<1x1x128xf32, #tpu.memory_space<vmem>>, vector<1x1x128xf32>
    %6 = vector.shape_cast %5 : vector<1x1x128xf32> to vector<1x128xf32>
    %7 = vector.broadcast %6 : vector<1x128xf32> to vector<128x128xf32>
    %8 = arith.addf %4, %7 : vector<128x128xf32>
    %cst_8 = arith.constant 0.000000e+00 : f32
    %9 = vector.broadcast %cst_8 : f32 to vector<128x128xf32>
    %10 = arith.cmpf oge, %8, %9 : vector<128x128xf32>
    %c0_9 = arith.constant 0 : index
    %c0_10 = arith.constant 0 : index
    %c0_11 = arith.constant 0 : index
    %11 = vector.load %arg5[%c0_9, %c0_10, %c0_11] : memref<1x1x128xf32, #tpu.memory_space<vmem>>, vector<1x1x128xf32>
    %12 = vector.shape_cast %11 : vector<1x1x128xf32> to vector<1x128xf32>
    %13 = vector.broadcast %12 : vector<1x128xf32> to vector<128x128xf32>
    %14 = arith.mulf %13, %8 : vector<128x128xf32>
    %15 = arith.select %10, %8, %14 : vector<128x128xi1>, vector<128x128xf32>
    %c0_12 = arith.constant 0 : index
    %c0_13 = arith.constant 0 : index
    %c0_14 = arith.constant 0 : index
    %16 = vector.load %arg6[%c0_12, %c0_13, %c0_14] : memref<1x128x128xf32, #tpu.memory_space<vmem>>, vector<1x128x128xf32>
    %17 = vector.shape_cast %16 : vector<1x128x128xf32> to vector<128x128xf32>
    %18 = vector.shape_cast %15 : vector<128x128xf32> to vector<1x128x128xf32>
    tpu.vector_store %arg6[%c0_12, %c0_13, %c0_14], %18 {strides = array<i32>} : memref<1x128x128xf32, #tpu.memory_space<vmem>>, vector<1x128x128xf32>,
    return
  }
  func.func @transform_0(%arg0: i32, %arg1: i32) -> (i32, i32, i32) {
    %c0_i32 = arith.constant 0 : i32
    %c0_i32_0 = arith.constant 0 : i32
    return %arg0, %arg1, %c0_i32 : i32, i32, i32
  }
  func.func @transform_1(%arg0: i32, %arg1: i32) -> (i32, i32, i32) {
    %c0_i32 = arith.constant 0 : i32
    %c0_i32_0 = arith.constant 0 : i32
    %c0_i32_1 = arith.constant 0 : i32
    return %arg0, %c0_i32, %c0_i32_0 : i32, i32, i32
  }
  func.func @transform_2(%arg0: i32, %arg1: i32) -> (i32, i32, i32) {
    %c0_i32 = arith.constant 0 : i32
    %c0_i32_0 = arith.constant 0 : i32
    %c0_i32_1 = arith.constant 0 : i32
    return %arg0, %c0_i32, %c0_i32_0 : i32, i32, i32
  }
  func.func @transform_3(%arg0: i32, %arg1: i32) -> (i32, i32, i32) {
    %c0_i32 = arith.constant 0 : i32
    %c0_i32_0 = arith.constant 0 : i32
    %c0_i32_1 = arith.constant 0 : i32
    return %arg0, %c0_i32, %c0_i32_0 : i32, i32, i32
  }
  func.func @transform_4(%arg0: i32, %arg1: i32) -> (i32, i32, i32) {
    %c0_i32 = arith.constant 0 : i32
    %c0_i32_0 = arith.constant 0 : i32
    return %arg0, %arg1, %c0_i32 : i32, i32, i32
  }
}

module attributes {stable_mosaic.version = 11 : i64} {
  func.func @_mm_bias_act_kernel(%arg0: i32, %arg1: i32, %arg2: memref<1x256x288xbf16, #tpu.memory_space<vmem>>, %arg3: memref<1x288x128xbf16, #tpu.memory_space<vmem>>, %arg4: memref<1x1x128xf32, #tpu.memory_space<vmem>>, %arg5: memref<1x1x128xf32, #tpu.memory_space<vmem>>, %arg6: memref<1x256x128xf32, #tpu.memory_space<vmem>>) attributes {dimension_semantics = [#tpu.dimension_semantics<parallel>, #tpu.dimension_semantics<parallel>], iteration_bounds = array<i64: 1, 2>, scalar_prefetch = 0 : i64, scratch_operands = 0 : i64, tpu.core_type = #tpu.core_type<tc>, window_params = [{transform_indices = @transform_0, window_bounds = array<i64: 1, 256, 288>}, {transform_indices = @transform_1, window_bounds = array<i64: 1, 288, 128>}, {transform_indices = @transform_2, window_bounds = array<i64: 1, 1, 128>}, {transform_indices = @transform_3, window_bounds = array<i64: 1, 1, 128>}, {transform_indices = @transform_4, window_bounds = array<i64: 1, 256, 128>}]} {
    %c0 = arith.constant 0 : index
    %c0_0 = arith.constant 0 : index
    %c0_1 = arith.constant 0 : index
    %0 = vector.load %arg2[%c0, %c0_0, %c0_1] : memref<1x256x288xbf16, #tpu.memory_space<vmem>>, vector<1x256x288xbf16>
    %1 = vector.shape_cast %0 : vector<1x256x288xbf16> to vector<256x288xbf16>
    %c0_2 = arith.constant 0 : index
    %c0_3 = arith.constant 0 : index
    %c0_4 = arith.constant 0 : index
    %2 = vector.load %arg3[%c0_2, %c0_3, %c0_4] : memref<1x288x128xbf16, #tpu.memory_space<vmem>>, vector<1x288x128xbf16>
    %3 = vector.shape_cast %2 : vector<1x288x128xbf16> to vector<288x128xbf16>
    %cst = arith.constant dense<0.000000e+00> : vector<256x128xf32>
    %4 = tpu.matmul %1, %3, %cst {dimension_numbers = #tpu.dot_dimension_numbers<[1], [0], [0], [1], [0, 0, 1, 1], [], []>} : vector<256x288xbf16>, vector<288x128xbf16>, vector<256x128xf32> -> vector<256x128xf32>
    %c0_5 = arith.constant 0 : index
    %c0_6 = arith.constant 0 : index
    %c0_7 = arith.constant 0 : index
    %5 = vector.load %arg4[%c0_5, %c0_6, %c0_7] : memref<1x1x128xf32, #tpu.memory_space<vmem>>, vector<1x1x128xf32>
    %6 = vector.shape_cast %5 : vector<1x1x128xf32> to vector<1x128xf32>
    %7 = vector.broadcast %6 : vector<1x128xf32> to vector<256x128xf32>
    %8 = arith.addf %4, %7 : vector<256x128xf32>
    %9 = arith.negf %8 : vector<256x128xf32>
    %10 = math.exp %9 : vector<256x128xf32>
    %cst_8 = arith.constant 1.000000e+00 : f32
    %11 = vector.broadcast %cst_8 : f32 to vector<256x128xf32>
    %12 = arith.addf %11, %10 : vector<256x128xf32>
    %13 = arith.divf %11, %12 : vector<256x128xf32>
    %c0_9 = arith.constant 0 : index
    %c0_10 = arith.constant 0 : index
    %c0_11 = arith.constant 0 : index
    %14 = vector.load %arg6[%c0_9, %c0_10, %c0_11] : memref<1x256x128xf32, #tpu.memory_space<vmem>>, vector<1x256x128xf32>
    %15 = vector.shape_cast %14 : vector<1x256x128xf32> to vector<256x128xf32>
    %16 = vector.shape_cast %13 : vector<256x128xf32> to vector<1x256x128xf32>
    tpu.vector_store %arg6[%c0_9, %c0_10, %c0_11], %16 {strides = array<i32>} : memref<1x256x128xf32, #tpu.memory_space<vmem>>, vector<1x256x128xf32>,
    return
  }
  func.func @transform_0(%arg0: i32, %arg1: i32) -> (i32, i32, i32) {
    %c0_i32 = arith.constant 0 : i32
    %c0_i32_0 = arith.constant 0 : i32
    return %arg0, %arg1, %c0_i32 : i32, i32, i32
  }
  func.func @transform_1(%arg0: i32, %arg1: i32) -> (i32, i32, i32) {
    %c0_i32 = arith.constant 0 : i32
    %c0_i32_0 = arith.constant 0 : i32
    %c0_i32_1 = arith.constant 0 : i32
    return %arg0, %c0_i32, %c0_i32_0 : i32, i32, i32
  }
  func.func @transform_2(%arg0: i32, %arg1: i32) -> (i32, i32, i32) {
    %c0_i32 = arith.constant 0 : i32
    %c0_i32_0 = arith.constant 0 : i32
    %c0_i32_1 = arith.constant 0 : i32
    return %arg0, %c0_i32, %c0_i32_0 : i32, i32, i32
  }
  func.func @transform_3(%arg0: i32, %arg1: i32) -> (i32, i32, i32) {
    %c0_i32 = arith.constant 0 : i32
    %c0_i32_0 = arith.constant 0 : i32
    %c0_i32_1 = arith.constant 0 : i32
    return %arg0, %c0_i32, %c0_i32_0 : i32, i32, i32
  }
  func.func @transform_4(%arg0: i32, %arg1: i32) -> (i32, i32, i32) {
    %c0_i32 = arith.constant 0 : i32
    %c0_i32_0 = arith.constant 0 : i32
    return %arg0, %arg1, %c0_i32 : i32, i32, i32
  }
}

</mosaic_0001>

<llo_original>
// kernel: degcnn_forward.6
$region0: #{degcnn_forward.6}
  #allocation0 [shape = 'u32[]', space=smem, size = 0x4, offset = 0x4, fixed_abs, tag = 'smem constant byte address 0x4 - core index']
  #allocation1 [shape = 'u32[144,128]{1,0:T(1,128)}', space=vmem, size = 0x12000, scoped, tag = 'internal scratch']
  %s0 = inlined_call_operand.vmem [shape: bf16[1,128,32], index: 0, kind: input, shape index: {}]
  %s1 = inlined_call_operand.vmem [shape: bf16[1,32,128], index: 1, kind: input, shape index: {}]
  %s2 = inlined_call_operand.vmem [shape: f32[1,1,128], index: 2, kind: input, shape index: {}]
  %s3 = inlined_call_operand.vmem [shape: f32[1,1,128], index: 3, kind: input, shape index: {}]
  %s4 = inlined_call_operand.vmem [shape: f32[1,128,128], index: 4, kind: output, shape index: {}]
  %s5 = sld [smem:[#allocation0]]
  $region26: #{degcnn_forward.6} parent=0
    _
  %s7 = ssub.s32 1, %s5
  %s8 = scalar_select 0, %s7, %s5
  // Predicated region
  $region2: #{degcnn_forward.6} parent=0 // pred_check
    _
  $region3: #{degcnn_forward.6} parent=0 // pred_check_branch
    %10 = sbr.rel (0) target = $region5
  $region4: #{degcnn_forward.6} parent=0 // pred_region
    _
  $region5: #{degcnn_forward.6} parent=0 // pred_fallthru
    _
  // Predicated region
  $region6: #{degcnn_forward.6} parent=0 // pred_check
    _
  $region7: #{degcnn_forward.6} parent=0 // pred_check_branch
    %12 = sbr.rel (0) target = $region9
  $region8: #{degcnn_forward.6} parent=0 // pred_region
    _
  $region9: #{degcnn_forward.6} parent=0 // pred_fallthru
    _
  // Predicated region
  $region10: #{degcnn_forward.6} parent=0 // pred_check
    _
  $region11: #{degcnn_forward.6} parent=0 // pred_check_branch
    %14 = sbr.rel (0) target = $region13
  $region12: #{degcnn_forward.6} parent=0 // pred_region
    _
  $region13: #{degcnn_forward.6} parent=0 // pred_fallthru
    _
  // Predicated region
  $region14: #{degcnn_forward.6} parent=0 // pred_check
    _
  $region15: #{degcnn_forward.6} parent=0 // pred_check_branch
    %16 = sbr.rel (0) target = $region17
  $region16: #{degcnn_forward.6} parent=0 // pred_region
    _
  $region17: #{degcnn_forward.6} parent=0 // pred_fallthru
    _
  %v18 = vld [vmem:[%s0] sm:$0xf]
  %v19 = vld [vmem:[%s0 + $0x4] sm:$0xf]
  %v20 = vld [vmem:[%s0 + $0x8] sm:$0xf]
  %v21 = vld [vmem:[%s0 + $0xc] sm:$0xf]
  %v22 = vld [vmem:[%s0 + $0x10] sm:$0xf]
  %v23 = vld [vmem:[%s0 + $0x14] sm:$0xf]
  %v24 = vld [vmem:[%s0 + $0x18] sm:$0xf]
  %v25 = vld [vmem:[%s0 + $0x1c] sm:$0xf]
  %v26 = vld [vmem:[%s0 + $0x20] sm:$0xf]
  %v27 = vld [vmem:[%s0 + $0x24] sm:$0xf]
  %v28 = vld [vmem:[%s0 + $0x28] sm:$0xf]
  %v29 = vld [vmem:[%s0 + $0x2c] sm:$0xf]
  %v30 = vld [vmem:[%s0 + $0x30] sm:$0xf]
  %v31 = vld [vmem:[%s0 + $0x34] sm:$0xf]
  %v32 = vld [vmem:[%s0 + $0x38] sm:$0xf]
  %v33 = vld [vmem:[%s0 + $0x3c] sm:$0xf]
  %v34 = vld [vmem:[%s1] sm:$0xf]
  %v35 = vld [vmem:[%s1 + $0x4] sm:$0xf]
  %v36 = vld [vmem:[%s1 + $0x8] sm:$0xf]
  %v37 = vld [vmem:[%s1 + $0xc] sm:$0xf]
  %v38 = vld [vmem:[%s2] sm:$0x1]
  %v40 = vlaneseq
  %v41 = vshrl.u32 %v40, 7
  %v42 = vsub.s32 0, %v41
  %v43 = vrot.slane %v38, %v42
  %v61 = vunpack.c.l.b16 %v18
  %v62 = vunpack.c.l.b16 %v19
  %v63 = vunpack.c.l.b16 %v20
  %v64 = vunpack.c.l.b16 %v21
  %v65 = vunpack.c.l.b16 %v22
  %v66 = vunpack.c.l.b16 %v23
  %v67 = vunpack.c.l.b16 %v24
  %v68 = vunpack.c.l.b16 %v25
  %v69 = vunpack.c.l.b16 %v26
  %v70 = vunpack.c.l.b16 %v27
  %v71 = vunpack.c.l.b16 %v28
  %v72 = vunpack.c.l.b16 %v29
  %v73 = vunpack.c.l.b16 %v30
  %v74 = vunpack.c.l.b16 %v31
  %v75 = vunpack.c.l.b16 %v32
  %v76 = vunpack.c.l.b16 %v33
  %v77 = vpack.c.b16 %v62, %v61
  %v78 = vpack.c.b16 %v64, %v63
  %v79 = vpack.c.b16 %v66, %v65
  %v80 = vpack.c.b16 %v68, %v67
  %v81 = vpack.c.b16 %v70, %v69
  %v82 = vpack.c.b16 %v72, %v71
  %v83 = vpack.c.b16 %v74, %v73
  %v84 = vpack.c.b16 %v76, %v75
  %v89 = vunpack.c.l.b16 %v34
  %v90 = vunpack.c.l.b16 %v35
  %v91 = vunpack.c.l.b16 %v36
  %v92 = vunpack.c.l.b16 %v37
  %v93 = vpack.c.b16 %v90, %v89
  %v94 = vpack.c.b16 %v92, %v91
  %vm97 = vcmask 261120
  %v99 = vsel %vm97, %v77, 0
  %v102 = vsel %vm97, %v78, 0
  %v105 = vsel %vm97, %v79, 0
  %v108 = vsel %vm97, %v80, 0
  %v111 = vsel %vm97, %v81, 0
  %v114 = vsel %vm97, %v82, 0
  %v117 = vsel %vm97, %v83, 0
  %v120 = vsel %vm97, %v84, 0
  %122 = vmatprep.subr.bf16.mxu0 0
  %123 = vmatpush1.bf16.msra.mxu0 %v93
  %124 = vmatprep.subr.bf16.mxu0 0
  %125 = vmatpush1.bf16.msra.mxu0 %v94
  %126 = vmatprep.subr.bf16.mxu0 0
  %127 = vmatpush1.bf16.msra.mxu0 0
  %128 = vmatprep.subr.bf16.mxu0 0
  %129 = vmatpush1.bf16.msra.mxu0 0
  %130 = vmatprep.subr.bf16.mxu0 0
  %131 = vmatpush1.bf16.msra.mxu0 0
  %132 = vmatprep.subr.bf16.mxu0 0
  %133 = vmatpush1.bf16.msra.mxu0 0
  %134 = vmatprep.subr.bf16.mxu0 0
  %135 = vmatpush1.bf16.msra.mxu0 0
  %136 = vmatprep.subr.bf16.mxu0 0
  %137 = vmatpush1.bf16.msra.mxu0 0
  %138 = vmatprep.subr.bf16.mxu0 0
  %139 = vmatpush1.bf16.msra.mxu0 0
  %140 = vmatprep.subr.bf16.mxu0 0
  %141 = vmatpush1.bf16.msra.mxu0 0
  %142 = vmatprep.subr.bf16.mxu0 0
  %143 = vmatpush1.bf16.msra.mxu0 0
  %144 = vmatprep.subr.bf16.mxu0 0
  %145 = vmatpush1.bf16.msra.mxu0 0
  %146 = vmatprep.subr.bf16.mxu0 0
  %147 = vmatpush1.bf16.msra.mxu0 0
  %148 = vmatprep.subr.bf16.mxu0 0
  %149 = vmatpush1.bf16.msra.mxu0 0
  %150 = vmatprep.subr.bf16.mxu0 0
  %151 = vmatpush1.bf16.msra.mxu0 0
  %152 = vmatprep.subr.bf16.mxu0 0
  %153 = vmatpush1.bf16.msra.mxu0 0
  %154 = vmatprep.mubr.bf16.mxu0 0
  %155 = vmatmul.mubr.bf16.gmra.mrb[0].mxu0 %v99
  %v156 = vpop.f32.mrb[0].mxu0
  %v157 = vadd.f32 %v43, %v156
  %v158 = vpop.f32.mrb[0].mxu0
  %v159 = vpop.f32.mrb[0].mxu0
  %v160 = vadd.f32 %v43, %v159
  %v161 = vpop.f32.mrb[0].mxu0
  %162 = vmatprep.mubr.bf16.mxu0 0
  %163 = vmatmul.mubr.bf16.gmra.mrb[0].mxu0 %v102
  %v164 = vpop.f32.mrb[0].mxu0
  %v165 = vadd.f32 %v43, %v164
  %v166 = vpop.f32.mrb[0].mxu0
  %v167 = vpop.f32.mrb[0].mxu0
  %v168 = vadd.f32 %v43, %v167
  %v169 = vpop.f32.mrb[0].mxu0
  %170 = vmatprep.mubr.bf16.mxu0 0
  %171 = vmatmul.mubr.bf16.gmra.mrb[0].mxu0 %v105
  %v172 = vpop.f32.mrb[0].mxu0
  %v173 = vadd.f32 %v43, %v172
  %v174 = vpop.f32.mrb[0].mxu0
  %v175 = vpop.f32.mrb[0].mxu0
  %v176 = vadd.f32 %v43, %v175
  %v177 = vpop.f32.mrb[0].mxu0
  %178 = vmatprep.mubr.bf16.mxu0 0
  %179 = vmatmul.mubr.bf16.gmra.mrb[0].mxu0 %v108
  %v180 = vpop.f32.mrb[0].mxu0
  %v181 = vadd.f32 %v43, %v180
  %v182 = vpop.f32.mrb[0].mxu0
  %v183 = vpop.f32.mrb[0].mxu0
  %v184 = vadd.f32 %v43, %v183
  %v185 = vpop.f32.mrb[0].mxu0
  %186 = vmatprep.mubr.bf16.mxu0 0
  %187 = vmatmul.mubr.bf16.gmra.mrb[0].mxu0 %v111
  %v188 = vpop.f32.mrb[0].mxu0
  %v189 = vadd.f32 %v43, %v188
  %v190 = vpop.f32.mrb[0].mxu0
  %v191 = vpop.f32.mrb[0].mxu0
  %v192 = vadd.f32 %v43, %v191
  %v193 = vpop.f32.mrb[0].mxu0
  %194 = vmatprep.mubr.bf16.mxu0 0
  %195 = vmatmul.mubr.bf16.gmra.mrb[0].mxu0 %v114
  %v196 = vpop.f32.mrb[0].mxu0
  %v197 = vadd.f32 %v43, %v196
  %v198 = vpop.f32.mrb[0].mxu0
  %v199 = vpop.f32.mrb[0].mxu0
  %v200 = vadd.f32 %v43, %v199
  %v201 = vpop.f32.mrb[0].mxu0
  %202 = vmatprep.mubr.bf16.mxu0 0
  %203 = vmatmul.mubr.bf16.gmra.mrb[0].mxu0 %v117
  %v204 = vpop.f32.mrb[0].mxu0
  %v205 = vadd.f32 %v43, %v204
  %v206 = vpop.f32.mrb[0].mxu0
  %v207 = vpop.f32.mrb[0].mxu0
  %v208 = vadd.f32 %v43, %v207
  %v209 = vpop.f32.mrb[0].mxu0
  %210 = vmatprep.mubr.bf16.mxu0 0
  %211 = vmatmul.mubr.bf16.gmra.mrb[0].mxu0 %v120
  %v212 = vpop.f32.mrb[0].mxu0
  %v213 = vadd.f32 %v43, %v212
  %v214 = vpop.f32.mrb[0].mxu0
  %v215 = vpop.f32.mrb[0].mxu0
  %v216 = vadd.f32 %v43, %v215
  %v217 = vpop.f32.mrb[0].mxu0
  %218 = vdwg.mxu0
  %vm219 = vcmp.ge.f32.partialorder %v157, 0.0
  %vm220 = vcmp.ge.f32.partialorder %v160, 0.0
  %vm221 = vcmp.ge.f32.partialorder %v165, 0.0
  %vm222 = vcmp.ge.f32.partialorder %v168, 0.0
  %vm223 = vcmp.ge.f32.partialorder %v173, 0.0
  %vm224 = vcmp.ge.f32.partialorder %v176, 0.0
  %vm225 = vcmp.ge.f32.partialorder %v181, 0.0
  %vm226 = vcmp.ge.f32.partialorder %v184, 0.0
  %vm227 = vcmp.ge.f32.partialorder %v189, 0.0
  %vm228 = vcmp.ge.f32.partialorder %v192, 0.0
  %vm229 = vcmp.ge.f32.partialorder %v197, 0.0
  %vm230 = vcmp.ge.f32.partialorder %v200, 0.0
  %vm231 = vcmp.ge.f32.partialorder %v205, 0.0
  %vm232 = vcmp.ge.f32.partialorder %v208, 0.0
  %vm233 = vcmp.ge.f32.partialorder %v213, 0.0
  %vm234 = vcmp.ge.f32.partialorder %v216, 0.0
  %v235 = vld [vmem:[%s3] sm:$0x1]
  %v237 = vlaneseq
  %v238 = vshrl.u32 %v237, 7
  %v239 = vsub.s32 0, %v238
  %v240 = vrot.slane %v235, %v239
  %v242 = vmul.f32 %v240, %v157
  %v243 = vmul.f32 %v240, %v160
  %v244 = vmul.f32 %v240, %v165
  %v245 = vmul.f32 %v240, %v168
  %v246 = vmul.f32 %v240, %v173
  %v247 = vmul.f32 %v240, %v176
  %v248 = vmul.f32 %v240, %v181
  %v249 = vmul.f32 %v240, %v184
  %v250 = vmul.f32 %v240, %v189
  %v251 = vmul.f32 %v240, %v192
  %v252 = vmul.f32 %v240, %v197
  %v253 = vmul.f32 %v240, %v200
  %v254 = vmul.f32 %v240, %v205
  %v255 = vmul.f32 %v240, %v208
  %v256 = vmul.f32 %v240, %v213
  %v257 = vmul.f32 %v240, %v216
  %v258 = vsel %vm219, %v157, %v242
  %v259 = vsel %vm220, %v160, %v243
  %v260 = vsel %vm221, %v165, %v244
  %v261 = vsel %vm222, %v168, %v245
  %v262 = vsel %vm223, %v173, %v246
  %v263 = vsel %vm224, %v176, %v247
  %v264 = vsel %vm225, %v181, %v248
  %v265 = vsel %vm226, %v184, %v249
  %v266 = vsel %vm227, %v189, %v250
  %v267 = vsel %vm228, %v192, %v251
  %v268 = vsel %vm229, %v197, %v252
  %v269 = vsel %vm230, %v200, %v253
  %v270 = vsel %vm231, %v205, %v254
  %v271 = vsel %vm232, %v208, %v255
  %v272 = vsel %vm233, %v213, %v256
  %v273 = vsel %vm234, %v216, %v257
  %274 = vst [vmem:[%s4] sm:$0xff] %v258
  %275 = vst [vmem:[%s4 + $0x8] sm:$0xff] %v259
  %276 = vst [vmem:[%s4 + $0x10] sm:$0xff] %v260
  %277 = vst [vmem:[%s4 + $0x18] sm:$0xff] %v261
  %278 = vst [vmem:[%s4 + $0x20] sm:$0xff] %v262
  %279 = vst [vmem:[%s4 + $0x28] sm:$0xff] %v263
  %280 = vst [vmem:[%s4 + $0x30] sm:$0xff] %v264
  %281 = vst [vmem:[%s4 + $0x38] sm:$0xff] %v265
  %282 = vst [vmem:[%s4 + $0x40] sm:$0xff] %v266
  %283 = vst [vmem:[%s4 + $0x48] sm:$0xff] %v267
  %284 = vst [vmem:[%s4 + $0x50] sm:$0xff] %v268
  %285 = vst [vmem:[%s4 + $0x58] sm:$0xff] %v269
  %286 = vst [vmem:[%s4 + $0x60] sm:$0xff] %v270
  %287 = vst [vmem:[%s4 + $0x68] sm:$0xff] %v271
  %288 = vst [vmem:[%s4 + $0x70] sm:$0xff] %v272
  %289 = vst [vmem:[%s4 + $0x78] sm:$0xff] %v273
  // Predicated region
  $region18: #{degcnn_forward.6} parent=0 // pred_check
    _
  $region19: #{degcnn_forward.6} parent=0 // pred_check_branch
    %291 = sbr.rel (0) target = $region21
  $region20: #{degcnn_forward.6} parent=0 // pred_region
    _
  $region21: #{degcnn_forward.6} parent=0 // pred_fallthru
    _
  // Predicated region
  $region22: #{degcnn_forward.6} parent=0 // pred_check
    _
  $region23: #{degcnn_forward.6} parent=0 // pred_check_branch
    %293 = sbr.rel (0) target = $region25
  $region24: #{degcnn_forward.6} parent=0 // pred_region
    _
  $region25: #{degcnn_forward.6} parent=0 // pred_fallthru
    _

// kernel: degcnn_forward.7
$region0: #{degcnn_forward.7}
  #allocation0 [shape = 'u32[]', space=smem, size = 0x4, offset = 0x4, fixed_abs, tag = 'smem constant byte address 0x4 - core index']
  #allocation1 [shape = 'u32[144,128]{1,0:T(1,128)}', space=vmem, size = 0x12000, scoped, tag = 'internal scratch']
  %s0 = inlined_call_operand.vmem [shape: bf16[1,32,288], index: 0, kind: input, shape index: {}]
  %s1 = inlined_call_operand.vmem [shape: bf16[1,288,128], index: 1, kind: input, shape index: {}]
  %s2 = inlined_call_operand.vmem [shape: f32[1,1,128], index: 2, kind: input, shape index: {}]
  %s3 = inlined_call_operand.vmem [shape: f32[1,1,128], index: 3, kind: input, shape index: {}]
  %s4 = inlined_call_operand.vmem [shape: f32[1,32,128], index: 4, kind: output, shape index: {}]
  %s5 = sld [smem:[#allocation0]]
  $region26: #{degcnn_forward.7} parent=0
    _
  %s7 = ssub.s32 1, %s5
  %s8 = scalar_select 0, %s7, %s5
  // Predicated region
  $region2: #{degcnn_forward.7} parent=0 // pred_check
    _
  $region3: #{degcnn_forward.7} parent=0 // pred_check_branch
    %10 = sbr.rel (0) target = $region5
  $region4: #{degcnn_forward.7} parent=0 // pred_region
    _
  $region5: #{degcnn_forward.7} parent=0 // pred_fallthru
    _
  // Predicated region
  $region6: #{degcnn_forward.7} parent=0 // pred_check
    _
  $region7: #{degcnn_forward.7} parent=0 // pred_check_branch
    %12 = sbr.rel (0) target = $region9
  $region8: #{degcnn_forward.7} parent=0 // pred_region
    _
  $region9: #{degcnn_forward.7} parent=0 // pred_fallthru
    _
  // Predicated region
  $region10: #{degcnn_forward.7} parent=0 // pred_check
    _
  $region11: #{degcnn_forward.7} parent=0 // pred_check_branch
    %14 = sbr.rel (0) target = $region13
  $region12: #{degcnn_forward.7} parent=0 // pred_region
    _
  $region13: #{degcnn_forward.7} parent=0 // pred_fallthru
    _
  // Predicated region
  $region14: #{degcnn_forward.7} parent=0 // pred_check
    _
  $region15: #{degcnn_forward.7} parent=0 // pred_check_branch
    %16 = sbr.rel (0) target = $region17
  $region16: #{degcnn_forward.7} parent=0 // pred_region
    _
  $region17: #{degcnn_forward.7} parent=0 // pred_fallthru
    _
  %v18 = vld [vmem:[%s0] sm:$0xff]
  %v19 = vld [vmem:[%s0 + $0x8] sm:$0xf]
  %v20 = vld [vmem:[%s0 + $0xc] sm:$0xff]
  %v21 = vld [vmem:[%s0 + $0x14] sm:$0xf]
  %v22 = vld [vmem:[%s0 + $0x18] sm:$0xff]
  %v23 = vld [vmem:[%s0 + $0x20] sm:$0xf]
  %v24 = vld [vmem:[%s0 + $0x24] sm:$0xff]
  %v25 = vld [vmem:[%s0 + $0x2c] sm:$0xf]
  %v26 = vld [vmem:[%s1] sm:$0xf]
  %v27 = vld [vmem:[%s1 + $0x4] sm:$0xf]
  %v28 = vld [vmem:[%s1 + $0x8] sm:$0xf]
  %v29 = vld [vmem:[%s1 + $0xc] sm:$0xf]
  %v30 = vld [vmem:[%s1 + $0x10] sm:$0xf]
  %v31 = vld [vmem:[%s1 + $0x14] sm:$0xf]
  %v32 = vld [vmem:[%s1 + $0x18] sm:$0xf]
  %v33 = vld [vmem:[%s1 + $0x1c] sm:$0xf]
  %v34 = vld [vmem:[%s1 + $0x20] sm:$0xf]
  %v35 = vld [vmem:[%s1 + $0x24] sm:$0xf]
  %v36 = vld [vmem:[%s1 + $0x28] sm:$0xf]
  %v37 = vld [vmem:[%s1 + $0x2c] sm:$0xf]
  %v38 = vld [vmem:[%s1 + $0x30] sm:$0xf]
  %v39 = vld [vmem:[%s1 + $0x34] sm:$0xf]
  %v40 = vld [vmem:[%s1 + $0x38] sm:$0xf]
  %v41 = vld [vmem:[%s1 + $0x3c] sm:$0xf]
  %v42 = vld [vmem:[%s1 + $0x40] sm:$0xf]
  %v43 = vld [vmem:[%s1 + $0x44] sm:$0xf]
  %v44 = vld [vmem:[%s1 + $0x48] sm:$0xf]
  %v45 = vld [vmem:[%s1 + $0x4c] sm:$0xf]
  %v46 = vld [vmem:[%s1 + $0x50] sm:$0xf]
  %v47 = vld [vmem:[%s1 + $0x54] sm:$0xf]
  %v48 = vld [vmem:[%s1 + $0x58] sm:$0xf]
  %v49 = vld [vmem:[%s1 + $0x5c] sm:$0xf]
  %v50 = vld [vmem:[%s1 + $0x60] sm:$0xf]
  %v51 = vld [vmem:[%s1 + $0x64] sm:$0xf]
  %v52 = vld [vmem:[%s1 + $0x68] sm:$0xf]
  %v53 = vld [vmem:[%s1 + $0x6c] sm:$0xf]
  %v54 = vld [vmem:[%s1 + $0x70] sm:$0xf]
  %v55 = vld [vmem:[%s1 + $0x74] sm:$0xf]
  %v56 = vld [vmem:[%s1 + $0x78] sm:$0xf]
  %v57 = vld [vmem:[%s1 + $0x7c] sm:$0xf]
  %v58 = vld [vmem:[%s1 + $0x80] sm:$0xf]
  %v59 = vld [vmem:[%s1 + $0x84] sm:$0xf]
  %v60 = vld [vmem:[%s1 + $0x88] sm:$0xf]
  %v61 = vld [vmem:[%s1 + $0x8c] sm:$0xf]
  %v62 = vld [vmem:[%s2] sm:$0x1]
  %v64 = vlaneseq
  %v65 = vshrl.u32 %v64, 7
  %v66 = vsub.s32 0, %v65
  %v67 = vrot.slane %v62, %v66
  %v77 = vunpack.c.l.b16 %v18
  %v78 = vunpack.c.h.b16 %v18
  %v79 = vunpack.c.l.b16 %v19
  %v80 = vunpack.c.l.b16 %v20
  %v81 = vunpack.c.h.b16 %v20
  %v82 = vunpack.c.l.b16 %v21
  %v83 = vunpack.c.l.b16 %v22
  %v84 = vunpack.c.h.b16 %v22
  %v85 = vunpack.c.l.b16 %v23
  %v86 = vunpack.c.l.b16 %v24
  %v87 = vunpack.c.h.b16 %v24
  %v88 = vunpack.c.l.b16 %v25
  %v89 = vpack.c.b16 %v80, %v77
  %v90 = vpack.c.b16 %v81, %v78
  %v91 = vpack.c.b16 %v82, %v79
  %v92 = vpack.c.b16 %v86, %v83
  %v93 = vpack.c.b16 %v87, %v84
  %v94 = vpack.c.b16 %v88, %v85
  %v135 = vunpack.c.l.b16 %v26
  %v136 = vunpack.c.l.b16 %v27
  %v137 = vunpack.c.l.b16 %v28
  %v138 = vunpack.c.l.b16 %v29
  %v139 = vunpack.c.l.b16 %v30
  %v140 = vunpack.c.l.b16 %v31
  %v141 = vunpack.c.l.b16 %v32
  %v142 = vunpack.c.l.b16 %v33
  %v143 = vunpack.c.l.b16 %v34
  %v144 = vunpack.c.l.b16 %v35
  %v145 = vunpack.c.l.b16 %v36
  %v146 = vunpack.c.l.b16 %v37
  %v147 = vunpack.c.l.b16 %v38
  %v148 = vunpack.c.l.b16 %v39
  %v149 = vunpack.c.l.b16 %v40
  %v150 = vunpack.c.l.b16 %v41
  %v151 = vunpack.c.l.b16 %v42
  %v152 = vunpack.c.l.b16 %v43
  %v153 = vunpack.c.l.b16 %v44
  %v154 = vunpack.c.l.b16 %v45
  %v155 = vunpack.c.l.b16 %v46
  %v156 = vunpack.c.l.b16 %v47
  %v157 = vunpack.c.l.b16 %v48
  %v158 = vunpack.c.l.b16 %v49
  %v159 = vunpack.c.l.b16 %v50
  %v160 = vunpack.c.l.b16 %v51
  %v161 = vunpack.c.l.b16 %v52
  %v162 = vunpack.c.l.b16 %v53
  %v163 = vunpack.c.l.b16 %v54
  %v164 = vunpack.c.l.b16 %v55
  %v165 = vunpack.c.l.b16 %v56
  %v166 = vunpack.c.l.b16 %v57
  %v167 = vunpack.c.l.b16 %v58
  %v168 = vunpack.c.l.b16 %v59
  %v169 = vunpack.c.l.b16 %v60
  %v170 = vunpack.c.l.b16 %v61
  %v171 = vpack.c.b16 %v136, %v135
  %v172 = vpack.c.b16 %v138, %v137
  %v173 = vpack.c.b16 %v140, %v139
  %v174 = vpack.c.b16 %v142, %v141
  %v175 = vpack.c.b16 %v144, %v143
  %v176 = vpack.c.b16 %v146, %v145
  %v177 = vpack.c.b16 %v148, %v147
  %v178 = vpack.c.b16 %v150, %v149
  %v179 = vpack.c.b16 %v152, %v151
  %v180 = vpack.c.b16 %v154, %v153
  %v181 = vpack.c.b16 %v156, %v155
  %v182 = vpack.c.b16 %v158, %v157
  %v183 = vpack.c.b16 %v160, %v159
  %v184 = vpack.c.b16 %v162, %v161
  %v185 = vpack.c.b16 %v164, %v163
  %v186 = vpack.c.b16 %v166, %v165
  %v187 = vpack.c.b16 %v168, %v167
  %v188 = vpack.c.b16 %v170, %v169
  %vm207 = vcmask 261120
  %v209 = vsel %vm207, %v91, 0
  %v212 = vsel %vm207, %v94, 0
  %214 = vmatprep.subr.bf16.mxu0 0
  %215 = vmatpush1.bf16.msra.mxu0 %v171
  %216 = vmatprep.subr.bf16.mxu0 0
  %217 = vmatpush1.bf16.msra.mxu0 %v172
  %218 = vmatprep.subr.bf16.mxu0 0
  %219 = vmatpush1.bf16.msra.mxu0 %v173
  %220 = vmatprep.subr.bf16.mxu0 0
  %221 = vmatpush1.bf16.msra.mxu0 %v174
  %222 = vmatprep.subr.bf16.mxu0 0
  %223 = vmatpush1.bf16.msra.mxu0 %v175
  %224 = vmatprep.subr.bf16.mxu0 0
  %225 = vmatpush1.bf16.msra.mxu0 %v176
  %226 = vmatprep.subr.bf16.mxu0 0
  %227 = vmatpush1.bf16.msra.mxu0 %v177
  %228 = vmatprep.subr.bf16.mxu0 0
  %229 = vmatpush1.bf16.msra.mxu0 %v178
  %230 = vmatprep.subr.bf16.mxu0 0
  %231 = vmatpush1.bf16.msra.mxu0 %v179
  %232 = vmatprep.subr.bf16.mxu0 0
  %233 = vmatpush1.bf16.msra.mxu0 %v180
  %234 = vmatprep.subr.bf16.mxu0 0
  %235 = vmatpush1.bf16.msra.mxu0 %v181
  %236 = vmatprep.subr.bf16.mxu0 0
  %237 = vmatpush1.bf16.msra.mxu0 %v182
  %238 = vmatprep.subr.bf16.mxu0 0
  %239 = vmatpush1.bf16.msra.mxu0 %v183
  %240 = vmatprep.subr.bf16.mxu0 0
  %241 = vmatpush1.bf16.msra.mxu0 %v184
  %242 = vmatprep.subr.bf16.mxu0 0
  %243 = vmatpush1.bf16.msra.mxu0 %v185
  %244 = vmatprep.subr.bf16.mxu0 0
  %245 = vmatpush1.bf16.msra.mxu0 %v186
  %246 = vmatprep.mubr.bf16.mxu0 %v90
  %247 = vmatmul.mubr.bf16.gmra.mrb[0].mxu0 %v89
  %v248 = vpop.f32.mrb[0].mxu0
  %v249 = vadd.f32 %v67, %v248
  %v250 = vpop.f32.mrb[0].mxu0
  %v251 = vpop.f32.mrb[0].mxu0
  %v252 = vadd.f32 %v67, %v251
  %v253 = vpop.f32.mrb[0].mxu0
  %254 = vmatprep.mubr.bf16.mxu0 %v93
  %255 = vmatmul.mubr.bf16.gmra.mrb[0].mxu0 %v92
  %v256 = vpop.f32.mrb[0].mxu0
  %v257 = vadd.f32 %v67, %v256
  %v258 = vpop.f32.mrb[0].mxu0
  %v259 = vpop.f32.mrb[0].mxu0
  %v260 = vadd.f32 %v67, %v259
  %v261 = vpop.f32.mrb[0].mxu0
  %262 = vdwg.mxu0
  %263 = vmatprep.subr.bf16.mxu0 0
  %264 = vmatpush1.bf16.msra.mxu0 %v187
  %265 = vmatprep.subr.bf16.mxu0 0
  %266 = vmatpush1.bf16.msra.mxu0 %v188
  %267 = vmatprep.subr.bf16.mxu0 0
  %268 = vmatpush1.bf16.msra.mxu0 0
  %269 = vmatprep.subr.bf16.mxu0 0
  %270 = vmatpush1.bf16.msra.mxu0 0
  %271 = vmatprep.subr.bf16.mxu0 0
  %272 = vmatpush1.bf16.msra.mxu0 0
  %273 = vmatprep.subr.bf16.mxu0 0
  %274 = vmatpush1.bf16.msra.mxu0 0
  %275 = vmatprep.subr.bf16.mxu0 0
  %276 = vmatpush1.bf16.msra.mxu0 0
  %277 = vmatprep.subr.bf16.mxu0 0
  %278 = vmatpush1.bf16.msra.mxu0 0
  %279 = vmatprep.subr.bf16.mxu0 0
  %280 = vmatpush1.bf16.msra.mxu0 0
  %281 = vmatprep.subr.bf16.mxu0 0
  %282 = vmatpush1.bf16.msra.mxu0 0
  %283 = vmatprep.subr.bf16.mxu0 0
  %284 = vmatpush1.bf16.msra.mxu0 0
  %285 = vmatprep.subr.bf16.mxu0 0
  %286 = vmatpush1.bf16.msra.mxu0 0
  %287 = vmatprep.subr.bf16.mxu0 0
  %288 = vmatpush1.bf16.msra.mxu0 0
  %289 = vmatprep.subr.bf16.mxu0 0
  %290 = vmatpush1.bf16.msra.mxu0 0
  %291 = vmatprep.subr.bf16.mxu0 0
  %292 = vmatpush1.bf16.msra.mxu0 0
  %293 = vmatprep.subr.bf16.mxu0 0
  %294 = vmatpush1.bf16.msra.mxu0 0
  %295 = vmatprep.mubr.bf16.mxu0 0
  %296 = vmatmul.mubr.bf16.gmra.mrb[0].mxu0 %v209
  %v297 = vpop.f32.mrb[0].mxu0
  %v298 = vadd.f32 %v249, %v297
  %v299 = vpop.f32.mrb[0].mxu0
  %v300 = vpop.f32.mrb[0].mxu0
  %v301 = vadd.f32 %v252, %v300
  %v302 = vpop.f32.mrb[0].mxu0
  %303 = vmatprep.mubr.bf16.mxu0 0
  %304 = vmatmul.mubr.bf16.gmra.mrb[0].mxu0 %v212
  %v305 = vpop.f32.mrb[0].mxu0
  %v306 = vadd.f32 %v257, %v305
  %v307 = vpop.f32.mrb[0].mxu0
  %v308 = vpop.f32.mrb[0].mxu0
  %v309 = vadd.f32 %v260, %v308
  %v310 = vpop.f32.mrb[0].mxu0
  %311 = vdwg.mxu0
  %vm312 = vcmp.ge.f32.partialorder %v298, 0.0
  %vm313 = vcmp.ge.f32.partialorder %v301, 0.0
  %vm314 = vcmp.ge.f32.partialorder %v306, 0.0
  %vm315 = vcmp.ge.f32.partialorder %v309, 0.0
  %v316 = vld [vmem:[%s3] sm:$0x1]
  %v318 = vlaneseq
  %v319 = vshrl.u32 %v318, 7
  %v320 = vsub.s32 0, %v319
  %v321 = vrot.slane %v316, %v320
  %v323 = vmul.f32 %v321, %v298
  %v324 = vmul.f32 %v321, %v301
  %v325 = vmul.f32 %v321, %v306
  %v326 = vmul.f32 %v321, %v309
  %v327 = vsel %vm312, %v298, %v323
  %v328 = vsel %vm313, %v301, %v324
  %v329 = vsel %vm314, %v306, %v325
  %v330 = vsel %vm315, %v309, %v326
  %331 = vst [vmem:[%s4] sm:$0xff] %v327
  %332 = vst [vmem:[%s4 + $0x8] sm:$0xff] %v328
  %333 = vst [vmem:[%s4 + $0x10] sm:$0xff] %v329
  %334 = vst [vmem:[%s4 + $0x18] sm:$0xff] %v330
  // Predicated region
  $region18: #{degcnn_forward.7} parent=0 // pred_check
    _
  $region19: #{degcnn_forward.7} parent=0 // pred_check_branch
    %336 = sbr.rel (0) target = $region21
  $region20: #{degcnn_forward.7} parent=0 // pred_region
    _
  $region21: #{degcnn_forward.7} parent=0 // pred_fallthru
    _
  // Predicated region
  $region22: #{degcnn_forward.7} parent=0 // pred_check
    _
  $region23: #{degcnn_forward.7} parent=0 // pred_check_branch
    %338 = sbr.rel (0) target = $region25
  $region24: #{degcnn_forward.7} parent=0 // pred_region
    _
  $region25: #{degcnn_forward.7} parent=0 // pred_fallthru
    _

// kernel: degcnn_forward.8
$region0: #{degcnn_forward.8}
  #allocation0 [shape = 'u32[]', space=smem, size = 0x4, offset = 0x4, fixed_abs, tag = 'smem constant byte address 0x4 - core index']
  #allocation1 [shape = 'u32[144,128]{1,0:T(1,128)}', space=vmem, size = 0x12000, scoped, tag = 'internal scratch']
  %s0 = inlined_call_operand.vmem [shape: bf16[1,16,288], index: 0, kind: input, shape index: {}]
  %s1 = inlined_call_operand.vmem [shape: bf16[1,288,128], index: 1, kind: input, shape index: {}]
  %s2 = inlined_call_operand.vmem [shape: f32[1,1,128], index: 2, kind: input, shape index: {}]
  %s3 = inlined_call_operand.vmem [shape: f32[1,1,128], index: 3, kind: input, shape index: {}]
  %s4 = inlined_call_operand.vmem [shape: f32[1,16,128], index: 4, kind: output, shape index: {}]
  %s5 = sld [smem:[#allocation0]]
  $region26: #{degcnn_forward.8} parent=0
    _
  %s7 = ssub.s32 1, %s5
  %s8 = scalar_select 0, %s7, %s5
  // Predicated region
  $region2: #{degcnn_forward.8} parent=0 // pred_check
    _
  $region3: #{degcnn_forward.8} parent=0 // pred_check_branch
    %10 = sbr.rel (0) target = $region5
  $region4: #{degcnn_forward.8} parent=0 // pred_region
    _
  $region5: #{degcnn_forward.8} parent=0 // pred_fallthru
    _
  // Predicated region
  $region6: #{degcnn_forward.8} parent=0 // pred_check
    _
  $region7: #{degcnn_forward.8} parent=0 // pred_check_branch
    %12 = sbr.rel (0) target = $region9
  $region8: #{degcnn_forward.8} parent=0 // pred_region
    _
  $region9: #{degcnn_forward.8} parent=0 // pred_fallthru
    _
  // Predicated region
  $region10: #{degcnn_forward.8} parent=0 // pred_check
    _
  $region11: #{degcnn_forward.8} parent=0 // pred_check_branch
    %14 = sbr.rel (0) target = $region13
  $region12: #{degcnn_forward.8} parent=0 // pred_region
    _
  $region13: #{degcnn_forward.8} parent=0 // pred_fallthru
    _
  // Predicated region
  $region14: #{degcnn_forward.8} parent=0 // pred_check
    _
  $region15: #{degcnn_forward.8} parent=0 // pred_check_branch
    %16 = sbr.rel (0) target = $region17
  $region16: #{degcnn_forward.8} parent=0 // pred_region
    _
  $region17: #{degcnn_forward.8} parent=0 // pred_fallthru
    _
  %v18 = vld [vmem:[%s0] sm:$0xff]
  %v19 = vld [vmem:[%s0 + $0x8] sm:$0xf]
  %v20 = vld [vmem:[%s0 + $0xc] sm:$0xff]
  %v21 = vld [vmem:[%s0 + $0x14] sm:$0xf]
  %v22 = vld [vmem:[%s1] sm:$0xf]
  %v23 = vld [vmem:[%s1 + $0x4] sm:$0xf]
  %v24 = vld [vmem:[%s1 + $0x8] sm:$0xf]
  %v25 = vld [vmem:[%s1 + $0xc] sm:$0xf]
  %v26 = vld [vmem:[%s1 + $0x10] sm:$0xf]
  %v27 = vld [vmem:[%s1 + $0x14] sm:$0xf]
  %v28 = vld [vmem:[%s1 + $0x18] sm:$0xf]
  %v29 = vld [vmem:[%s1 + $0x1c] sm:$0xf]
  %v30 = vld [vmem:[%s1 + $0x20] sm:$0xf]
  %v31 = vld [vmem:[%s1 + $0x24] sm:$0xf]
  %v32 = vld [vmem:[%s1 + $0x28] sm:$0xf]
  %v33 = vld [vmem:[%s1 + $0x2c] sm:$0xf]
  %v34 = vld [vmem:[%s1 + $0x30] sm:$0xf]
  %v35 = vld [vmem:[%s1 + $0x34] sm:$0xf]
  %v36 = vld [vmem:[%s1 + $0x38] sm:$0xf]
  %v37 = vld [vmem:[%s1 + $0x3c] sm:$0xf]
  %v38 = vld [vmem:[%s1 + $0x40] sm:$0xf]
  %v39 = vld [vmem:[%s1 + $0x44] sm:$0xf]
  %v40 = vld [vmem:[%s1 + $0x48] sm:$0xf]
  %v41 = vld [vmem:[%s1 + $0x4c] sm:$0xf]
  %v42 = vld [vmem:[%s1 + $0x50] sm:$0xf]
  %v43 = vld [vmem:[%s1 + $0x54] sm:$0xf]
  %v44 = vld [vmem:[%s1 + $0x58] sm:$0xf]
  %v45 = vld [vmem:[%s1 + $0x5c] sm:$0xf]
  %v46 = vld [vmem:[%s1 + $0x60] sm:$0xf]
  %v47 = vld [vmem:[%s1 + $0x64] sm:$0xf]
  %v48 = vld [vmem:[%s1 + $0x68] sm:$0xf]
  %v49 = vld [vmem:[%s1 + $0x6c] sm:$0xf]
  %v50 = vld [vmem:[%s1 + $0x70] sm:$0xf]
  %v51 = vld [vmem:[%s1 + $0x74] sm:$0xf]
  %v52 = vld [vmem:[%s1 + $0x78] sm:$0xf]
  %v53 = vld [vmem:[%s1 + $0x7c] sm:$0xf]
  %v54 = vld [vmem:[%s1 + $0x80] sm:$0xf]
  %v55 = vld [vmem:[%s1 + $0x84] sm:$0xf]
  %v56 = vld [vmem:[%s1 + $0x88] sm:$0xf]
  %v57 = vld [vmem:[%s1 + $0x8c] sm:$0xf]
  %v58 = vld [vmem:[%s2] sm:$0x1]
  %v60 = vlaneseq
  %v61 = vshrl.u32 %v60, 7
  %v62 = vsub.s32 0, %v61
  %v63 = vrot.slane %v58, %v62
  %v69 = vunpack.c.l.b16 %v18
  %v70 = vunpack.c.h.b16 %v18
  %v71 = vunpack.c.l.b16 %v19
  %v72 = vunpack.c.l.b16 %v20
  %v73 = vunpack.c.h.b16 %v20
  %v74 = vunpack.c.l.b16 %v21
  %v75 = vpack.c.b16 %v72, %v69
  %v76 = vpack.c.b16 %v73, %v70
  %v77 = vpack.c.b16 %v74, %v71
  %v116 = vunpack.c.l.b16 %v22
  %v117 = vunpack.c.l.b16 %v23
  %v118 = vunpack.c.l.b16 %v24
  %v119 = vunpack.c.l.b16 %v25
  %v120 = vunpack.c.l.b16 %v26
  %v121 = vunpack.c.l.b16 %v27
  %v122 = vunpack.c.l.b16 %v28
  %v123 = vunpack.c.l.b16 %v29
  %v124 = vunpack.c.l.b16 %v30
  %v125 = vunpack.c.l.b16 %v31
  %v126 = vunpack.c.l.b16 %v32
  %v127 = vunpack.c.l.b16 %v33
  %v128 = vunpack.c.l.b16 %v34
  %v129 = vunpack.c.l.b16 %v35
  %v130 = vunpack.c.l.b16 %v36
  %v131 = vunpack.c.l.b16 %v37
  %v132 = vunpack.c.l.b16 %v38
  %v133 = vunpack.c.l.b16 %v39
  %v134 = vunpack.c.l.b16 %v40
  %v135 = vunpack.c.l.b16 %v41
  %v136 = vunpack.c.l.b16 %v42
  %v137 = vunpack.c.l.b16 %v43
  %v138 = vunpack.c.l.b16 %v44
  %v139 = vunpack.c.l.b16 %v45
  %v140 = vunpack.c.l.b16 %v46
  %v141 = vunpack.c.l.b16 %v47
  %v142 = vunpack.c.l.b16 %v48
  %v143 = vunpack.c.l.b16 %v49
  %v144 = vunpack.c.l.b16 %v50
  %v145 = vunpack.c.l.b16 %v51
  %v146 = vunpack.c.l.b16 %v52
  %v147 = vunpack.c.l.b16 %v53
  %v148 = vunpack.c.l.b16 %v54
  %v149 = vunpack.c.l.b16 %v55
  %v150 = vunpack.c.l.b16 %v56
  %v151 = vunpack.c.l.b16 %v57
  %v152 = vpack.c.b16 %v117, %v116
  %v153 = vpack.c.b16 %v119, %v118
  %v154 = vpack.c.b16 %v121, %v120
  %v155 = vpack.c.b16 %v123, %v122
  %v156 = vpack.c.b16 %v125, %v124
  %v157 = vpack.c.b16 %v127, %v126
  %v158 = vpack.c.b16 %v129, %v128
  %v159 = vpack.c.b16 %v131, %v130
  %v160 = vpack.c.b16 %v133, %v132
  %v161 = vpack.c.b16 %v135, %v134
  %v162 = vpack.c.b16 %v137, %v136
  %v163 = vpack.c.b16 %v139, %v138
  %v164 = vpack.c.b16 %v141, %v140
  %v165 = vpack.c.b16 %v143, %v142
  %v166 = vpack.c.b16 %v145, %v144
  %v167 = vpack.c.b16 %v147, %v146
  %v168 = vpack.c.b16 %v149, %v148
  %v169 = vpack.c.b16 %v151, %v150
  %vm188 = vcmask 261120
  %v190 = vsel %vm188, %v77, 0
  %192 = vmatprep.subr.bf16.mxu0 0
  %193 = vmatpush1.bf16.msra.mxu0 %v152
  %194 = vmatprep.subr.bf16.mxu0 0
  %195 = vmatpush1.bf16.msra.mxu0 %v153
  %196 = vmatprep.subr.bf16.mxu0 0
  %197 = vmatpush1.bf16.msra.mxu0 %v154
  %198 = vmatprep.subr.bf16.mxu0 0
  %199 = vmatpush1.bf16.msra.mxu0 %v155
  %200 = vmatprep.subr.bf16.mxu0 0
  %201 = vmatpush1.bf16.msra.mxu0 %v156
  %202 = vmatprep.subr.bf16.mxu0 0
  %203 = vmatpush1.bf16.msra.mxu0 %v157
  %204 = vmatprep.subr.bf16.mxu0 0
  %205 = vmatpush1.bf16.msra.mxu0 %v158
  %206 = vmatprep.subr.bf16.mxu0 0
  %207 = vmatpush1.bf16.msra.mxu0 %v159
  %208 = vmatprep.subr.bf16.mxu0 0
  %209 = vmatpush1.bf16.msra.mxu0 %v160
  %210 = vmatprep.subr.bf16.mxu0 0
  %211 = vmatpush1.bf16.msra.mxu0 %v161
  %212 = vmatprep.subr.bf16.mxu0 0
  %213 = vmatpush1.bf16.msra.mxu0 %v162
  %214 = vmatprep.subr.bf16.mxu0 0
  %215 = vmatpush1.bf16.msra.mxu0 %v163
  %216 = vmatprep.subr.bf16.mxu0 0
  %217 = vmatpush1.bf16.msra.mxu0 %v164
  %218 = vmatprep.subr.bf16.mxu0 0
  %219 = vmatpush1.bf16.msra.mxu0 %v165
  %220 = vmatprep.subr.bf16.mxu0 0
  %221 = vmatpush1.bf16.msra.mxu0 %v166
  %222 = vmatprep.subr.bf16.mxu0 0
  %223 = vmatpush1.bf16.msra.mxu0 %v167
  %224 = vmatprep.mubr.bf16.mxu0 %v76
  %225 = vmatmul.mubr.bf16.gmra.mrb[0].mxu0 %v75
  %v226 = vpop.f32.mrb[0].mxu0
  %v227 = vadd.f32 %v63, %v226
  %v228 = vpop.f32.mrb[0].mxu0
  %v229 = vpop.f32.mrb[0].mxu0
  %v230 = vadd.f32 %v63, %v229
  %v231 = vpop.f32.mrb[0].mxu0
  %232 = vdwg.mxu0
  %233 = vmatprep.subr.bf16.mxu0 0
  %234 = vmatpush1.bf16.msra.mxu0 %v168
  %235 = vmatprep.subr.bf16.mxu0 0
  %236 = vmatpush1.bf16.msra.mxu0 %v169
  %237 = vmatprep.subr.bf16.mxu0 0
  %238 = vmatpush1.bf16.msra.mxu0 0
  %239 = vmatprep.subr.bf16.mxu0 0
  %240 = vmatpush1.bf16.msra.mxu0 0
  %241 = vmatprep.subr.bf16.mxu0 0
  %242 = vmatpush1.bf16.msra.mxu0 0
  %243 = vmatprep.subr.bf16.mxu0 0
  %244 = vmatpush1.bf16.msra.mxu0 0
  %245 = vmatprep.subr.bf16.mxu0 0
  %246 = vmatpush1.bf16.msra.mxu0 0
  %247 = vmatprep.subr.bf16.mxu0 0
  %248 = vmatpush1.bf16.msra.mxu0 0
  %249 = vmatprep.subr.bf16.mxu0 0
  %250 = vmatpush1.bf16.msra.mxu0 0
  %251 = vmatprep.subr.bf16.mxu0 0
  %252 = vmatpush1.bf16.msra.mxu0 0
  %253 = vmatprep.subr.bf16.mxu0 0
  %254 = vmatpush1.bf16.msra.mxu0 0
  %255 = vmatprep.subr.bf16.mxu0 0
  %256 = vmatpush1.bf16.msra.mxu0 0
  %257 = vmatprep.subr.bf16.mxu0 0
  %258 = vmatpush1.bf16.msra.mxu0 0
  %259 = vmatprep.subr.bf16.mxu0 0
  %260 = vmatpush1.bf16.msra.mxu0 0
  %261 = vmatprep.subr.bf16.mxu0 0
  %262 = vmatpush1.bf16.msra.mxu0 0
  %263 = vmatprep.subr.bf16.mxu0 0
  %264 = vmatpush1.bf16.msra.mxu0 0
  %265 = vmatprep.mubr.bf16.mxu0 0
  %266 = vmatmul.mubr.bf16.gmra.mrb[0].mxu0 %v190
  %v267 = vpop.f32.mrb[0].mxu0
  %v268 = vadd.f32 %v227, %v267
  %v269 = vpop.f32.mrb[0].mxu0
  %v270 = vpop.f32.mrb[0].mxu0
  %v271 = vadd.f32 %v230, %v270
  %v272 = vpop.f32.mrb[0].mxu0
  %273 = vdwg.mxu0
  %vm274 = vcmp.ge.f32.partialorder %v268, 0.0
  %vm275 = vcmp.ge.f32.partialorder %v271, 0.0
  %v276 = vld [vmem:[%s3] sm:$0x1]
  %v278 = vlaneseq
  %v279 = vshrl.u32 %v278, 7
  %v280 = vsub.s32 0, %v279
  %v281 = vrot.slane %v276, %v280
  %v283 = vmul.f32 %v281, %v268
  %v284 = vmul.f32 %v281, %v271
  %v285 = vsel %vm274, %v268, %v283
  %v286 = vsel %vm275, %v271, %v284
  %287 = vst [vmem:[%s4] sm:$0xff] %v285
  %288 = vst [vmem:[%s4 + $0x8] sm:$0xff] %v286
  // Predicated region
  $region18: #{degcnn_forward.8} parent=0 // pred_check
    _
  $region19: #{degcnn_forward.8} parent=0 // pred_check_branch
    %290 = sbr.rel (0) target = $region21
  $region20: #{degcnn_forward.8} parent=0 // pred_region
    _
  $region21: #{degcnn_forward.8} parent=0 // pred_fallthru
    _
  // Predicated region
  $region22: #{degcnn_forward.8} parent=0 // pred_check
    _
  $region23: #{degcnn_forward.8} parent=0 // pred_check_branch
    %292 = sbr.rel (0) target = $region25
  $region24: #{degcnn_forward.8} parent=0 // pred_region
    _
  $region25: #{degcnn_forward.8} parent=0 // pred_fallthru
    _

// kernel: degcnn_forward.10
$region0: #{degcnn_forward.10}
  #allocation0 [shape = 'u32[]', space=smem, size = 0x4, offset = 0x4, fixed_abs, tag = 'smem constant byte address 0x4 - core index']
  #allocation1 [shape = 'u32[144,128]{1,0:T(1,128)}', space=vmem, size = 0x12000, scoped, tag = 'internal scratch']
  %s0 = inlined_call_operand.vmem [shape: bf16[4,128,512], index: 0, kind: input, shape index: {}]
  %s1 = inlined_call_operand.vmem [shape: bf16[4,512,128], index: 1, kind: input, shape index: {}]
  %s2 = inlined_call_operand.vmem [shape: f32[4,1,128], index: 2, kind: input, shape index: {}]
  %s3 = inlined_call_operand.vmem [shape: f32[4,1,128], index: 3, kind: input, shape index: {}]
  %s4 = inlined_call_operand.vmem [shape: f32[4,128,128], index: 4, kind: output, shape index: {}]
  %s5 = sld [smem:[#allocation0]]
  $region49: #{degcnn_forward.10} parent=0
    _
  %s7 = ssub.s32 1, %s5
  %s8 = scalar_select 0, %s7, %s5
  loop: start=0, step=1, limit=6
  $region2: #{degcnn_forward.10} parent=0 // loop_pre_header
    _
  $region3: #{degcnn_forward.10} parent=0 // loop_header
    %s10 = sphi 0, %s14
    %p11 = scmp.ge.s32.totalorder %s10, 6
    %s17 = sphi 0, %s29
    %s18 = sphi 0, %s25
    %s19 = sphi 0, %s17
    %s20 = sphi 0, %s18
    %s21 = sphi 0, %s19
    %s22 = sphi 0, %s20
    %s34 = sphi 0, %s36
    %s37 = sphi 0, %s34
    %s38 = sphi 0, %s37
    %s54 = sphi 0, %s38
    %s60 = sphi 0, %s62
    %s63 = sphi 0, %s60
    %s64 = sphi 0, %s63
    %s80 = sphi 0, %s64
    %s86 = sphi 0, %s88
    %s89 = sphi 0, %s86
    %s90 = sphi 0, %s89
    %s106 = sphi 0, %s90
    %s112 = sphi 0, %s114
    %s115 = sphi 0, %s112
    %s116 = sphi 0, %s115
    %s132 = sphi 0, %s116
    %s140 = sphi 0, %s142
    %s143 = sphi 0, %s140
    %s144 = sphi 0, %s143
    %s160 = sphi 0, %s144
  $region4: #{degcnn_forward.10} parent=0 // loop_header_branch
    %13 = sbr.rel (%p11) target = $region8
  $region5: #{degcnn_forward.10} parent=0 // loop_body
    %s15 = ssub.s32 %s10, 1
    %s16 = ssub.s32 %s10, 2
    %s23 = sadd.s32 1, %s18
    %p24 = scmp.ge.s32.totalorder %s23, 1
    %s25 = scalar_select %p24, 0, %s23
    %s26 = sadd.s32 1, %s17
    %s27 = scalar_select %p24, %s26, %s17
    %p28 = scmp.ge.s32.totalorder %s27, 4
    %s29 = scalar_select %p28, 0, %s27
    %s30 = ssub.s32 %s17, %s29
    %s31 = ssub.s32 %s18, %s25
    %s32 = sor.u32 %s30, %s31
    %p33 = scmp.eq.s32.totalorder %s32, 0
    %s35 = sadd.s32 %s34, 1
    %s36 = scalar_select %p33, %s34, %s35
    %p39 = pneg %p33
    %p40 = scmp.eq.s32.totalorder %s10, 3
    %p41 = por %p39, %p40
    %p42 = scmp.ne.s32.totalorder %s34, %s37
    %p43 = scmp.eq.s32.totalorder %s10, 0
    %p44 = por %p42, %p43
    %p45 = scmp.ne.s32.totalorder %s34, %s37
    %p46 = scmp.eq.s32.totalorder %s15, 3
    %p47 = por %p45, %p46
    %p48 = scmp.ne.s32.totalorder %s37, %s38
    %p49 = scmp.eq.s32.totalorder %s15, 0
    %p50 = por %p48, %p49
    %p51 = scmp.ne.s32.totalorder %s37, %s38
    %p52 = scmp.eq.s32.totalorder %s16, 3
    %p53 = por %p51, %p52
    %p55 = scmp.ne.s32.totalorder %s38, %s54
    %p56 = scmp.eq.s32.totalorder %s16, 0
    %p57 = por %p55, %p56
    %s58 = ssub.s32 %s17, %s29
    %p59 = scmp.eq.s32.totalorder %s58, 0
    %s61 = sadd.s32 %s60, 1
    %s62 = scalar_select %p59, %s60, %s61
    %p65 = pneg %p59
    %p66 = scmp.eq.s32.totalorder %s10, 3
    %p67 = por %p65, %p66
    %p68 = scmp.ne.s32.totalorder %s60, %s63
    %p69 = scmp.eq.s32.totalorder %s10, 0
    %p70 = por %p68, %p69
    %p71 = scmp.ne.s32.totalorder %s60, %s63
    %p72 = scmp.eq.s32.totalorder %s15, 3
    %p73 = por %p71, %p72
    %p74 = scmp.ne.s32.totalorder %s63, %s64
    %p75 = scmp.eq.s32.totalorder %s15, 0
    %p76 = por %p74, %p75
    %p77 = scmp.ne.s32.totalorder %s63, %s64
    %p78 = scmp.eq.s32.totalorder %s16, 3
    %p79 = por %p77, %p78
    %p81 = scmp.ne.s32.totalorder %s64, %s80
    %p82 = scmp.eq.s32.totalorder %s16, 0
    %p83 = por %p81, %p82
    %s84 = ssub.s32 %s17, %s29
    %p85 = scmp.eq.s32.totalorder %s84, 0
    %s87 = sadd.s32 %s86, 1
    %s88 = scalar_select %p85, %s86, %s87
    %p91 = pneg %p85
    %p92 = scmp.eq.s32.totalorder %s10, 3
    %p93 = por %p91, %p92
    %p94 = scmp.ne.s32.totalorder %s86, %s89
    %p95 = scmp.eq.s32.totalorder %s10, 0
    %p96 = por %p94, %p95
    %p97 = scmp.ne.s32.totalorder %s86, %s89
    %p98 = scmp.eq.s32.totalorder %s15, 3
    %p99 = por %p97, %p98
    %p100 = scmp.ne.s32.totalorder %s89, %s90
    %p101 = scmp.eq.s32.totalorder %s15, 0
    %p102 = por %p100, %p101
    %p103 = scmp.ne.s32.totalorder %s89, %s90
    %p104 = scmp.eq.s32.totalorder %s16, 3
    %p105 = por %p103, %p104
    %p107 = scmp.ne.s32.totalorder %s90, %s106
    %p108 = scmp.eq.s32.totalorder %s16, 0
    %p109 = por %p107, %p108
    %s110 = ssub.s32 %s17, %s29
    %p111 = scmp.eq.s32.totalorder %s110, 0
    %s113 = sadd.s32 %s112, 1
    %s114 = scalar_select %p111, %s112, %s113
    %p117 = pneg %p111
    %p118 = scmp.eq.s32.totalorder %s10, 3
    %p119 = por %p117, %p118
    %p120 = scmp.ne.s32.totalorder %s112, %s115
    %p121 = scmp.eq.s32.totalorder %s10, 0
    %p122 = por %p120, %p121
    %p123 = scmp.ne.s32.totalorder %s112, %s115
    %p124 = scmp.eq.s32.totalorder %s15, 3
    %p125 = por %p123, %p124
    %p126 = scmp.ne.s32.totalorder %s115, %s116
    %p127 = scmp.eq.s32.totalorder %s15, 0
    %p128 = por %p126, %p127
    %p129 = scmp.ne.s32.totalorder %s115, %s116
    %p130 = scmp.eq.s32.totalorder %s16, 3
    %p131 = por %p129, %p130
    %p133 = scmp.ne.s32.totalorder %s116, %s132
    %p134 = scmp.eq.s32.totalorder %s16, 0
    %p135 = por %p133, %p134
    %s136 = ssub.s32 %s17, %s29
    %s137 = ssub.s32 %s18, %s25
    %s138 = sor.u32 %s136, %s137
    %p139 = scmp.eq.s32.totalorder %s138, 0
    %s141 = sadd.s32 %s140, 1
    %s142 = scalar_select %p139, %s140, %s141
    %p145 = pneg %p139
    %p146 = scmp.eq.s32.totalorder %s10, 3
    %p147 = por %p145, %p146
    %p148 = scmp.ne.s32.totalorder %s140, %s143
    %p149 = scmp.eq.s32.totalorder %s10, 0
    %p150 = por %p148, %p149
    %p151 = scmp.ne.s32.totalorder %s140, %s143
    %p152 = scmp.eq.s32.totalorder %s15, 3
    %p153 = por %p151, %p152
    %p154 = scmp.ne.s32.totalorder %s143, %s144
    %p155 = scmp.eq.s32.totalorder %s15, 0
    %p156 = por %p154, %p155
    %p157 = scmp.ne.s32.totalorder %s143, %s144
    %p158 = scmp.eq.s32.totalorder %s16, 3
    %p159 = por %p157, %p158
    %p161 = scmp.ne.s32.totalorder %s144, %s160
    %p162 = scmp.eq.s32.totalorder %s16, 0
    %p163 = por %p161, %p162
    %p164 = scmp.le.s32.totalorder 1, %s10
    %p165 = scmp.lt.s32.totalorder %s10, 5
    %p166 = pnand %p164, %p165
    %p167 = pneg %p166
    // Predicated region
    $region9: #{degcnn_forward.10} parent=5 // pred_check
      _
    $region10: #{degcnn_forward.10} parent=5 // pred_check_branch
      %169 = sbr.rel (%p166) target = $region12
    $region11: #{degcnn_forward.10} parent=5 // pred_region
      %s170 = ssub.s32 %s10, 1
    $region12: #{degcnn_forward.10} parent=5 // pred_fallthru
      _
    %p171 = scmp.lt.s32.totalorder %s10, 4
    // Predicated region
    $region13: #{degcnn_forward.10} parent=5 // pred_check
      %p172 = pneg %p171
    $region14: #{degcnn_forward.10} parent=5 // pred_check_branch
      %174 = sbr.rel (%p172) target = $region16
    $region15: #{degcnn_forward.10} parent=5 // pred_region
      // Predicated region
      $region17: #{degcnn_forward.10} parent=15 // pred_check
        %p175 = pneg %p44
      $region18: #{degcnn_forward.10} parent=15 // pred_check_branch
        %177 = sbr.rel (%p175) target = $region20
      $region19: #{degcnn_forward.10} parent=15 // pred_region
        %s178 = smul.u32 16, %s18
        %p179 = scmp.lt.s32.totalorder %s17, 3
        %s180 = scalar_select %p179, %s17, 3
        %p181 = scmp.lt.s32.totalorder %s178, 15
        %s182 = scalar_select %p181, %s178, 15
        %s183 = smul.addr %s182, 4
        %s184 = smul.addr %s180, 64
        %s185 = sadd.s32 %s183, %s184
        %s186 = smul.addr %s185, 4
        %s187 = scalar_lea.vmem %s0, %s186
        %s188 = smul.u32 16, %s18
      $region20: #{degcnn_forward.10} parent=15 // pred_fallthru
        _
      // Predicated region
      $region21: #{degcnn_forward.10} parent=15 // pred_check
        %p189 = pneg %p70
      $region22: #{degcnn_forward.10} parent=15 // pred_check_branch
        %191 = sbr.rel (%p189) target = $region24
      $region23: #{degcnn_forward.10} parent=15 // pred_region
        %p192 = scmp.lt.s32.totalorder %s17, 3
        %s193 = scalar_select %p192, %s17, 3
        %s194 = smul.addr %s193, 64
        %s195 = smul.addr %s194, 4
        %s196 = scalar_lea.vmem %s1, %s195
      $region24: #{degcnn_forward.10} parent=15 // pred_fallthru
        _
      // Predicated region
      $region25: #{degcnn_forward.10} parent=15 // pred_check
        %p197 = pneg %p96
      $region26: #{degcnn_forward.10} parent=15 // pred_check_branch
        %199 = sbr.rel (%p197) target = $region28
      $region27: #{degcnn_forward.10} parent=15 // pred_region
        %p200 = scmp.lt.s32.totalorder %s17, 3
        %s201 = scalar_select %p200, %s17, 3
        %s202 = scalar_lea.vmem %s2, %s201
      $region28: #{degcnn_forward.10} parent=15 // pred_fallthru
        _
      // Predicated region
      $region29: #{degcnn_forward.10} parent=15 // pred_check
        %p203 = pneg %p122
      $region30: #{degcnn_forward.10} parent=15 // pred_check_branch
        %205 = sbr.rel (%p203) target = $region32
      $region31: #{degcnn_forward.10} parent=15 // pred_region
        %p206 = scmp.lt.s32.totalorder %s17, 3
        %s207 = scalar_select %p206, %s17, 3
        %s208 = scalar_lea.vmem %s3, %s207
      $region32: #{degcnn_forward.10} parent=15 // pred_fallthru
        _
    $region16: #{degcnn_forward.10} parent=5 // pred_fallthru
      _
    %p209 = scmp.le.s32.totalorder 1, %s10
    %p210 = scmp.lt.s32.totalorder %s10, 5
    %p211 = pnand %p209, %p210
    %p212 = pneg %p211
    // Predicated region
    $region33: #{degcnn_forward.10} parent=5 // pred_check
      _
    $region34: #{degcnn_forward.10} parent=5 // pred_check_branch
      %214 = sbr.rel (%p211) target = $region36
    $region35: #{degcnn_forward.10} parent=5 // pred_region
      %s215 = ssub.s32 %s10, 1
      %s216 = smul.u32 16, %s20
      %p217 = scmp.lt.s32.totalorder %s19, 3
      %s218 = scalar_select %p217, %s19, 3
      %p219 = scmp.lt.s32.totalorder %s216, 15
      %s220 = scalar_select %p219, %s216, 15
      %s221 = smul.addr %s220, 4
      %s222 = smul.addr %s218, 64
      %s223 = sadd.s32 %s221, %s222
      %s224 = smul.addr %s223, 4
      %s225 = scalar_lea.vmem %s0, %s224
      %p226 = pneg %p50
      %p227 = pneg %p47
      %p228 = scmp.lt.s32.totalorder %s19, 3
      %s229 = scalar_select %p228, %s19, 3
      %s230 = smul.addr %s229, 64
      %s231 = smul.addr %s230, 4
      %s232 = scalar_lea.vmem %s1, %s231
      %p233 = pneg %p76
      %p234 = pneg %p73
      %p235 = scmp.lt.s32.totalorder %s19, 3
      %s236 = scalar_select %p235, %s19, 3
      %s237 = scalar_lea.vmem %s2, %s236
      %p238 = pneg %p102
      %p239 = pneg %p99
      %p240 = scmp.lt.s32.totalorder %s19, 3
      %s241 = scalar_select %p240, %s19, 3
      %s242 = scalar_lea.vmem %s3, %s241
      %p243 = pneg %p128
      %p244 = pneg %p125
      %p245 = pneg %p156
      %p246 = pneg %p153
      %s247 = smul.u32 16, %s20
      %p248 = scmp.lt.s32.totalorder %s19, 3
      %s249 = scalar_select %p248, %s19, 3
      %p250 = scmp.lt.s32.totalorder %s247, 15
      %s251 = scalar_select %p250, %s247, 15
      %s252 = smul.addr %s249, 16
      %s253 = sadd.s32 %s251, %s252
      %s254 = smul.addr %s253, 8
      %s255 = scalar_lea.vmem %s4, %s254
      %s256 = smul.u32 16, %s20
      %p257 = scmp.lt.s32.totalorder %s19, 3
      %s258 = scalar_select %p257, %s19, 3
      %p259 = scmp.lt.s32.totalorder %s256, 15
      %s260 = scalar_select %p259, %s256, 15
      %s261 = smul.addr %s260, 4
      %s262 = smul.addr %s258, 64
      %s263 = sadd.s32 %s261, %s262
      %s264 = smul.addr %s263, 4
      %s265 = scalar_lea.vmem %s0, %s264
      %s266 = smul.u32 16, %s20
      %p267 = scmp.lt.s32.totalorder %s19, 3
      %s268 = scalar_select %p267, %s19, 3
      %s269 = smul.addr %s268, 64
      %s270 = smul.addr %s269, 4
      %s271 = scalar_lea.vmem %s1, %s270
      %p272 = scmp.lt.s32.totalorder %s19, 3
      %s273 = scalar_select %p272, %s19, 3
      %s274 = scalar_lea.vmem %s2, %s273
      %p275 = scmp.lt.s32.totalorder %s19, 3
      %s276 = scalar_select %p275, %s19, 3
      %s277 = scalar_lea.vmem %s3, %s276
      %s278 = smul.u32 16, %s20
      %p279 = scmp.lt.s32.totalorder %s19, 3
      %s280 = scalar_select %p279, %s19, 3
      %p281 = scmp.lt.s32.totalorder %s278, 15
      %s282 = scalar_select %p281, %s278, 15
      %s283 = smul.addr %s280, 16
      %s284 = sadd.s32 %s282, %s283
      %s285 = smul.addr %s284, 8
      %s286 = scalar_lea.vmem %s4, %s285
      %s287 = smul.u32 16, %s20
      %v289 = vld [vmem:[%s265] sm:$0xff]
      %v290 = vld [vmem:[%s265 + $0x8] sm:$0xff]
      %v291 = vld [vmem:[%s265 + $0x10] sm:$0xff]
      %v292 = vld [vmem:[%s265 + $0x18] sm:$0xff]
      %v293 = vld [vmem:[%s265 + $0x20] sm:$0xff]
      %v294 = vld [vmem:[%s265 + $0x28] sm:$0xff]
      %v295 = vld [vmem:[%s265 + $0x30] sm:$0xff]
      %v296 = vld [vmem:[%s265 + $0x38] sm:$0xff]
      %v297 = vld [vmem:[%s265 + $0x40] sm:$0xff]
      %v298 = vld [vmem:[%s265 + $0x48] sm:$0xff]
      %v299 = vld [vmem:[%s265 + $0x50] sm:$0xff]
      %v300 = vld [vmem:[%s265 + $0x58] sm:$0xff]
      %v301 = vld [vmem:[%s265 + $0x60] sm:$0xff]
      %v302 = vld [vmem:[%s265 + $0x68] sm:$0xff]
      %v303 = vld [vmem:[%s265 + $0x70] sm:$0xff]
      %v304 = vld [vmem:[%s265 + $0x78] sm:$0xff]
      %v305 = vld [vmem:[%s265 + $0x80] sm:$0xff]
      %v306 = vld [vmem:[%s265 + $0x88] sm:$0xff]
      %v307 = vld [vmem:[%s265 + $0x90] sm:$0xff]
      %v308 = vld [vmem:[%s265 + $0x98] sm:$0xff]
      %v309 = vld [vmem:[%s265 + $0xa0] sm:$0xff]
      %v310 = vld [vmem:[%s265 + $0xa8] sm:$0xff]
      %v311 = vld [vmem:[%s265 + $0xb0] sm:$0xff]
      %v312 = vld [vmem:[%s265 + $0xb8] sm:$0xff]
      %v313 = vld [vmem:[%s265 + $0xc0] sm:$0xff]
      %v314 = vld [vmem:[%s265 + $0xc8] sm:$0xff]
      %v315 = vld [vmem:[%s265 + $0xd0] sm:$0xff]
      %v316 = vld [vmem:[%s265 + $0xd8] sm:$0xff]
      %v317 = vld [vmem:[%s265 + $0xe0] sm:$0xff]
      %v318 = vld [vmem:[%s265 + $0xe8] sm:$0xff]
      %v319 = vld [vmem:[%s265 + $0xf0] sm:$0xff]
      %v320 = vld [vmem:[%s265 + $0xf8] sm:$0xff]
      %v321 = vld [vmem:[%s271] sm:$0xf]
      %v322 = vld [vmem:[%s271 + $0x4] sm:$0xf]
      %v323 = vld [vmem:[%s271 + $0x8] sm:$0xf]
      %v324 = vld [vmem:[%s271 + $0xc] sm:$0xf]
      %v325 = vld [vmem:[%s271 + $0x10] sm:$0xf]
      %v326 = vld [vmem:[%s271 + $0x14] sm:$0xf]
      %v327 = vld [vmem:[%s271 + $0x18] sm:$0xf]
      %v328 = vld [vmem:[%s271 + $0x1c] sm:$0xf]
      %v329 = vld [vmem:[%s271 + $0x20] sm:$0xf]
      %v330 = vld [vmem:[%s271 + $0x24] sm:$0xf]
      %v331 = vld [vmem:[%s271 + $0x28] sm:$0xf]
      %v332 = vld [vmem:[%s271 + $0x2c] sm:$0xf]
      %v333 = vld [vmem:[%s271 + $0x30] sm:$0xf]
      %v334 = vld [vmem:[%s271 + $0x34] sm:$0xf]
      %v335 = vld [vmem:[%s271 + $0x38] sm:$0xf]
      %v336 = vld [vmem:[%s271 + $0x3c] sm:$0xf]
      %v337 = vld [vmem:[%s271 + $0x40] sm:$0xf]
      %v338 = vld [vmem:[%s271 + $0x44] sm:$0xf]
      %v339 = vld [vmem:[%s271 + $0x48] sm:$0xf]
      %v340 = vld [vmem:[%s271 + $0x4c] sm:$0xf]
      %v341 = vld [vmem:[%s271 + $0x50] sm:$0xf]
      %v342 = vld [vmem:[%s271 + $0x54] sm:$0xf]
      %v343 = vld [vmem:[%s271 + $0x58] sm:$0xf]
      %v344 = vld [vmem:[%s271 + $0x5c] sm:$0xf]
      %v345 = vld [vmem:[%s271 + $0x60] sm:$0xf]
      %v346 = vld [vmem:[%s271 + $0x64] sm:$0xf]
      %v347 = vld [vmem:[%s271 + $0x68] sm:$0xf]
      %v348 = vld [vmem:[%s271 + $0x6c] sm:$0xf]
      %v349 = vld [vmem:[%s271 + $0x70] sm:$0xf]
      %v350 = vld [vmem:[%s271 + $0x74] sm:$0xf]
      %v351 = vld [vmem:[%s271 + $0x78] sm:$0xf]
      %v352 = vld [vmem:[%s271 + $0x7c] sm:$0xf]
      %v353 = vld [vmem:[%s271 + $0x80] sm:$0xf]
      %v354 = vld [vmem:[%s271 + $0x84] sm:$0xf]
      %v355 = vld [vmem:[%s271 + $0x88] sm:$0xf]
      %v356 = vld [vmem:[%s271 + $0x8c] sm:$0xf]
      %v357 = vld [vmem:[%s271 + $0x90] sm:$0xf]
      %v358 = vld [vmem:[%s271 + $0x94] sm:$0xf]
      %v359 = vld [vmem:[%s271 + $0x98] sm:$0xf]
      %v360 = vld [vmem:[%s271 + $0x9c] sm:$0xf]
      %v361 = vld [vmem:[%s271 + $0xa0] sm:$0xf]
      %v362 = vld [vmem:[%s271 + $0xa4] sm:$0xf]
      %v363 = vld [vmem:[%s271 + $0xa8] sm:$0xf]
      %v364 = vld [vmem:[%s271 + $0xac] sm:$0xf]
      %v365 = vld [vmem:[%s271 + $0xb0] sm:$0xf]
      %v366 = vld [vmem:[%s271 + $0xb4] sm:$0xf]
      %v367 = vld [vmem:[%s271 + $0xb8] sm:$0xf]
      %v368 = vld [vmem:[%s271 + $0xbc] sm:$0xf]
      %v369 = vld [vmem:[%s271 + $0xc0] sm:$0xf]
      %v370 = vld [vmem:[%s271 + $0xc4] sm:$0xf]
      %v371 = vld [vmem:[%s271 + $0xc8] sm:$0xf]
      %v372 = vld [vmem:[%s271 + $0xcc] sm:$0xf]
      %v373 = vld [vmem:[%s271 + $0xd0] sm:$0xf]
      %v374 = vld [vmem:[%s271 + $0xd4] sm:$0xf]
      %v375 = vld [vmem:[%s271 + $0xd8] sm:$0xf]
      %v376 = vld [vmem:[%s271 + $0xdc] sm:$0xf]
      %v377 = vld [vmem:[%s271 + $0xe0] sm:$0xf]
      %v378 = vld [vmem:[%s271 + $0xe4] sm:$0xf]
      %v379 = vld [vmem:[%s271 + $0xe8] sm:$0xf]
      %v380 = vld [vmem:[%s271 + $0xec] sm:$0xf]
      %v381 = vld [vmem:[%s271 + $0xf0] sm:$0xf]
      %v382 = vld [vmem:[%s271 + $0xf4] sm:$0xf]
      %v383 = vld [vmem:[%s271 + $0xf8] sm:$0xf]
      %v384 = vld [vmem:[%s271 + $0xfc] sm:$0xf]
      %v385 = vld [vmem:[%s274] sm:$0x1]
      %v387 = vlaneseq
      %v388 = vshrl.u32 %v387, 7
      %v389 = vsub.s32 0, %v388
      %v390 = vrot.slane %v385, %v389
      %v424 = vunpack.c.l.b16 %v289
      %v425 = vunpack.c.h.b16 %v289
      %v426 = vunpack.c.l.b16 %v290
      %v427 = vunpack.c.h.b16 %v290
      %v428 = vunpack.c.l.b16 %v291
      %v429 = vunpack.c.h.b16 %v291
      %v430 = vunpack.c.l.b16 %v292
      %v431 = vunpack.c.h.b16 %v292
      %v432 = vunpack.c.l.b16 %v293
      %v433 = vunpack.c.h.b16 %v293
      %v434 = vunpack.c.l.b16 %v294
      %v435 = vunpack.c.h.b16 %v294
      %v436 = vunpack.c.l.b16 %v295
      %v437 = vunpack.c.h.b16 %v295
      %v438 = vunpack.c.l.b16 %v296
      %v439 = vunpack.c.h.b16 %v296
      %v440 = vunpack.c.l.b16 %v297
      %v441 = vunpack.c.h.b16 %v297
      %v442 = vunpack.c.l.b16 %v298
      %v443 = vunpack.c.h.b16 %v298
      %v444 = vunpack.c.l.b16 %v299
      %v445 = vunpack.c.h.b16 %v299
      %v446 = vunpack.c.l.b16 %v300
      %v447 = vunpack.c.h.b16 %v300
      %v448 = vunpack.c.l.b16 %v301
      %v449 = vunpack.c.h.b16 %v301
      %v450 = vunpack.c.l.b16 %v302
      %v451 = vunpack.c.h.b16 %v302
      %v452 = vunpack.c.l.b16 %v303
      %v453 = vunpack.c.h.b16 %v303
      %v454 = vunpack.c.l.b16 %v304
      %v455 = vunpack.c.h.b16 %v304
      %v456 = vunpack.c.l.b16 %v305
      %v457 = vunpack.c.h.b16 %v305
      %v458 = vunpack.c.l.b16 %v306
      %v459 = vunpack.c.h.b16 %v306
      %v460 = vunpack.c.l.b16 %v307
      %v461 = vunpack.c.h.b16 %v307
      %v462 = vunpack.c.l.b16 %v308
      %v463 = vunpack.c.h.b16 %v308
      %v464 = vunpack.c.l.b16 %v309
      %v465 = vunpack.c.h.b16 %v309
      %v466 = vunpack.c.l.b16 %v310
      %v467 = vunpack.c.h.b16 %v310
      %v468 = vunpack.c.l.b16 %v311
      %v469 = vunpack.c.h.b16 %v311
      %v470 = vunpack.c.l.b16 %v312
      %v471 = vunpack.c.h.b16 %v312
      %v472 = vunpack.c.l.b16 %v313
      %v473 = vunpack.c.h.b16 %v313
      %v474 = vunpack.c.l.b16 %v314
      %v475 = vunpack.c.h.b16 %v314
      %v476 = vunpack.c.l.b16 %v315
      %v477 = vunpack.c.h.b16 %v315
      %v478 = vunpack.c.l.b16 %v316
      %v479 = vunpack.c.h.b16 %v316
      %v480 = vunpack.c.l.b16 %v317
      %v481 = vunpack.c.h.b16 %v317
      %v482 = vunpack.c.l.b16 %v318
      %v483 = vunpack.c.h.b16 %v318
      %v484 = vunpack.c.l.b16 %v319
      %v485 = vunpack.c.h.b16 %v319
      %v486 = vunpack.c.l.b16 %v320
      %v487 = vunpack.c.h.b16 %v320
      %v488 = vpack.c.b16 %v428, %v424
      %v489 = vpack.c.b16 %v429, %v425
      %v490 = vpack.c.b16 %v430, %v426
      %v491 = vpack.c.b16 %v431, %v427
      %v492 = vpack.c.b16 %v436, %v432
      %v493 = vpack.c.b16 %v437, %v433
      %v494 = vpack.c.b16 %v438, %v434
      %v495 = vpack.c.b16 %v439, %v435
      %v496 = vpack.c.b16 %v444, %v440
      %v497 = vpack.c.b16 %v445, %v441
      %v498 = vpack.c.b16 %v446, %v442
      %v499 = vpack.c.b16 %v447, %v443
      %v500 = vpack.c.b16 %v452, %v448
      %v501 = vpack.c.b16 %v453, %v449
      %v502 = vpack.c.b16 %v454, %v450
      %v503 = vpack.c.b16 %v455, %v451
      %v504 = vpack.c.b16 %v460, %v456
      %v505 = vpack.c.b16 %v461, %v457
      %v506 = vpack.c.b16 %v462, %v458
      %v507 = vpack.c.b16 %v463, %v459
      %v508 = vpack.c.b16 %v468, %v464
      %v509 = vpack.c.b16 %v469, %v465
      %v510 = vpack.c.b16 %v470, %v466
      %v511 = vpack.c.b16 %v471, %v467
      %v512 = vpack.c.b16 %v476, %v472
      %v513 = vpack.c.b16 %v477, %v473
      %v514 = vpack.c.b16 %v478, %v474
      %v515 = vpack.c.b16 %v479, %v475
      %v516 = vpack.c.b16 %v484, %v480
      %v517 = vpack.c.b16 %v485, %v481
      %v518 = vpack.c.b16 %v486, %v482
      %v519 = vpack.c.b16 %v487, %v483
      %v616 = vunpack.c.l.b16 %v321
      %v617 = vunpack.c.l.b16 %v322
      %v618 = vunpack.c.l.b16 %v323
      %v619 = vunpack.c.l.b16 %v324
      %v620 = vunpack.c.l.b16 %v325
      %v621 = vunpack.c.l.b16 %v326
      %v622 = vunpack.c.l.b16 %v327
      %v623 = vunpack.c.l.b16 %v328
      %v624 = vunpack.c.l.b16 %v329
      %v625 = vunpack.c.l.b16 %v330
      %v626 = vunpack.c.l.b16 %v331
      %v627 = vunpack.c.l.b16 %v332
      %v628 = vunpack.c.l.b16 %v333
      %v629 = vunpack.c.l.b16 %v334
      %v630 = vunpack.c.l.b16 %v335
      %v631 = vunpack.c.l.b16 %v336
      %v632 = vunpack.c.l.b16 %v337
      %v633 = vunpack.c.l.b16 %v338
      %v634 = vunpack.c.l.b16 %v339
      %v635 = vunpack.c.l.b16 %v340
      %v636 = vunpack.c.l.b16 %v341
      %v637 = vunpack.c.l.b16 %v342
      %v638 = vunpack.c.l.b16 %v343
      %v639 = vunpack.c.l.b16 %v344
      %v640 = vunpack.c.l.b16 %v345
      %v641 = vunpack.c.l.b16 %v346
      %v642 = vunpack.c.l.b16 %v347
      %v643 = vunpack.c.l.b16 %v348
      %v644 = vunpack.c.l.b16 %v349
      %v645 = vunpack.c.l.b16 %v350
      %v646 = vunpack.c.l.b16 %v351
      %v647 = vunpack.c.l.b16 %v352
      %v648 = vunpack.c.l.b16 %v353
      %v649 = vunpack.c.l.b16 %v354
      %v650 = vunpack.c.l.b16 %v355
      %v651 = vunpack.c.l.b16 %v356
      %v652 = vunpack.c.l.b16 %v357
      %v653 = vunpack.c.l.b16 %v358
      %v654 = vunpack.c.l.b16 %v359
      %v655 = vunpack.c.l.b16 %v360
      %v656 = vunpack.c.l.b16 %v361
      %v657 = vunpack.c.l.b16 %v362
      %v658 = vunpack.c.l.b16 %v363
      %v659 = vunpack.c.l.b16 %v364
      %v660 = vunpack.c.l.b16 %v365
      %v661 = vunpack.c.l.b16 %v366
      %v662 = vunpack.c.l.b16 %v367
      %v663 = vunpack.c.l.b16 %v368
      %v664 = vunpack.c.l.b16 %v369
      %v665 = vunpack.c.l.b16 %v370
      %v666 = vunpack.c.l.b16 %v371
      %v667 = vunpack.c.l.b16 %v372
      %v668 = vunpack.c.l.b16 %v373
      %v669 = vunpack.c.l.b16 %v374
      %v670 = vunpack.c.l.b16 %v375
      %v671 = vunpack.c.l.b16 %v376
      %v672 = vunpack.c.l.b16 %v377
      %v673 = vunpack.c.l.b16 %v378
      %v674 = vunpack.c.l.b16 %v379
      %v675 = vunpack.c.l.b16 %v380
      %v676 = vunpack.c.l.b16 %v381
      %v677 = vunpack.c.l.b16 %v382
      %v678 = vunpack.c.l.b16 %v383
      %v679 = vunpack.c.l.b16 %v384
      %v680 = vpack.c.b16 %v617, %v616
      %v681 = vpack.c.b16 %v619, %v618
      %v682 = vpack.c.b16 %v621, %v620
      %v683 = vpack.c.b16 %v623, %v622
      %v684 = vpack.c.b16 %v625, %v624
      %v685 = vpack.c.b16 %v627, %v626
      %v686 = vpack.c.b16 %v629, %v628
      %v687 = vpack.c.b16 %v631, %v630
      %v688 = vpack.c.b16 %v633, %v632
      %v689 = vpack.c.b16 %v635, %v634
      %v690 = vpack.c.b16 %v637, %v636
      %v691 = vpack.c.b16 %v639, %v638
      %v692 = vpack.c.b16 %v641, %v640
      %v693 = vpack.c.b16 %v643, %v642
      %v694 = vpack.c.b16 %v645, %v644
      %v695 = vpack.c.b16 %v647, %v646
      %v696 = vpack.c.b16 %v649, %v648
      %v697 = vpack.c.b16 %v651, %v650
      %v698 = vpack.c.b16 %v653, %v652
      %v699 = vpack.c.b16 %v655, %v654
      %v700 = vpack.c.b16 %v657, %v656
      %v701 = vpack.c.b16 %v659, %v658
      %v702 = vpack.c.b16 %v661, %v660
      %v703 = vpack.c.b16 %v663, %v662
      %v704 = vpack.c.b16 %v665, %v664
      %v705 = vpack.c.b16 %v667, %v666
      %v706 = vpack.c.b16 %v669, %v668
      %v707 = vpack.c.b16 %v671, %v670
      %v708 = vpack.c.b16 %v673, %v672
      %v709 = vpack.c.b16 %v675, %v674
      %v710 = vpack.c.b16 %v677, %v676
      %v711 = vpack.c.b16 %v679, %v678
      %744 = vmatprep.subr.bf16.mxu0 0
      %745 = vmatpush1.bf16.msra.mxu0 %v680
      %746 = vmatprep.subr.bf16.mxu0 0
      %747 = vmatpush1.bf16.msra.mxu0 %v681
      %748 = vmatprep.subr.bf16.mxu0 0
      %749 = vmatpush1.bf16.msra.mxu0 %v682
      %750 = vmatprep.subr.bf16.mxu0 0
      %751 = vmatpush1.bf16.msra.mxu0 %v683
      %752 = vmatprep.subr.bf16.mxu0 0
      %753 = vmatpush1.bf16.msra.mxu0 %v684
      %754 = vmatprep.subr.bf16.mxu0 0
      %755 = vmatpush1.bf16.msra.mxu0 %v685
      %756 = vmatprep.subr.bf16.mxu0 0
      %757 = vmatpush1.bf16.msra.mxu0 %v686
      %758 = vmatprep.subr.bf16.mxu0 0
      %759 = vmatpush1.bf16.msra.mxu0 %v687
      %760 = vmatprep.subr.bf16.mxu0 0
      %761 = vmatpush1.bf16.msra.mxu0 %v688
      %762 = vmatprep.subr.bf16.mxu0 0
      %763 = vmatpush1.bf16.msra.mxu0 %v689
      %764 = vmatprep.subr.bf16.mxu0 0
      %765 = vmatpush1.bf16.msra.mxu0 %v690
      %766 = vmatprep.subr.bf16.mxu0 0
      %767 = vmatpush1.bf16.msra.mxu0 %v691
      %768 = vmatprep.subr.bf16.mxu0 0
      %769 = vmatpush1.bf16.msra.mxu0 %v692
      %770 = vmatprep.subr.bf16.mxu0 0
      %771 = vmatpush1.bf16.msra.mxu0 %v693
      %772 = vmatprep.subr.bf16.mxu0 0
      %773 = vmatpush1.bf16.msra.mxu0 %v694
      %774 = vmatprep.subr.bf16.mxu0 0
      %775 = vmatpush1.bf16.msra.mxu0 %v695
      %776 = vmatprep.mubr.bf16.mxu0 %v489
      %777 = vmatmul.mubr.bf16.gmra.mrb[0].mxu0 %v488
      %v778 = vpop.f32.mrb[0].mxu0
      %v779 = vadd.f32 %v390, %v778
      %v780 = vpop.f32.mrb[0].mxu0
      %v781 = vpop.f32.mrb[0].mxu0
      %v782 = vadd.f32 %v390, %v781
      %v783 = vpop.f32.mrb[0].mxu0
      %784 = vmatprep.mubr.bf16.mxu0 %v493
      %785 = vmatmul.mubr.bf16.gmra.mrb[0].mxu0 %v492
      %v786 = vpop.f32.mrb[0].mxu0
      %v787 = vadd.f32 %v390, %v786
      %v788 = vpop.f32.mrb[0].mxu0
      %v789 = vpop.f32.mrb[0].mxu0
      %v790 = vadd.f32 %v390, %v789
      %v791 = vpop.f32.mrb[0].mxu0
      %792 = vmatprep.mubr.bf16.mxu0 %v497
      %793 = vmatmul.mubr.bf16.gmra.mrb[0].mxu0 %v496
      %v794 = vpop.f32.mrb[0].mxu0
      %v795 = vadd.f32 %v390, %v794
      %v796 = vpop.f32.mrb[0].mxu0
      %v797 = vpop.f32.mrb[0].mxu0
      %v798 = vadd.f32 %v390, %v797
      %v799 = vpop.f32.mrb[0].mxu0
      %800 = vmatprep.mubr.bf16.mxu0 %v501
      %801 = vmatmul.mubr.bf16.gmra.mrb[0].mxu0 %v500
      %v802 = vpop.f32.mrb[0].mxu0
      %v803 = vadd.f32 %v390, %v802
      %v804 = vpop.f32.mrb[0].mxu0
      %v805 = vpop.f32.mrb[0].mxu0
      %v806 = vadd.f32 %v390, %v805
      %v807 = vpop.f32.mrb[0].mxu0
      %808 = vmatprep.mubr.bf16.mxu0 %v505
      %809 = vmatmul.mubr.bf16.gmra.mrb[0].mxu0 %v504
      %v810 = vpop.f32.mrb[0].mxu0
      %v811 = vadd.f32 %v390, %v810
      %v812 = vpop.f32.mrb[0].mxu0
      %v813 = vpop.f32.mrb[0].mxu0
      %v814 = vadd.f32 %v390, %v813
      %v815 = vpop.f32.mrb[0].mxu0
      %816 = vmatprep.mubr.bf16.mxu0 %v509
      %817 = vmatmul.mubr.bf16.gmra.mrb[0].mxu0 %v508
      %v818 = vpop.f32.mrb[0].mxu0
      %v819 = vadd.f32 %v390, %v818
      %v820 = vpop.f32.mrb[0].mxu0
      %v821 = vpop.f32.mrb[0].mxu0
      %v822 = vadd.f32 %v390, %v821
      %v823 = vpop.f32.mrb[0].mxu0
      %824 = vmatprep.mubr.bf16.mxu0 %v513
      %825 = vmatmul.mubr.bf16.gmra.mrb[0].mxu0 %v512
      %v826 = vpop.f32.mrb[0].mxu0
      %v827 = vadd.f32 %v390, %v826
      %v828 = vpop.f32.mrb[0].mxu0
      %v829 = vpop.f32.mrb[0].mxu0
      %v830 = vadd.f32 %v390, %v829
      %v831 = vpop.f32.mrb[0].mxu0
      %832 = vmatprep.mubr.bf16.mxu0 %v517
      %833 = vmatmul.mubr.bf16.gmra.mrb[0].mxu0 %v516
      %v834 = vpop.f32.mrb[0].mxu0
      %v835 = vadd.f32 %v390, %v834
      %v836 = vpop.f32.mrb[0].mxu0
      %v837 = vpop.f32.mrb[0].mxu0
      %v838 = vadd.f32 %v390, %v837
      %v839 = vpop.f32.mrb[0].mxu0
      %840 = vdwg.mxu0
      %841 = vmatprep.subr.bf16.mxu0 0
      %842 = vmatpush1.bf16.msra.mxu0 %v696
      %843 = vmatprep.subr.bf16.mxu0 0
      %844 = vmatpush1.bf16.msra.mxu0 %v697
      %845 = vmatprep.subr.bf16.mxu0 0
      %846 = vmatpush1.bf16.msra.mxu0 %v698
      %847 = vmatprep.subr.bf16.mxu0 0
      %848 = vmatpush1.bf16.msra.mxu0 %v699
      %849 = vmatprep.subr.bf16.mxu0 0
      %850 = vmatpush1.bf16.msra.mxu0 %v700
      %851 = vmatprep.subr.bf16.mxu0 0
      %852 = vmatpush1.bf16.msra.mxu0 %v701
      %853 = vmatprep.subr.bf16.mxu0 0
      %854 = vmatpush1.bf16.msra.mxu0 %v702
      %855 = vmatprep.subr.bf16.mxu0 0
      %856 = vmatpush1.bf16.msra.mxu0 %v703
      %857 = vmatprep.subr.bf16.mxu0 0
      %858 = vmatpush1.bf16.msra.mxu0 %v704
      %859 = vmatprep.subr.bf16.mxu0 0
      %860 = vmatpush1.bf16.msra.mxu0 %v705
      %861 = vmatprep.subr.bf16.mxu0 0
      %862 = vmatpush1.bf16.msra.mxu0 %v706
      %863 = vmatprep.subr.bf16.mxu0 0
      %864 = vmatpush1.bf16.msra.mxu0 %v707
      %865 = vmatprep.subr.bf16.mxu0 0
      %866 = vmatpush1.bf16.msra.mxu0 %v708
      %867 = vmatprep.subr.bf16.mxu0 0
      %868 = vmatpush1.bf16.msra.mxu0 %v709
      %869 = vmatprep.subr.bf16.mxu0 0
      %870 = vmatpush1.bf16.msra.mxu0 %v710
      %871 = vmatprep.subr.bf16.mxu0 0
      %872 = vmatpush1.bf16.msra.mxu0 %v711
      %873 = vmatprep.mubr.bf16.mxu0 %v491
      %874 = vmatmul.mubr.bf16.gmra.mrb[0].mxu0 %v490
      %v875 = vpop.f32.mrb[0].mxu0
      %v876 = vadd.f32 %v779, %v875
      %v877 = vpop.f32.mrb[0].mxu0
      %v878 = vpop.f32.mrb[0].mxu0
      %v879 = vadd.f32 %v782, %v878
      %v880 = vpop.f32.mrb[0].mxu0
      %881 = vmatprep.mubr.bf16.mxu0 %v495
      %882 = vmatmul.mubr.bf16.gmra.mrb[0].mxu0 %v494
      %v883 = vpop.f32.mrb[0].mxu0
      %v884 = vadd.f32 %v787, %v883
      %v885 = vpop.f32.mrb[0].mxu0
      %v886 = vpop.f32.mrb[0].mxu0
      %v887 = vadd.f32 %v790, %v886
      %v888 = vpop.f32.mrb[0].mxu0
      %889 = vmatprep.mubr.bf16.mxu0 %v499
      %890 = vmatmul.mubr.bf16.gmra.mrb[0].mxu0 %v498
      %v891 = vpop.f32.mrb[0].mxu0
      %v892 = vadd.f32 %v795, %v891
      %v893 = vpop.f32.mrb[0].mxu0
      %v894 = vpop.f32.mrb[0].mxu0
      %v895 = vadd.f32 %v798, %v894
      %v896 = vpop.f32.mrb[0].mxu0
      %897 = vmatprep.mubr.bf16.mxu0 %v503
      %898 = vmatmul.mubr.bf16.gmra.mrb[0].mxu0 %v502
      %v899 = vpop.f32.mrb[0].mxu0
      %v900 = vadd.f32 %v803, %v899
      %v901 = vpop.f32.mrb[0].mxu0
      %v902 = vpop.f32.mrb[0].mxu0
      %v903 = vadd.f32 %v806, %v902
      %v904 = vpop.f32.mrb[0].mxu0
      %905 = vmatprep.mubr.bf16.mxu0 %v507
      %906 = vmatmul.mubr.bf16.gmra.mrb[0].mxu0 %v506
      %v907 = vpop.f32.mrb[0].mxu0
      %v908 = vadd.f32 %v811, %v907
      %v909 = vpop.f32.mrb[0].mxu0
      %v910 = vpop.f32.mrb[0].mxu0
      %v911 = vadd.f32 %v814, %v910
      %v912 = vpop.f32.mrb[0].mxu0
      %913 = vmatprep.mubr.bf16.mxu0 %v511
      %914 = vmatmul.mubr.bf16.gmra.mrb[0].mxu0 %v510
      %v915 = vpop.f32.mrb[0].mxu0
      %v916 = vadd.f32 %v819, %v915
      %v917 = vpop.f32.mrb[0].mxu0
      %v918 = vpop.f32.mrb[0].mxu0
      %v919 = vadd.f32 %v822, %v918
      %v920 = vpop.f32.mrb[0].mxu0
      %921 = vmatprep.mubr.bf16.mxu0 %v515
      %922 = vmatmul.mubr.bf16.gmra.mrb[0].mxu0 %v514
      %v923 = vpop.f32.mrb[0].mxu0
      %v924 = vadd.f32 %v827, %v923
      %v925 = vpop.f32.mrb[0].mxu0
      %v926 = vpop.f32.mrb[0].mxu0
      %v927 = vadd.f32 %v830, %v926
      %v928 = vpop.f32.mrb[0].mxu0
      %929 = vmatprep.mubr.bf16.mxu0 %v519
      %930 = vmatmul.mubr.bf16.gmra.mrb[0].mxu0 %v518
      %v931 = vpop.f32.mrb[0].mxu0
      %v932 = vadd.f32 %v835, %v931
      %v933 = vpop.f32.mrb[0].mxu0
      %v934 = vpop.f32.mrb[0].mxu0
      %v935 = vadd.f32 %v838, %v934
      %v936 = vpop.f32.mrb[0].mxu0
      %937 = vdwg.mxu0
      %vm938 = vcmp.ge.f32.partialorder %v876, 0.0
      %vm939 = vcmp.ge.f32.partialorder %v879, 0.0
      %vm940 = vcmp.ge.f32.partialorder %v884, 0.0
      %vm941 = vcmp.ge.f32.partialorder %v887, 0.0
      %vm942 = vcmp.ge.f32.partialorder %v892, 0.0
      %vm943 = vcmp.ge.f32.partialorder %v895, 0.0
      %vm944 = vcmp.ge.f32.partialorder %v900, 0.0
      %vm945 = vcmp.ge.f32.partialorder %v903, 0.0
      %vm946 = vcmp.ge.f32.partialorder %v908, 0.0
      %vm947 = vcmp.ge.f32.partialorder %v911, 0.0
      %vm948 = vcmp.ge.f32.partialorder %v916, 0.0
      %vm949 = vcmp.ge.f32.partialorder %v919, 0.0
      %vm950 = vcmp.ge.f32.partialorder %v924, 0.0
      %vm951 = vcmp.ge.f32.partialorder %v927, 0.0
      %vm952 = vcmp.ge.f32.partialorder %v932, 0.0
      %vm953 = vcmp.ge.f32.partialorder %v935, 0.0
      %v954 = vld [vmem:[%s277] sm:$0x1]
      %v956 = vlaneseq
      %v957 = vshrl.u32 %v956, 7
      %v958 = vsub.s32 0, %v957
      %v959 = vrot.slane %v954, %v958
      %v961 = vmul.f32 %v959, %v876
      %v962 = vmul.f32 %v959, %v879
      %v963 = vmul.f32 %v959, %v884
      %v964 = vmul.f32 %v959, %v887
      %v965 = vmul.f32 %v959, %v892
      %v966 = vmul.f32 %v959, %v895
      %v967 = vmul.f32 %v959, %v900
      %v968 = vmul.f32 %v959, %v903
      %v969 = vmul.f32 %v959, %v908
      %v970 = vmul.f32 %v959, %v911
      %v971 = vmul.f32 %v959, %v916
      %v972 = vmul.f32 %v959, %v919
      %v973 = vmul.f32 %v959, %v924
      %v974 = vmul.f32 %v959, %v927
      %v975 = vmul.f32 %v959, %v932
      %v976 = vmul.f32 %v959, %v935
      %v977 = vsel %vm938, %v876, %v961
      %v978 = vsel %vm939, %v879, %v962
      %v979 = vsel %vm940, %v884, %v963
      %v980 = vsel %vm941, %v887, %v964
      %v981 = vsel %vm942, %v892, %v965
      %v982 = vsel %vm943, %v895, %v966
      %v983 = vsel %vm944, %v900, %v967
      %v984 = vsel %vm945, %v903, %v968
      %v985 = vsel %vm946, %v908, %v969
      %v986 = vsel %vm947, %v911, %v970
      %v987 = vsel %vm948, %v916, %v971
      %v988 = vsel %vm949, %v919, %v972
      %v989 = vsel %vm950, %v924, %v973
      %v990 = vsel %vm951, %v927, %v974
      %v991 = vsel %vm952, %v932, %v975
      %v992 = vsel %vm953, %v935, %v976
      %993 = vst [vmem:[%s286] sm:$0xff] %v977
      %994 = vst [vmem:[%s286 + $0x8] sm:$0xff] %v978
      %995 = vst [vmem:[%s286 + $0x10] sm:$0xff] %v979
      %996 = vst [vmem:[%s286 + $0x18] sm:$0xff] %v980
      %997 = vst [vmem:[%s286 + $0x20] sm:$0xff] %v981
      %998 = vst [vmem:[%s286 + $0x28] sm:$0xff] %v982
      %999 = vst [vmem:[%s286 + $0x30] sm:$0xff] %v983
      %1000 = vst [vmem:[%s286 + $0x38] sm:$0xff] %v984
      %1001 = vst [vmem:[%s286 + $0x40] sm:$0xff] %v985
      %1002 = vst [vmem:[%s286 + $0x48] sm:$0xff] %v986
      %1003 = vst [vmem:[%s286 + $0x50] sm:$0xff] %v987
      %1004 = vst [vmem:[%s286 + $0x58] sm:$0xff] %v988
      %1005 = vst [vmem:[%s286 + $0x60] sm:$0xff] %v989
      %1006 = vst [vmem:[%s286 + $0x68] sm:$0xff] %v990
      %1007 = vst [vmem:[%s286 + $0x70] sm:$0xff] %v991
      %1008 = vst [vmem:[%s286 + $0x78] sm:$0xff] %v992
      %s1009 = smul.u32 16, %s20
      %p1010 = scmp.lt.s32.totalorder %s19, 3
      %s1011 = scalar_select %p1010, %s19, 3
      %p1012 = scmp.lt.s32.totalorder %s1009, 15
      %s1013 = scalar_select %p1012, %s1009, 15
      %s1014 = smul.addr %s1011, 16
      %s1015 = sadd.s32 %s1013, %s1014
      %s1016 = smul.addr %s1015, 8
      %s1017 = scalar_lea.vmem %s4, %s1016
      // Predicated region
      $region37: #{degcnn_forward.10} parent=35 // pred_check
        %p1018 = pneg %p153
      $region38: #{degcnn_forward.10} parent=35 // pred_check_branch
        %1020 = sbr.rel (%p1018) target = $region40
      $region39: #{degcnn_forward.10} parent=35 // pred_region
        %s1021 = smul.u32 16, %s20
      $region40: #{degcnn_forward.10} parent=35 // pred_fallthru
        _
    $region36: #{degcnn_forward.10} parent=5 // pred_fallthru
      _
    %p1022 = scmp.le.s32.totalorder 2, %s10
    // Predicated region
    $region41: #{degcnn_forward.10} parent=5 // pred_check
      %p1023 = pneg %p1022
    $region42: #{degcnn_forward.10} parent=5 // pred_check_branch
      %1025 = sbr.rel (%p1023) target = $region44
    $region43: #{degcnn_forward.10} parent=5 // pred_region
      %s1026 = ssub.s32 %s10, 2
      // Predicated region
      $region45: #{degcnn_forward.10} parent=43 // pred_check
        %p1027 = pneg %p159
      $region46: #{degcnn_forward.10} parent=43 // pred_check_branch
        %1029 = sbr.rel (%p1027) target = $region48
      $region47: #{degcnn_forward.10} parent=43 // pred_region
        %s1030 = smul.u32 16, %s22
        %p1031 = scmp.lt.s32.totalorder %s21, 3
        %s1032 = scalar_select %p1031, %s21, 3
        %p1033 = scmp.lt.s32.totalorder %s1030, 15
        %s1034 = scalar_select %p1033, %s1030, 15
        %s1035 = smul.addr %s1032, 16
        %s1036 = sadd.s32 %s1034, %s1035
        %s1037 = smul.addr %s1036, 8
        %s1038 = scalar_lea.vmem %s4, %s1037
      $region48: #{degcnn_forward.10} parent=43 // pred_fallthru
        _
    $region44: #{degcnn_forward.10} parent=5 // pred_fallthru
      _
  $region6: #{degcnn_forward.10} parent=0 // loop_footer
    %s14 = sadd.s32 1, %s10
  $region7: #{degcnn_forward.10} parent=0 // loop_footer_branch
    %9 = sbr.rel target = $region3
  $region8: #{degcnn_forward.10} parent=0 // loop_exit
    _

// kernel: degcnn_forward.11
$region0: #{degcnn_forward.11}
  #allocation0 [shape = 'u32[]', space=smem, size = 0x4, offset = 0x4, fixed_abs, tag = 'smem constant byte address 0x4 - core index']
  #allocation1 [shape = 'u32[144,128]{1,0:T(1,128)}', space=vmem, size = 0x12000, scoped, tag = 'internal scratch']
  %s0 = inlined_call_operand.vmem [shape: bf16[1,512,288], index: 0, kind: input, shape index: {}]
  %s1 = inlined_call_operand.vmem [shape: bf16[1,288,128], index: 1, kind: input, shape index: {}]
  %s2 = inlined_call_operand.vmem [shape: f32[1,1,128], index: 2, kind: input, shape index: {}]
  %s3 = inlined_call_operand.vmem [shape: f32[1,1,128], index: 3, kind: input, shape index: {}]
  %s4 = inlined_call_operand.vmem [shape: f32[1,512,128], index: 4, kind: output, shape index: {}]
  %s5 = sld [smem:[#allocation0]]
  $region49: #{degcnn_forward.11} parent=0
    _
  %s7 = ssub.s32 1, %s5
  %s8 = scalar_select 0, %s7, %s5
  loop: start=0, step=1, limit=4
  $region2: #{degcnn_forward.11} parent=0 // loop_pre_header
    _
  $region3: #{degcnn_forward.11} parent=0 // loop_header
    %s10 = sphi 0, %s14
    %p11 = scmp.ge.s32.totalorder %s10, 4
    %s17 = sphi 0, %s29
    %s18 = sphi 0, %s25
    %s19 = sphi 0, %s17
    %s20 = sphi 0, %s18
    %s21 = sphi 0, %s19
    %s22 = sphi 0, %s20
    %s34 = sphi 0, %s36
    %s37 = sphi 0, %s34
    %s38 = sphi 0, %s37
    %s54 = sphi 0, %s38
    %s60 = sphi 0, %s62
    %s63 = sphi 0, %s60
    %s64 = sphi 0, %s63
    %s80 = sphi 0, %s64
    %s86 = sphi 0, %s88
    %s89 = sphi 0, %s86
    %s90 = sphi 0, %s89
    %s106 = sphi 0, %s90
    %s112 = sphi 0, %s114
    %s115 = sphi 0, %s112
    %s116 = sphi 0, %s115
    %s132 = sphi 0, %s116
    %s140 = sphi 0, %s142
    %s143 = sphi 0, %s140
    %s144 = sphi 0, %s143
    %s160 = sphi 0, %s144
  $region4: #{degcnn_forward.11} parent=0 // loop_header_branch
    %13 = sbr.rel (%p11) target = $region8
  $region5: #{degcnn_forward.11} parent=0 // loop_body
    %s15 = ssub.s32 %s10, 1
    %s16 = ssub.s32 %s10, 2
    %s23 = sadd.s32 1, %s18
    %p24 = scmp.ge.s32.totalorder %s23, 2
    %s25 = scalar_select %p24, 0, %s23
    %s26 = sadd.s32 1, %s17
    %s27 = scalar_select %p24, %s26, %s17
    %p28 = scmp.ge.s32.totalorder %s27, 1
    %s29 = scalar_select %p28, 0, %s27
    %s30 = ssub.s32 %s17, %s29
    %s31 = ssub.s32 %s18, %s25
    %s32 = sor.u32 %s30, %s31
    %p33 = scmp.eq.s32.totalorder %s32, 0
    %s35 = sadd.s32 %s34, 1
    %s36 = scalar_select %p33, %s34, %s35
    %p39 = pneg %p33
    %p40 = scmp.eq.s32.totalorder %s10, 1
    %p41 = por %p39, %p40
    %p42 = scmp.ne.s32.totalorder %s34, %s37
    %p43 = scmp.eq.s32.totalorder %s10, 0
    %p44 = por %p42, %p43
    %p45 = scmp.ne.s32.totalorder %s34, %s37
    %p46 = scmp.eq.s32.totalorder %s15, 1
    %p47 = por %p45, %p46
    %p48 = scmp.ne.s32.totalorder %s37, %s38
    %p49 = scmp.eq.s32.totalorder %s15, 0
    %p50 = por %p48, %p49
    %p51 = scmp.ne.s32.totalorder %s37, %s38
    %p52 = scmp.eq.s32.totalorder %s16, 1
    %p53 = por %p51, %p52
    %p55 = scmp.ne.s32.totalorder %s38, %s54
    %p56 = scmp.eq.s32.totalorder %s16, 0
    %p57 = por %p55, %p56
    %s58 = ssub.s32 %s17, %s29
    %p59 = scmp.eq.s32.totalorder %s58, 0
    %s61 = sadd.s32 %s60, 1
    %s62 = scalar_select %p59, %s60, %s61
    %p65 = pneg %p59
    %p66 = scmp.eq.s32.totalorder %s10, 1
    %p67 = por %p65, %p66
    %p68 = scmp.ne.s32.totalorder %s60, %s63
    %p69 = scmp.eq.s32.totalorder %s10, 0
    %p70 = por %p68, %p69
    %p71 = scmp.ne.s32.totalorder %s60, %s63
    %p72 = scmp.eq.s32.totalorder %s15, 1
    %p73 = por %p71, %p72
    %p74 = scmp.ne.s32.totalorder %s63, %s64
    %p75 = scmp.eq.s32.totalorder %s15, 0
    %p76 = por %p74, %p75
    %p77 = scmp.ne.s32.totalorder %s63, %s64
    %p78 = scmp.eq.s32.totalorder %s16, 1
    %p79 = por %p77, %p78
    %p81 = scmp.ne.s32.totalorder %s64, %s80
    %p82 = scmp.eq.s32.totalorder %s16, 0
    %p83 = por %p81, %p82
    %s84 = ssub.s32 %s17, %s29
    %p85 = scmp.eq.s32.totalorder %s84, 0
    %s87 = sadd.s32 %s86, 1
    %s88 = scalar_select %p85, %s86, %s87
    %p91 = pneg %p85
    %p92 = scmp.eq.s32.totalorder %s10, 1
    %p93 = por %p91, %p92
    %p94 = scmp.ne.s32.totalorder %s86, %s89
    %p95 = scmp.eq.s32.totalorder %s10, 0
    %p96 = por %p94, %p95
    %p97 = scmp.ne.s32.totalorder %s86, %s89
    %p98 = scmp.eq.s32.totalorder %s15, 1
    %p99 = por %p97, %p98
    %p100 = scmp.ne.s32.totalorder %s89, %s90
    %p101 = scmp.eq.s32.totalorder %s15, 0
    %p102 = por %p100, %p101
    %p103 = scmp.ne.s32.totalorder %s89, %s90
    %p104 = scmp.eq.s32.totalorder %s16, 1
    %p105 = por %p103, %p104
    %p107 = scmp.ne.s32.totalorder %s90, %s106
    %p108 = scmp.eq.s32.totalorder %s16, 0
    %p109 = por %p107, %p108
    %s110 = ssub.s32 %s17, %s29
    %p111 = scmp.eq.s32.totalorder %s110, 0
    %s113 = sadd.s32 %s112, 1
    %s114 = scalar_select %p111, %s112, %s113
    %p117 = pneg %p111
    %p118 = scmp.eq.s32.totalorder %s10, 1
    %p119 = por %p117, %p118
    %p120 = scmp.ne.s32.totalorder %s112, %s115
    %p121 = scmp.eq.s32.totalorder %s10, 0
    %p122 = por %p120, %p121
    %p123 = scmp.ne.s32.totalorder %s112, %s115
    %p124 = scmp.eq.s32.totalorder %s15, 1
    %p125 = por %p123, %p124
    %p126 = scmp.ne.s32.totalorder %s115, %s116
    %p127 = scmp.eq.s32.totalorder %s15, 0
    %p128 = por %p126, %p127
    %p129 = scmp.ne.s32.totalorder %s115, %s116
    %p130 = scmp.eq.s32.totalorder %s16, 1
    %p131 = por %p129, %p130
    %p133 = scmp.ne.s32.totalorder %s116, %s132
    %p134 = scmp.eq.s32.totalorder %s16, 0
    %p135 = por %p133, %p134
    %s136 = ssub.s32 %s17, %s29
    %s137 = ssub.s32 %s18, %s25
    %s138 = sor.u32 %s136, %s137
    %p139 = scmp.eq.s32.totalorder %s138, 0
    %s141 = sadd.s32 %s140, 1
    %s142 = scalar_select %p139, %s140, %s141
    %p145 = pneg %p139
    %p146 = scmp.eq.s32.totalorder %s10, 1
    %p147 = por %p145, %p146
    %p148 = scmp.ne.s32.totalorder %s140, %s143
    %p149 = scmp.eq.s32.totalorder %s10, 0
    %p150 = por %p148, %p149
    %p151 = scmp.ne.s32.totalorder %s140, %s143
    %p152 = scmp.eq.s32.totalorder %s15, 1
    %p153 = por %p151, %p152
    %p154 = scmp.ne.s32.totalorder %s143, %s144
    %p155 = scmp.eq.s32.totalorder %s15, 0
    %p156 = por %p154, %p155
    %p157 = scmp.ne.s32.totalorder %s143, %s144
    %p158 = scmp.eq.s32.totalorder %s16, 1
    %p159 = por %p157, %p158
    %p161 = scmp.ne.s32.totalorder %s144, %s160
    %p162 = scmp.eq.s32.totalorder %s16, 0
    %p163 = por %p161, %p162
    %p164 = scmp.le.s32.totalorder 1, %s10
    %p165 = scmp.lt.s32.totalorder %s10, 3
    %p166 = pnand %p164, %p165
    %p167 = pneg %p166
    // Predicated region
    $region9: #{degcnn_forward.11} parent=5 // pred_check
      _
    $region10: #{degcnn_forward.11} parent=5 // pred_check_branch
      %169 = sbr.rel (%p166) target = $region12
    $region11: #{degcnn_forward.11} parent=5 // pred_region
      %s170 = ssub.s32 %s10, 1
      // Predicated region
      $region13: #{degcnn_forward.11} parent=11 // pred_check
        %p171 = pneg %p76
      $region14: #{degcnn_forward.11} parent=11 // pred_check_branch
        %173 = sbr.rel (%p171) target = $region16
      $region15: #{degcnn_forward.11} parent=11 // pred_region
        %p174 = scmp.lt.s32.totalorder %s19, 0
        %s175 = scalar_select %p174, %s19, 0
        %s176 = smul.addr %s175, 36
        %s177 = smul.addr %s176, 4
        %s178 = scalar_lea.vmem %s1, %s177
      $region16: #{degcnn_forward.11} parent=11 // pred_fallthru
        _
      // Predicated region
      $region17: #{degcnn_forward.11} parent=11 // pred_check
        %p179 = pneg %p102
      $region18: #{degcnn_forward.11} parent=11 // pred_check_branch
        %181 = sbr.rel (%p179) target = $region20
      $region19: #{degcnn_forward.11} parent=11 // pred_region
        %p182 = scmp.lt.s32.totalorder %s19, 0
        %s183 = scalar_select %p182, %s19, 0
        %s184 = scalar_lea.vmem %s2, %s183
      $region20: #{degcnn_forward.11} parent=11 // pred_fallthru
        _
      // Predicated region
      $region21: #{degcnn_forward.11} parent=11 // pred_check
        %p185 = pneg %p128
      $region22: #{degcnn_forward.11} parent=11 // pred_check_branch
        %187 = sbr.rel (%p185) target = $region24
      $region23: #{degcnn_forward.11} parent=11 // pred_region
        %p188 = scmp.lt.s32.totalorder %s19, 0
        %s189 = scalar_select %p188, %s19, 0
        %s190 = scalar_lea.vmem %s3, %s189
      $region24: #{degcnn_forward.11} parent=11 // pred_fallthru
        _
    $region12: #{degcnn_forward.11} parent=5 // pred_fallthru
      _
    %p191 = scmp.lt.s32.totalorder %s10, 2
    // Predicated region
    $region25: #{degcnn_forward.11} parent=5 // pred_check
      %p192 = pneg %p191
    $region26: #{degcnn_forward.11} parent=5 // pred_check_branch
      %194 = sbr.rel (%p192) target = $region28
    $region27: #{degcnn_forward.11} parent=5 // pred_region
      // Predicated region
      $region29: #{degcnn_forward.11} parent=27 // pred_check
        %p195 = pneg %p44
      $region30: #{degcnn_forward.11} parent=27 // pred_check_branch
        %197 = sbr.rel (%p195) target = $region32
      $region31: #{degcnn_forward.11} parent=27 // pred_region
        %s198 = smul.u32 32, %s18
        %p199 = scmp.lt.s32.totalorder %s17, 0
        %s200 = scalar_select %p199, %s17, 0
        %p201 = scmp.lt.s32.totalorder %s198, 63
        %s202 = scalar_select %p201, %s198, 63
        %s203 = smul.addr %s202, 3
        %s204 = smul.addr %s200, 192
        %s205 = sadd.s32 %s203, %s204
        %s206 = smul.addr %s205, 4
        %s207 = scalar_lea.vmem %s0, %s206
        %s208 = smul.u32 32, %s18
      $region32: #{degcnn_forward.11} parent=27 // pred_fallthru
        _
    $region28: #{degcnn_forward.11} parent=5 // pred_fallthru
      _
    %p209 = scmp.le.s32.totalorder 1, %s10
    %p210 = scmp.lt.s32.totalorder %s10, 3
    %p211 = pnand %p209, %p210
    %p212 = pneg %p211
    // Predicated region
    $region33: #{degcnn_forward.11} parent=5 // pred_check
      _
    $region34: #{degcnn_forward.11} parent=5 // pred_check_branch
      %214 = sbr.rel (%p211) target = $region36
    $region35: #{degcnn_forward.11} parent=5 // pred_region
      %s215 = ssub.s32 %s10, 1
      %s216 = smul.u32 32, %s20
      %p217 = scmp.lt.s32.totalorder %s19, 0
      %s218 = scalar_select %p217, %s19, 0
      %p219 = scmp.lt.s32.totalorder %s216, 63
      %s220 = scalar_select %p219, %s216, 63
      %s221 = smul.addr %s220, 3
      %s222 = smul.addr %s218, 192
      %s223 = sadd.s32 %s221, %s222
      %s224 = smul.addr %s223, 4
      %s225 = scalar_lea.vmem %s0, %s224
      %p226 = pneg %p50
      %p227 = pneg %p47
      %p228 = scmp.lt.s32.totalorder %s19, 0
      %s229 = scalar_select %p228, %s19, 0
      %s230 = smul.addr %s229, 36
      %s231 = smul.addr %s230, 4
      %s232 = scalar_lea.vmem %s1, %s231
      %p233 = pneg %p76
      %p234 = pneg %p73
      %p235 = scmp.lt.s32.totalorder %s19, 0
      %s236 = scalar_select %p235, %s19, 0
      %s237 = scalar_lea.vmem %s2, %s236
      %p238 = pneg %p102
      %p239 = pneg %p99
      %p240 = scmp.lt.s32.totalorder %s19, 0
      %s241 = scalar_select %p240, %s19, 0
      %s242 = scalar_lea.vmem %s3, %s241
      %p243 = pneg %p128
      %p244 = pneg %p125
      %p245 = pneg %p156
      %p246 = pneg %p153
      %s247 = smul.u32 32, %s20
      %p248 = scmp.lt.s32.totalorder %s19, 0
      %s249 = scalar_select %p248, %s19, 0
      %p250 = scmp.lt.s32.totalorder %s247, 63
      %s251 = scalar_select %p250, %s247, 63
      %s252 = smul.addr %s249, 64
      %s253 = sadd.s32 %s251, %s252
      %s254 = smul.addr %s253, 8
      %s255 = scalar_lea.vmem %s4, %s254
      %s256 = smul.u32 32, %s20
      %p257 = scmp.lt.s32.totalorder %s19, 0
      %s258 = scalar_select %p257, %s19, 0
      %p259 = scmp.lt.s32.totalorder %s256, 63
      %s260 = scalar_select %p259, %s256, 63
      %s261 = smul.addr %s260, 3
      %s262 = smul.addr %s258, 192
      %s263 = sadd.s32 %s261, %s262
      %s264 = smul.addr %s263, 4
      %s265 = scalar_lea.vmem %s0, %s264
      %s266 = smul.u32 32, %s20
      %p267 = scmp.lt.s32.totalorder %s19, 0
      %s268 = scalar_select %p267, %s19, 0
      %s269 = smul.addr %s268, 36
      %s270 = smul.addr %s269, 4
      %s271 = scalar_lea.vmem %s1, %s270
      %p272 = scmp.lt.s32.totalorder %s19, 0
      %s273 = scalar_select %p272, %s19, 0
      %s274 = scalar_lea.vmem %s2, %s273
      %p275 = scmp.lt.s32.totalorder %s19, 0
      %s276 = scalar_select %p275, %s19, 0
      %s277 = scalar_lea.vmem %s3, %s276
      %s278 = smul.u32 32, %s20
      %p279 = scmp.lt.s32.totalorder %s19, 0
      %s280 = scalar_select %p279, %s19, 0
      %p281 = scmp.lt.s32.totalorder %s278, 63
      %s282 = scalar_select %p281, %s278, 63
      %s283 = smul.addr %s280, 64
      %s284 = sadd.s32 %s282, %s283
      %s285 = smul.addr %s284, 8
      %s286 = scalar_lea.vmem %s4, %s285
      %s287 = smul.u32 32, %s20
      %v289 = vld [vmem:[%s265] sm:$0xff]
      %v290 = vld [vmem:[%s265 + $0x8] sm:$0xf]
      %v291 = vld [vmem:[%s265 + $0xc] sm:$0xff]
      %v292 = vld [vmem:[%s265 + $0x14] sm:$0xf]
      %v293 = vld [vmem:[%s265 + $0x18] sm:$0xff]
      %v294 = vld [vmem:[%s265 + $0x20] sm:$0xf]
      %v295 = vld [vmem:[%s265 + $0x24] sm:$0xff]
      %v296 = vld [vmem:[%s265 + $0x2c] sm:$0xf]
      %v297 = vld [vmem:[%s265 + $0x30] sm:$0xff]
      %v298 = vld [vmem:[%s265 + $0x38] sm:$0xf]
      %v299 = vld [vmem:[%s265 + $0x3c] sm:$0xff]
      %v300 = vld [vmem:[%s265 + $0x44] sm:$0xf]
      %v301 = vld [vmem:[%s265 + $0x48] sm:$0xff]
      %v302 = vld [vmem:[%s265 + $0x50] sm:$0xf]
      %v303 = vld [vmem:[%s265 + $0x54] sm:$0xff]
      %v304 = vld [vmem:[%s265 + $0x5c] sm:$0xf]
      %v305 = vld [vmem:[%s265 + $0x60] sm:$0xff]
      %v306 = vld [vmem:[%s265 + $0x68] sm:$0xf]
      %v307 = vld [vmem:[%s265 + $0x6c] sm:$0xff]
      %v308 = vld [vmem:[%s265 + $0x74] sm:$0xf]
      %v309 = vld [vmem:[%s265 + $0x78] sm:$0xff]
      %v310 = vld [vmem:[%s265 + $0x80] sm:$0xf]
      %v311 = vld [vmem:[%s265 + $0x84] sm:$0xff]
      %v312 = vld [vmem:[%s265 + $0x8c] sm:$0xf]
      %v313 = vld [vmem:[%s265 + $0x90] sm:$0xff]
      %v314 = vld [vmem:[%s265 + $0x98] sm:$0xf]
      %v315 = vld [vmem:[%s265 + $0x9c] sm:$0xff]
      %v316 = vld [vmem:[%s265 + $0xa4] sm:$0xf]
      %v317 = vld [vmem:[%s265 + $0xa8] sm:$0xff]
      %v318 = vld [vmem:[%s265 + $0xb0] sm:$0xf]
      %v319 = vld [vmem:[%s265 + $0xb4] sm:$0xff]
      %v320 = vld [vmem:[%s265 + $0xbc] sm:$0xf]
      %v321 = vld [vmem:[%s265 + $0xc0] sm:$0xff]
      %v322 = vld [vmem:[%s265 + $0xc8] sm:$0xf]
      %v323 = vld [vmem:[%s265 + $0xcc] sm:$0xff]
      %v324 = vld [vmem:[%s265 + $0xd4] sm:$0xf]
      %v325 = vld [vmem:[%s265 + $0xd8] sm:$0xff]
      %v326 = vld [vmem:[%s265 + $0xe0] sm:$0xf]
      %v327 = vld [vmem:[%s265 + $0xe4] sm:$0xff]
      %v328 = vld [vmem:[%s265 + $0xec] sm:$0xf]
      %v329 = vld [vmem:[%s265 + $0xf0] sm:$0xff]
      %v330 = vld [vmem:[%s265 + $0xf8] sm:$0xf]
      %v331 = vld [vmem:[%s265 + $0xfc] sm:$0xff]
      %v332 = vld [vmem:[%s265 + $0x104] sm:$0xf]
      %v333 = vld [vmem:[%s265 + $0x108] sm:$0xff]
      %v334 = vld [vmem:[%s265 + $0x110] sm:$0xf]
      %v335 = vld [vmem:[%s265 + $0x114] sm:$0xff]
      %v336 = vld [vmem:[%s265 + $0x11c] sm:$0xf]
      %v337 = vld [vmem:[%s265 + $0x120] sm:$0xff]
      %v338 = vld [vmem:[%s265 + $0x128] sm:$0xf]
      %v339 = vld [vmem:[%s265 + $0x12c] sm:$0xff]
      %v340 = vld [vmem:[%s265 + $0x134] sm:$0xf]
      %v341 = vld [vmem:[%s265 + $0x138] sm:$0xff]
      %v342 = vld [vmem:[%s265 + $0x140] sm:$0xf]
      %v343 = vld [vmem:[%s265 + $0x144] sm:$0xff]
      %v344 = vld [vmem:[%s265 + $0x14c] sm:$0xf]
      %v345 = vld [vmem:[%s265 + $0x150] sm:$0xff]
      %v346 = vld [vmem:[%s265 + $0x158] sm:$0xf]
      %v347 = vld [vmem:[%s265 + $0x15c] sm:$0xff]
      %v348 = vld [vmem:[%s265 + $0x164] sm:$0xf]
      %v349 = vld [vmem:[%s265 + $0x168] sm:$0xff]
      %v350 = vld [vmem:[%s265 + $0x170] sm:$0xf]
      %v351 = vld [vmem:[%s265 + $0x174] sm:$0xff]
      %v352 = vld [vmem:[%s265 + $0x17c] sm:$0xf]
      %v353 = vld [vmem:[%s271] sm:$0xf]
      %v354 = vld [vmem:[%s271 + $0x4] sm:$0xf]
      %v355 = vld [vmem:[%s271 + $0x8] sm:$0xf]
      %v356 = vld [vmem:[%s271 + $0xc] sm:$0xf]
      %v357 = vld [vmem:[%s271 + $0x10] sm:$0xf]
      %v358 = vld [vmem:[%s271 + $0x14] sm:$0xf]
      %v359 = vld [vmem:[%s271 + $0x18] sm:$0xf]
      %v360 = vld [vmem:[%s271 + $0x1c] sm:$0xf]
      %v361 = vld [vmem:[%s271 + $0x20] sm:$0xf]
      %v362 = vld [vmem:[%s271 + $0x24] sm:$0xf]
      %v363 = vld [vmem:[%s271 + $0x28] sm:$0xf]
      %v364 = vld [vmem:[%s271 + $0x2c] sm:$0xf]
      %v365 = vld [vmem:[%s271 + $0x30] sm:$0xf]
      %v366 = vld [vmem:[%s271 + $0x34] sm:$0xf]
      %v367 = vld [vmem:[%s271 + $0x38] sm:$0xf]
      %v368 = vld [vmem:[%s271 + $0x3c] sm:$0xf]
      %v369 = vld [vmem:[%s271 + $0x40] sm:$0xf]
      %v370 = vld [vmem:[%s271 + $0x44] sm:$0xf]
      %v371 = vld [vmem:[%s271 + $0x48] sm:$0xf]
      %v372 = vld [vmem:[%s271 + $0x4c] sm:$0xf]
      %v373 = vld [vmem:[%s271 + $0x50] sm:$0xf]
      %v374 = vld [vmem:[%s271 + $0x54] sm:$0xf]
      %v375 = vld [vmem:[%s271 + $0x58] sm:$0xf]
      %v376 = vld [vmem:[%s271 + $0x5c] sm:$0xf]
      %v377 = vld [vmem:[%s271 + $0x60] sm:$0xf]
      %v378 = vld [vmem:[%s271 + $0x64] sm:$0xf]
      %v379 = vld [vmem:[%s271 + $0x68] sm:$0xf]
      %v380 = vld [vmem:[%s271 + $0x6c] sm:$0xf]
      %v381 = vld [vmem:[%s271 + $0x70] sm:$0xf]
      %v382 = vld [vmem:[%s271 + $0x74] sm:$0xf]
      %v383 = vld [vmem:[%s271 + $0x78] sm:$0xf]
      %v384 = vld [vmem:[%s271 + $0x7c] sm:$0xf]
      %v385 = vld [vmem:[%s271 + $0x80] sm:$0xf]
      %v386 = vld [vmem:[%s271 + $0x84] sm:$0xf]
      %v387 = vld [vmem:[%s271 + $0x88] sm:$0xf]
      %v388 = vld [vmem:[%s271 + $0x8c] sm:$0xf]
      %v389 = vld [vmem:[%s274] sm:$0x1]
      %v391 = vlaneseq
      %v392 = vshrl.u32 %v391, 7
      %v393 = vsub.s32 0, %v392
      %v394 = vrot.slane %v389, %v393
      %v460 = vunpack.c.l.b16 %v289
      %v461 = vunpack.c.h.b16 %v289
      %v462 = vunpack.c.l.b16 %v290
      %v463 = vunpack.c.l.b16 %v291
      %v464 = vunpack.c.h.b16 %v291
      %v465 = vunpack.c.l.b16 %v292
      %v466 = vunpack.c.l.b16 %v293
      %v467 = vunpack.c.h.b16 %v293
      %v468 = vunpack.c.l.b16 %v294
      %v469 = vunpack.c.l.b16 %v295
      %v470 = vunpack.c.h.b16 %v295
      %v471 = vunpack.c.l.b16 %v296
      %v472 = vunpack.c.l.b16 %v297
      %v473 = vunpack.c.h.b16 %v297
      %v474 = vunpack.c.l.b16 %v298
      %v475 = vunpack.c.l.b16 %v299
      %v476 = vunpack.c.h.b16 %v299
      %v477 = vunpack.c.l.b16 %v300
      %v478 = vunpack.c.l.b16 %v301
      %v479 = vunpack.c.h.b16 %v301
      %v480 = vunpack.c.l.b16 %v302
      %v481 = vunpack.c.l.b16 %v303
      %v482 = vunpack.c.h.b16 %v303
      %v483 = vunpack.c.l.b16 %v304
      %v484 = vunpack.c.l.b16 %v305
      %v485 = vunpack.c.h.b16 %v305
      %v486 = vunpack.c.l.b16 %v306
      %v487 = vunpack.c.l.b16 %v307
      %v488 = vunpack.c.h.b16 %v307
      %v489 = vunpack.c.l.b16 %v308
      %v490 = vunpack.c.l.b16 %v309
      %v491 = vunpack.c.h.b16 %v309
      %v492 = vunpack.c.l.b16 %v310
      %v493 = vunpack.c.l.b16 %v311
      %v494 = vunpack.c.h.b16 %v311
      %v495 = vunpack.c.l.b16 %v312
      %v496 = vunpack.c.l.b16 %v313
      %v497 = vunpack.c.h.b16 %v313
      %v498 = vunpack.c.l.b16 %v314
      %v499 = vunpack.c.l.b16 %v315
      %v500 = vunpack.c.h.b16 %v315
      %v501 = vunpack.c.l.b16 %v316
      %v502 = vunpack.c.l.b16 %v317
      %v503 = vunpack.c.h.b16 %v317
      %v504 = vunpack.c.l.b16 %v318
      %v505 = vunpack.c.l.b16 %v319
      %v506 = vunpack.c.h.b16 %v319
      %v507 = vunpack.c.l.b16 %v320
      %v508 = vunpack.c.l.b16 %v321
      %v509 = vunpack.c.h.b16 %v321
      %v510 = vunpack.c.l.b16 %v322
      %v511 = vunpack.c.l.b16 %v323
      %v512 = vunpack.c.h.b16 %v323
      %v513 = vunpack.c.l.b16 %v324
      %v514 = vunpack.c.l.b16 %v325
      %v515 = vunpack.c.h.b16 %v325
      %v516 = vunpack.c.l.b16 %v326
      %v517 = vunpack.c.l.b16 %v327
      %v518 = vunpack.c.h.b16 %v327
      %v519 = vunpack.c.l.b16 %v328
      %v520 = vunpack.c.l.b16 %v329
      %v521 = vunpack.c.h.b16 %v329
      %v522 = vunpack.c.l.b16 %v330
      %v523 = vunpack.c.l.b16 %v331
      %v524 = vunpack.c.h.b16 %v331
      %v525 = vunpack.c.l.b16 %v332
      %v526 = vunpack.c.l.b16 %v333
      %v527 = vunpack.c.h.b16 %v333
      %v528 = vunpack.c.l.b16 %v334
      %v529 = vunpack.c.l.b16 %v335
      %v530 = vunpack.c.h.b16 %v335
      %v531 = vunpack.c.l.b16 %v336
      %v532 = vunpack.c.l.b16 %v337
      %v533 = vunpack.c.h.b16 %v337
      %v534 = vunpack.c.l.b16 %v338
      %v535 = vunpack.c.l.b16 %v339
      %v536 = vunpack.c.h.b16 %v339
      %v537 = vunpack.c.l.b16 %v340
      %v538 = vunpack.c.l.b16 %v341
      %v539 = vunpack.c.h.b16 %v341
      %v540 = vunpack.c.l.b16 %v342
      %v541 = vunpack.c.l.b16 %v343
      %v542 = vunpack.c.h.b16 %v343
      %v543 = vunpack.c.l.b16 %v344
      %v544 = vunpack.c.l.b16 %v345
      %v545 = vunpack.c.h.b16 %v345
      %v546 = vunpack.c.l.b16 %v346
      %v547 = vunpack.c.l.b16 %v347
      %v548 = vunpack.c.h.b16 %v347
      %v549 = vunpack.c.l.b16 %v348
      %v550 = vunpack.c.l.b16 %v349
      %v551 = vunpack.c.h.b16 %v349
      %v552 = vunpack.c.l.b16 %v350
      %v553 = vunpack.c.l.b16 %v351
      %v554 = vunpack.c.h.b16 %v351
      %v555 = vunpack.c.l.b16 %v352
      %v556 = vpack.c.b16 %v463, %v460
      %v557 = vpack.c.b16 %v464, %v461
      %v558 = vpack.c.b16 %v465, %v462
      %v559 = vpack.c.b16 %v469, %v466
      %v560 = vpack.c.b16 %v470, %v467
      %v561 = vpack.c.b16 %v471, %v468
      %v562 = vpack.c.b16 %v475, %v472
      %v563 = vpack.c.b16 %v476, %v473
      %v564 = vpack.c.b16 %v477, %v474
      %v565 = vpack.c.b16 %v481, %v478
      %v566 = vpack.c.b16 %v482, %v479
      %v567 = vpack.c.b16 %v483, %v480
      %v568 = vpack.c.b16 %v487, %v484
      %v569 = vpack.c.b16 %v488, %v485
      %v570 = vpack.c.b16 %v489, %v486
      %v571 = vpack.c.b16 %v493, %v490
      %v572 = vpack.c.b16 %v494, %v491
      %v573 = vpack.c.b16 %v495, %v492
      %v574 = vpack.c.b16 %v499, %v496
      %v575 = vpack.c.b16 %v500, %v497
      %v576 = vpack.c.b16 %v501, %v498
      %v577 = vpack.c.b16 %v505, %v502
      %v578 = vpack.c.b16 %v506, %v503
      %v579 = vpack.c.b16 %v507, %v504
      %v580 = vpack.c.b16 %v511, %v508
      %v581 = vpack.c.b16 %v512, %v509
      %v582 = vpack.c.b16 %v513, %v510
      %v583 = vpack.c.b16 %v517, %v514
      %v584 = vpack.c.b16 %v518, %v515
      %v585 = vpack.c.b16 %v519, %v516
      %v586 = vpack.c.b16 %v523, %v520
      %v587 = vpack.c.b16 %v524, %v521
      %v588 = vpack.c.b16 %v525, %v522
      %v589 = vpack.c.b16 %v529, %v526
      %v590 = vpack.c.b16 %v530, %v527
      %v591 = vpack.c.b16 %v531, %v528
      %v592 = vpack.c.b16 %v535, %v532
      %v593 = vpack.c.b16 %v536, %v533
      %v594 = vpack.c.b16 %v537, %v534
      %v595 = vpack.c.b16 %v541, %v538
      %v596 = vpack.c.b16 %v542, %v539
      %v597 = vpack.c.b16 %v543, %v540
      %v598 = vpack.c.b16 %v547, %v544
      %v599 = vpack.c.b16 %v548, %v545
      %v600 = vpack.c.b16 %v549, %v546
      %v601 = vpack.c.b16 %v553, %v550
      %v602 = vpack.c.b16 %v554, %v551
      %v603 = vpack.c.b16 %v555, %v552
      %v672 = vunpack.c.l.b16 %v353
      %v673 = vunpack.c.l.b16 %v354
      %v674 = vunpack.c.l.b16 %v355
      %v675 = vunpack.c.l.b16 %v356
      %v676 = vunpack.c.l.b16 %v357
      %v677 = vunpack.c.l.b16 %v358
      %v678 = vunpack.c.l.b16 %v359
      %v679 = vunpack.c.l.b16 %v360
      %v680 = vunpack.c.l.b16 %v361
      %v681 = vunpack.c.l.b16 %v362
      %v682 = vunpack.c.l.b16 %v363
      %v683 = vunpack.c.l.b16 %v364
      %v684 = vunpack.c.l.b16 %v365
      %v685 = vunpack.c.l.b16 %v366
      %v686 = vunpack.c.l.b16 %v367
      %v687 = vunpack.c.l.b16 %v368
      %v688 = vunpack.c.l.b16 %v369
      %v689 = vunpack.c.l.b16 %v370
      %v690 = vunpack.c.l.b16 %v371
      %v691 = vunpack.c.l.b16 %v372
      %v692 = vunpack.c.l.b16 %v373
      %v693 = vunpack.c.l.b16 %v374
      %v694 = vunpack.c.l.b16 %v375
      %v695 = vunpack.c.l.b16 %v376
      %v696 = vunpack.c.l.b16 %v377
      %v697 = vunpack.c.l.b16 %v378
      %v698 = vunpack.c.l.b16 %v379
      %v699 = vunpack.c.l.b16 %v380
      %v700 = vunpack.c.l.b16 %v381
      %v701 = vunpack.c.l.b16 %v382
      %v702 = vunpack.c.l.b16 %v383
      %v703 = vunpack.c.l.b16 %v384
      %v704 = vunpack.c.l.b16 %v385
      %v705 = vunpack.c.l.b16 %v386
      %v706 = vunpack.c.l.b16 %v387
      %v707 = vunpack.c.l.b16 %v388
      %v708 = vpack.c.b16 %v673, %v672
      %v709 = vpack.c.b16 %v675, %v674
      %v710 = vpack.c.b16 %v677, %v676
      %v711 = vpack.c.b16 %v679, %v678
      %v712 = vpack.c.b16 %v681, %v680
      %v713 = vpack.c.b16 %v683, %v682
      %v714 = vpack.c.b16 %v685, %v684
      %v715 = vpack.c.b16 %v687, %v686
      %v716 = vpack.c.b16 %v689, %v688
      %v717 = vpack.c.b16 %v691, %v690
      %v718 = vpack.c.b16 %v693, %v692
      %v719 = vpack.c.b16 %v695, %v694
      %v720 = vpack.c.b16 %v697, %v696
      %v721 = vpack.c.b16 %v699, %v698
      %v722 = vpack.c.b16 %v701, %v700
      %v723 = vpack.c.b16 %v703, %v702
      %v724 = vpack.c.b16 %v705, %v704
      %v725 = vpack.c.b16 %v707, %v706
      %vm744 = vcmask 261120
      %v746 = vsel %vm744, %v558, 0
      %v749 = vsel %vm744, %v561, 0
      %v752 = vsel %vm744, %v564, 0
      %v755 = vsel %vm744, %v567, 0
      %v758 = vsel %vm744, %v570, 0
      %v761 = vsel %vm744, %v573, 0
      %v764 = vsel %vm744, %v576, 0
      %v767 = vsel %vm744, %v579, 0
      %v770 = vsel %vm744, %v582, 0
      %v773 = vsel %vm744, %v585, 0
      %v776 = vsel %vm744, %v588, 0
      %v779 = vsel %vm744, %v591, 0
      %v782 = vsel %vm744, %v594, 0
      %v785 = vsel %vm744, %v597, 0
      %v788 = vsel %vm744, %v600, 0
      %v791 = vsel %vm744, %v603, 0
      %793 = vmatprep.subr.bf16.mxu0 0
      %794 = vmatpush1.bf16.msra.mxu0 %v708
      %795 = vmatprep.subr.bf16.mxu0 0
      %796 = vmatpush1.bf16.msra.mxu0 %v709
      %797 = vmatprep.subr.bf16.mxu0 0
      %798 = vmatpush1.bf16.msra.mxu0 %v710
      %799 = vmatprep.subr.bf16.mxu0 0
      %800 = vmatpush1.bf16.msra.mxu0 %v711
      %801 = vmatprep.subr.bf16.mxu0 0
      %802 = vmatpush1.bf16.msra.mxu0 %v712
      %803 = vmatprep.subr.bf16.mxu0 0
      %804 = vmatpush1.bf16.msra.mxu0 %v713
      %805 = vmatprep.subr.bf16.mxu0 0
      %806 = vmatpush1.bf16.msra.mxu0 %v714
      %807 = vmatprep.subr.bf16.mxu0 0
      %808 = vmatpush1.bf16.msra.mxu0 %v715
      %809 = vmatprep.subr.bf16.mxu0 0
      %810 = vmatpush1.bf16.msra.mxu0 %v716
      %811 = vmatprep.subr.bf16.mxu0 0
      %812 = vmatpush1.bf16.msra.mxu0 %v717
      %813 = vmatprep.subr.bf16.mxu0 0
      %814 = vmatpush1.bf16.msra.mxu0 %v718
      %815 = vmatprep.subr.bf16.mxu0 0
      %816 = vmatpush1.bf16.msra.mxu0 %v719
      %817 = vmatprep.subr.bf16.mxu0 0
      %818 = vmatpush1.bf16.msra.mxu0 %v720
      %819 = vmatprep.subr.bf16.mxu0 0
      %820 = vmatpush1.bf16.msra.mxu0 %v721
      %821 = vmatprep.subr.bf16.mxu0 0
      %822 = vmatpush1.bf16.msra.mxu0 %v722
      %823 = vmatprep.subr.bf16.mxu0 0
      %824 = vmatpush1.bf16.msra.mxu0 %v723
      %825 = vmatprep.mubr.bf16.mxu0 %v557
      %826 = vmatmul.mubr.bf16.gmra.mrb[0].mxu0 %v556
      %v827 = vpop.f32.mrb[0].mxu0
      %v828 = vadd.f32 %v394, %v827
      %v829 = vpop.f32.mrb[0].mxu0
      %v830 = vpop.f32.mrb[0].mxu0
      %v831 = vadd.f32 %v394, %v830
      %v832 = vpop.f32.mrb[0].mxu0
      %833 = vmatprep.mubr.bf16.mxu0 %v560
      %834 = vmatmul.mubr.bf16.gmra.mrb[0].mxu0 %v559
      %v835 = vpop.f32.mrb[0].mxu0
      %v836 = vadd.f32 %v394, %v835
      %v837 = vpop.f32.mrb[0].mxu0
      %v838 = vpop.f32.mrb[0].mxu0
      %v839 = vadd.f32 %v394, %v838
      %v840 = vpop.f32.mrb[0].mxu0
      %841 = vmatprep.mubr.bf16.mxu0 %v563
      %842 = vmatmul.mubr.bf16.gmra.mrb[0].mxu0 %v562
      %v843 = vpop.f32.mrb[0].mxu0
      %v844 = vadd.f32 %v394, %v843
      %v845 = vpop.f32.mrb[0].mxu0
      %v846 = vpop.f32.mrb[0].mxu0
      %v847 = vadd.f32 %v394, %v846
      %v848 = vpop.f32.mrb[0].mxu0
      %849 = vmatprep.mubr.bf16.mxu0 %v566
      %850 = vmatmul.mubr.bf16.gmra.mrb[0].mxu0 %v565
      %v851 = vpop.f32.mrb[0].mxu0
      %v852 = vadd.f32 %v394, %v851
      %v853 = vpop.f32.mrb[0].mxu0
      %v854 = vpop.f32.mrb[0].mxu0
      %v855 = vadd.f32 %v394, %v854
      %v856 = vpop.f32.mrb[0].mxu0
      %857 = vmatprep.mubr.bf16.mxu0 %v569
      %858 = vmatmul.mubr.bf16.gmra.mrb[0].mxu0 %v568
      %v859 = vpop.f32.mrb[0].mxu0
      %v860 = vadd.f32 %v394, %v859
      %v861 = vpop.f32.mrb[0].mxu0
      %v862 = vpop.f32.mrb[0].mxu0
      %v863 = vadd.f32 %v394, %v862
      %v864 = vpop.f32.mrb[0].mxu0
      %865 = vmatprep.mubr.bf16.mxu0 %v572
      %866 = vmatmul.mubr.bf16.gmra.mrb[0].mxu0 %v571
      %v867 = vpop.f32.mrb[0].mxu0
      %v868 = vadd.f32 %v394, %v867
      %v869 = vpop.f32.mrb[0].mxu0
      %v870 = vpop.f32.mrb[0].mxu0
      %v871 = vadd.f32 %v394, %v870
      %v872 = vpop.f32.mrb[0].mxu0
      %873 = vmatprep.mubr.bf16.mxu0 %v575
      %874 = vmatmul.mubr.bf16.gmra.mrb[0].mxu0 %v574
      %v875 = vpop.f32.mrb[0].mxu0
      %v876 = vadd.f32 %v394, %v875
      %v877 = vpop.f32.mrb[0].mxu0
      %v878 = vpop.f32.mrb[0].mxu0
      %v879 = vadd.f32 %v394, %v878
      %v880 = vpop.f32.mrb[0].mxu0
      %881 = vmatprep.mubr.bf16.mxu0 %v578
      %882 = vmatmul.mubr.bf16.gmra.mrb[0].mxu0 %v577
      %v883 = vpop.f32.mrb[0].mxu0
      %v884 = vadd.f32 %v394, %v883
      %v885 = vpop.f32.mrb[0].mxu0
      %v886 = vpop.f32.mrb[0].mxu0
      %v887 = vadd.f32 %v394, %v886
      %v888 = vpop.f32.mrb[0].mxu0
      %889 = vmatprep.mubr.bf16.mxu0 %v581
      %890 = vmatmul.mubr.bf16.gmra.mrb[0].mxu0 %v580
      %v891 = vpop.f32.mrb[0].mxu0
      %v892 = vadd.f32 %v394, %v891
      %v893 = vpop.f32.mrb[0].mxu0
      %v894 = vpop.f32.mrb[0].mxu0
      %v895 = vadd.f32 %v394, %v894
      %v896 = vpop.f32.mrb[0].mxu0
      %897 = vmatprep.mubr.bf16.mxu0 %v584
      %898 = vmatmul.mubr.bf16.gmra.mrb[0].mxu0 %v583
      %v899 = vpop.f32.mrb[0].mxu0
      %v900 = vadd.f32 %v394, %v899
      %v901 = vpop.f32.mrb[0].mxu0
      %v902 = vpop.f32.mrb[0].mxu0
      %v903 = vadd.f32 %v394, %v902
      %v904 = vpop.f32.mrb[0].mxu0
      %905 = vmatprep.mubr.bf16.mxu0 %v587
      %906 = vmatmul.mubr.bf16.gmra.mrb[0].mxu0 %v586
      %v907 = vpop.f32.mrb[0].mxu0
      %v908 = vadd.f32 %v394, %v907
      %v909 = vpop.f32.mrb[0].mxu0
      %v910 = vpop.f32.mrb[0].mxu0
      %v911 = vadd.f32 %v394, %v910
      %v912 = vpop.f32.mrb[0].mxu0
      %913 = vmatprep.mubr.bf16.mxu0 %v590
      %914 = vmatmul.mubr.bf16.gmra.mrb[0].mxu0 %v589
      %v915 = vpop.f32.mrb[0].mxu0
      %v916 = vadd.f32 %v394, %v915
      %v917 = vpop.f32.mrb[0].mxu0
      %v918 = vpop.f32.mrb[0].mxu0
      %v919 = vadd.f32 %v394, %v918
      %v920 = vpop.f32.mrb[0].mxu0
      %921 = vmatprep.mubr.bf16.mxu0 %v593
      %922 = vmatmul.mubr.bf16.gmra.mrb[0].mxu0 %v592
      %v923 = vpop.f32.mrb[0].mxu0
      %v924 = vadd.f32 %v394, %v923
      %v925 = vpop.f32.mrb[0].mxu0
      %v926 = vpop.f32.mrb[0].mxu0
      %v927 = vadd.f32 %v394, %v926
      %v928 = vpop.f32.mrb[0].mxu0
      %929 = vmatprep.mubr.bf16.mxu0 %v596
      %930 = vmatmul.mubr.bf16.gmra.mrb[0].mxu0 %v595
      %v931 = vpop.f32.mrb[0].mxu0
      %v932 = vadd.f32 %v394, %v931
      %v933 = vpop.f32.mrb[0].mxu0
      %v934 = vpop.f32.mrb[0].mxu0
      %v935 = vadd.f32 %v394, %v934
      %v936 = vpop.f32.mrb[0].mxu0
      %937 = vmatprep.mubr.bf16.mxu0 %v599
      %938 = vmatmul.mubr.bf16.gmra.mrb[0].mxu0 %v598
      %v939 = vpop.f32.mrb[0].mxu0
      %v940 = vadd.f32 %v394, %v939
      %v941 = vpop.f32.mrb[0].mxu0
      %v942 = vpop.f32.mrb[0].mxu0
      %v943 = vadd.f32 %v394, %v942
      %v944 = vpop.f32.mrb[0].mxu0
      %945 = vmatprep.mubr.bf16.mxu0 %v602
      %946 = vmatmul.mubr.bf16.gmra.mrb[0].mxu0 %v601
      %v947 = vpop.f32.mrb[0].mxu0
      %v948 = vadd.f32 %v394, %v947
      %v949 = vpop.f32.mrb[0].mxu0
      %v950 = vpop.f32.mrb[0].mxu0
      %v951 = vadd.f32 %v394, %v950
      %v952 = vpop.f32.mrb[0].mxu0
      %953 = vdwg.mxu0
      %954 = vmatprep.subr.bf16.mxu0 0
      %955 = vmatpush1.bf16.msra.mxu0 %v724
      %956 = vmatprep.subr.bf16.mxu0 0
      %957 = vmatpush1.bf16.msra.mxu0 %v725
      %958 = vmatprep.subr.bf16.mxu0 0
      %959 = vmatpush1.bf16.msra.mxu0 0
      %960 = vmatprep.subr.bf16.mxu0 0
      %961 = vmatpush1.bf16.msra.mxu0 0
      %962 = vmatprep.subr.bf16.mxu0 0
      %963 = vmatpush1.bf16.msra.mxu0 0
      %964 = vmatprep.subr.bf16.mxu0 0
      %965 = vmatpush1.bf16.msra.mxu0 0
      %966 = vmatprep.subr.bf16.mxu0 0
      %967 = vmatpush1.bf16.msra.mxu0 0
      %968 = vmatprep.subr.bf16.mxu0 0
      %969 = vmatpush1.bf16.msra.mxu0 0
      %970 = vmatprep.subr.bf16.mxu0 0
      %971 = vmatpush1.bf16.msra.mxu0 0
      %972 = vmatprep.subr.bf16.mxu0 0
      %973 = vmatpush1.bf16.msra.mxu0 0
      %974 = vmatprep.subr.bf16.mxu0 0
      %975 = vmatpush1.bf16.msra.mxu0 0
      %976 = vmatprep.subr.bf16.mxu0 0
      %977 = vmatpush1.bf16.msra.mxu0 0
      %978 = vmatprep.subr.bf16.mxu0 0
      %979 = vmatpush1.bf16.msra.mxu0 0
      %980 = vmatprep.subr.bf16.mxu0 0
      %981 = vmatpush1.bf16.msra.mxu0 0
      %982 = vmatprep.subr.bf16.mxu0 0
      %983 = vmatpush1.bf16.msra.mxu0 0
      %984 = vmatprep.subr.bf16.mxu0 0
      %985 = vmatpush1.bf16.msra.mxu0 0
      %986 = vmatprep.mubr.bf16.mxu0 0
      %987 = vmatmul.mubr.bf16.gmra.mrb[0].mxu0 %v746
      %v988 = vpop.f32.mrb[0].mxu0
      %v989 = vadd.f32 %v828, %v988
      %v990 = vpop.f32.mrb[0].mxu0
      %v991 = vpop.f32.mrb[0].mxu0
      %v992 = vadd.f32 %v831, %v991
      %v993 = vpop.f32.mrb[0].mxu0
      %994 = vmatprep.mubr.bf16.mxu0 0
      %995 = vmatmul.mubr.bf16.gmra.mrb[0].mxu0 %v749
      %v996 = vpop.f32.mrb[0].mxu0
      %v997 = vadd.f32 %v836, %v996
      %v998 = vpop.f32.mrb[0].mxu0
      %v999 = vpop.f32.mrb[0].mxu0
      %v1000 = vadd.f32 %v839, %v999
      %v1001 = vpop.f32.mrb[0].mxu0
      %1002 = vmatprep.mubr.bf16.mxu0 0
      %1003 = vmatmul.mubr.bf16.gmra.mrb[0].mxu0 %v752
      %v1004 = vpop.f32.mrb[0].mxu0
      %v1005 = vadd.f32 %v844, %v1004
      %v1006 = vpop.f32.mrb[0].mxu0
      %v1007 = vpop.f32.mrb[0].mxu0
      %v1008 = vadd.f32 %v847, %v1007
      %v1009 = vpop.f32.mrb[0].mxu0
      %1010 = vmatprep.mubr.bf16.mxu0 0
      %1011 = vmatmul.mubr.bf16.gmra.mrb[0].mxu0 %v755
      %v1012 = vpop.f32.mrb[0].mxu0
      %v1013 = vadd.f32 %v852, %v1012
      %v1014 = vpop.f32.mrb[0].mxu0
      %v1015 = vpop.f32.mrb[0].mxu0
      %v1016 = vadd.f32 %v855, %v1015
      %v1017 = vpop.f32.mrb[0].mxu0
      %1018 = vmatprep.mubr.bf16.mxu0 0
      %1019 = vmatmul.mubr.bf16.gmra.mrb[0].mxu0 %v758
      %v1020 = vpop.f32.mrb[0].mxu0
      %v1021 = vadd.f32 %v860, %v1020
      %v1022 = vpop.f32.mrb[0].mxu0
      %v1023 = vpop.f32.mrb[0].mxu0
      %v1024 = vadd.f32 %v863, %v1023
      %v1025 = vpop.f32.mrb[0].mxu0
      %1026 = vmatprep.mubr.bf16.mxu0 0
      %1027 = vmatmul.mubr.bf16.gmra.mrb[0].mxu0 %v761
      %v1028 = vpop.f32.mrb[0].mxu0
      %v1029 = vadd.f32 %v868, %v1028
      %v1030 = vpop.f32.mrb[0].mxu0
      %v1031 = vpop.f32.mrb[0].mxu0
      %v1032 = vadd.f32 %v871, %v1031
      %v1033 = vpop.f32.mrb[0].mxu0
      %1034 = vmatprep.mubr.bf16.mxu0 0
      %1035 = vmatmul.mubr.bf16.gmra.mrb[0].mxu0 %v764
      %v1036 = vpop.f32.mrb[0].mxu0
      %v1037 = vadd.f32 %v876, %v1036
      %v1038 = vpop.f32.mrb[0].mxu0
      %v1039 = vpop.f32.mrb[0].mxu0
      %v1040 = vadd.f32 %v879, %v1039
      %v1041 = vpop.f32.mrb[0].mxu0
      %1042 = vmatprep.mubr.bf16.mxu0 0
      %1043 = vmatmul.mubr.bf16.gmra.mrb[0].mxu0 %v767
      %v1044 = vpop.f32.mrb[0].mxu0
      %v1045 = vadd.f32 %v884, %v1044
      %v1046 = vpop.f32.mrb[0].mxu0
      %v1047 = vpop.f32.mrb[0].mxu0
      %v1048 = vadd.f32 %v887, %v1047
      %v1049 = vpop.f32.mrb[0].mxu0
      %1050 = vmatprep.mubr.bf16.mxu0 0
      %1051 = vmatmul.mubr.bf16.gmra.mrb[0].mxu0 %v770
      %v1052 = vpop.f32.mrb[0].mxu0
      %v1053 = vadd.f32 %v892, %v1052
      %v1054 = vpop.f32.mrb[0].mxu0
      %v1055 = vpop.f32.mrb[0].mxu0
      %v1056 = vadd.f32 %v895, %v1055
      %v1057 = vpop.f32.mrb[0].mxu0
      %1058 = vmatprep.mubr.bf16.mxu0 0
      %1059 = vmatmul.mubr.bf16.gmra.mrb[0].mxu0 %v773
      %v1060 = vpop.f32.mrb[0].mxu0
      %v1061 = vadd.f32 %v900, %v1060
      %v1062 = vpop.f32.mrb[0].mxu0
      %v1063 = vpop.f32.mrb[0].mxu0
      %v1064 = vadd.f32 %v903, %v1063
      %v1065 = vpop.f32.mrb[0].mxu0
      %1066 = vmatprep.mubr.bf16.mxu0 0
      %1067 = vmatmul.mubr.bf16.gmra.mrb[0].mxu0 %v776
      %v1068 = vpop.f32.mrb[0].mxu0
      %v1069 = vadd.f32 %v908, %v1068
      %v1070 = vpop.f32.mrb[0].mxu0
      %v1071 = vpop.f32.mrb[0].mxu0
      %v1072 = vadd.f32 %v911, %v1071
      %v1073 = vpop.f32.mrb[0].mxu0
      %1074 = vmatprep.mubr.bf16.mxu0 0
      %1075 = vmatmul.mubr.bf16.gmra.mrb[0].mxu0 %v779
      %v1076 = vpop.f32.mrb[0].mxu0
      %v1077 = vadd.f32 %v916, %v1076
      %v1078 = vpop.f32.mrb[0].mxu0
      %v1079 = vpop.f32.mrb[0].mxu0
      %v1080 = vadd.f32 %v919, %v1079
      %v1081 = vpop.f32.mrb[0].mxu0
      %1082 = vmatprep.mubr.bf16.mxu0 0
      %1083 = vmatmul.mubr.bf16.gmra.mrb[0].mxu0 %v782
      %v1084 = vpop.f32.mrb[0].mxu0
      %v1085 = vadd.f32 %v924, %v1084
      %v1086 = vpop.f32.mrb[0].mxu0
      %v1087 = vpop.f32.mrb[0].mxu0
      %v1088 = vadd.f32 %v927, %v1087
      %v1089 = vpop.f32.mrb[0].mxu0
      %1090 = vmatprep.mubr.bf16.mxu0 0
      %1091 = vmatmul.mubr.bf16.gmra.mrb[0].mxu0 %v785
      %v1092 = vpop.f32.mrb[0].mxu0
      %v1093 = vadd.f32 %v932, %v1092
      %v1094 = vpop.f32.mrb[0].mxu0
      %v1095 = vpop.f32.mrb[0].mxu0
      %v1096 = vadd.f32 %v935, %v1095
      %v1097 = vpop.f32.mrb[0].mxu0
      %1098 = vmatprep.mubr.bf16.mxu0 0
      %1099 = vmatmul.mubr.bf16.gmra.mrb[0].mxu0 %v788
      %v1100 = vpop.f32.mrb[0].mxu0
      %v1101 = vadd.f32 %v940, %v1100
      %v1102 = vpop.f32.mrb[0].mxu0
      %v1103 = vpop.f32.mrb[0].mxu0
      %v1104 = vadd.f32 %v943, %v1103
      %v1105 = vpop.f32.mrb[0].mxu0
      %1106 = vmatprep.mubr.bf16.mxu0 0
      %1107 = vmatmul.mubr.bf16.gmra.mrb[0].mxu0 %v791
      %v1108 = vpop.f32.mrb[0].mxu0
      %v1109 = vadd.f32 %v948, %v1108
      %v1110 = vpop.f32.mrb[0].mxu0
      %v1111 = vpop.f32.mrb[0].mxu0
      %v1112 = vadd.f32 %v951, %v1111
      %v1113 = vpop.f32.mrb[0].mxu0
      %1114 = vdwg.mxu0
      %v1115 = vxor.u32 %v989, 2147483648
      %v1116 = vxor.u32 %v992, 2147483648
      %v1117 = vxor.u32 %v997, 2147483648
      %v1118 = vxor.u32 %v1000, 2147483648
      %v1119 = vxor.u32 %v1005, 2147483648
      %v1120 = vxor.u32 %v1008, 2147483648
      %v1121 = vxor.u32 %v1013, 2147483648
      %v1122 = vxor.u32 %v1016, 2147483648
      %v1123 = vxor.u32 %v1021, 2147483648
      %v1124 = vxor.u32 %v1024, 2147483648
      %v1125 = vxor.u32 %v1029, 2147483648
      %v1126 = vxor.u32 %v1032, 2147483648
      %v1127 = vxor.u32 %v1037, 2147483648
      %v1128 = vxor.u32 %v1040, 2147483648
      %v1129 = vxor.u32 %v1045, 2147483648
      %v1130 = vxor.u32 %v1048, 2147483648
      %v1131 = vxor.u32 %v1053, 2147483648
      %v1132 = vxor.u32 %v1056, 2147483648
      %v1133 = vxor.u32 %v1061, 2147483648
      %v1134 = vxor.u32 %v1064, 2147483648
      %v1135 = vxor.u32 %v1069, 2147483648
      %v1136 = vxor.u32 %v1072, 2147483648
      %v1137 = vxor.u32 %v1077, 2147483648
      %v1138 = vxor.u32 %v1080, 2147483648
      %v1139 = vxor.u32 %v1085, 2147483648
      %v1140 = vxor.u32 %v1088, 2147483648
      %v1141 = vxor.u32 %v1093, 2147483648
      %v1142 = vxor.u32 %v1096, 2147483648
      %v1143 = vxor.u32 %v1101, 2147483648
      %v1144 = vxor.u32 %v1104, 2147483648
      %v1145 = vxor.u32 %v1109, 2147483648
      %v1146 = vxor.u32 %v1112, 2147483648
      %v1147 = vmul.f32 %v1115, 1.442695
      %v1148 = vpow.pop %v1147
      %v1149 = vmul.f32 %v1116, 1.442695
      %v1150 = vpow.pop %v1149
      %v1151 = vmul.f32 %v1117, 1.442695
      %v1152 = vpow.pop %v1151
      %v1153 = vmul.f32 %v1118, 1.442695
      %v1154 = vpow.pop %v1153
      %v1155 = vmul.f32 %v1119, 1.442695
      %v1156 = vpow.pop %v1155
      %v1157 = vmul.f32 %v1120, 1.442695
      %v1158 = vpow.pop %v1157
      %v1159 = vmul.f32 %v1121, 1.442695
      %v1160 = vpow.pop %v1159
      %v1161 = vmul.f32 %v1122, 1.442695
      %v1162 = vpow.pop %v1161
      %v1163 = vmul.f32 %v1123, 1.442695
      %v1164 = vpow.pop %v1163
      %v1165 = vmul.f32 %v1124, 1.442695
      %v1166 = vpow.pop %v1165
      %v1167 = vmul.f32 %v1125, 1.442695
      %v1168 = vpow.pop %v1167
      %v1169 = vmul.f32 %v1126, 1.442695
      %v1170 = vpow.pop %v1169
      %v1171 = vmul.f32 %v1127, 1.442695
      %v1172 = vpow.pop %v1171
      %v1173 = vmul.f32 %v1128, 1.442695
      %v1174 = vpow.pop %v1173
      %v1175 = vmul.f32 %v1129, 1.442695
      %v1176 = vpow.pop %v1175
      %v1177 = vmul.f32 %v1130, 1.442695
      %v1178 = vpow.pop %v1177
      %v1179 = vmul.f32 %v1131, 1.442695
      %v1180 = vpow.pop %v1179
      %v1181 = vmul.f32 %v1132, 1.442695
      %v1182 = vpow.pop %v1181
      %v1183 = vmul.f32 %v1133, 1.442695
      %v1184 = vpow.pop %v1183
      %v1185 = vmul.f32 %v1134, 1.442695
      %v1186 = vpow.pop %v1185
      %v1187 = vmul.f32 %v1135, 1.442695
      %v1188 = vpow.pop %v1187
      %v1189 = vmul.f32 %v1136, 1.442695
      %v1190 = vpow.pop %v1189
      %v1191 = vmul.f32 %v1137, 1.442695
      %v1192 = vpow.pop %v1191
      %v1193 = vmul.f32 %v1138, 1.442695
      %v1194 = vpow.pop %v1193
      %v1195 = vmul.f32 %v1139, 1.442695
      %v1196 = vpow.pop %v1195
      %v1197 = vmul.f32 %v1140, 1.442695
      %v1198 = vpow.pop %v1197
      %v1199 = vmul.f32 %v1141, 1.442695
      %v1200 = vpow.pop %v1199
      %v1201 = vmul.f32 %v1142, 1.442695
      %v1202 = vpow.pop %v1201
      %v1203 = vmul.f32 %v1143, 1.442695
      %v1204 = vpow.pop %v1203
      %v1205 = vmul.f32 %v1144, 1.442695
      %v1206 = vpow.pop %v1205
      %v1207 = vmul.f32 %v1145, 1.442695
      %v1208 = vpow.pop %v1207
      %v1209 = vmul.f32 %v1146, 1.442695
      %v1210 = vpow.pop %v1209
      %v1211 = vadd.f32 %v1148, 1.0
      %v1212 = vadd.f32 %v1150, 1.0
      %v1213 = vadd.f32 %v1152, 1.0
      %v1214 = vadd.f32 %v1154, 1.0
      %v1215 = vadd.f32 %v1156, 1.0
      %v1216 = vadd.f32 %v1158, 1.0
      %v1217 = vadd.f32 %v1160, 1.0
      %v1218 = vadd.f32 %v1162, 1.0
      %v1219 = vadd.f32 %v1164, 1.0
      %v1220 = vadd.f32 %v1166, 1.0
      %v1221 = vadd.f32 %v1168, 1.0
      %v1222 = vadd.f32 %v1170, 1.0
      %v1223 = vadd.f32 %v1172, 1.0
      %v1224 = vadd.f32 %v1174, 1.0
      %v1225 = vadd.f32 %v1176, 1.0
      %v1226 = vadd.f32 %v1178, 1.0
      %v1227 = vadd.f32 %v1180, 1.0
      %v1228 = vadd.f32 %v1182, 1.0
      %v1229 = vadd.f32 %v1184, 1.0
      %v1230 = vadd.f32 %v1186, 1.0
      %v1231 = vadd.f32 %v1188, 1.0
      %v1232 = vadd.f32 %v1190, 1.0
      %v1233 = vadd.f32 %v1192, 1.0
      %v1234 = vadd.f32 %v1194, 1.0
      %v1235 = vadd.f32 %v1196, 1.0
      %v1236 = vadd.f32 %v1198, 1.0
      %v1237 = vadd.f32 %v1200, 1.0
      %v1238 = vadd.f32 %v1202, 1.0
      %v1239 = vadd.f32 %v1204, 1.0
      %v1240 = vadd.f32 %v1206, 1.0
      %v1241 = vadd.f32 %v1208, 1.0
      %v1242 = vadd.f32 %v1210, 1.0
      %v1243 = vrcp.pop %v1211
      %v1244 = vmul.f32 1.0, %v1243
      %v1245 = vrcp.pop %v1212
      %v1246 = vmul.f32 1.0, %v1245
      %v1247 = vrcp.pop %v1213
      %v1248 = vmul.f32 1.0, %v1247
      %v1249 = vrcp.pop %v1214
      %v1250 = vmul.f32 1.0, %v1249
      %v1251 = vrcp.pop %v1215
      %v1252 = vmul.f32 1.0, %v1251
      %v1253 = vrcp.pop %v1216
      %v1254 = vmul.f32 1.0, %v1253
      %v1255 = vrcp.pop %v1217
      %v1256 = vmul.f32 1.0, %v1255
      %v1257 = vrcp.pop %v1218
      %v1258 = vmul.f32 1.0, %v1257
      %v1259 = vrcp.pop %v1219
      %v1260 = vmul.f32 1.0, %v1259
      %v1261 = vrcp.pop %v1220
      %v1262 = vmul.f32 1.0, %v1261
      %v1263 = vrcp.pop %v1221
      %v1264 = vmul.f32 1.0, %v1263
      %v1265 = vrcp.pop %v1222
      %v1266 = vmul.f32 1.0, %v1265
      %v1267 = vrcp.pop %v1223
      %v1268 = vmul.f32 1.0, %v1267
      %v1269 = vrcp.pop %v1224
      %v1270 = vmul.f32 1.0, %v1269
      %v1271 = vrcp.pop %v1225
      %v1272 = vmul.f32 1.0, %v1271
      %v1273 = vrcp.pop %v1226
      %v1274 = vmul.f32 1.0, %v1273
      %v1275 = vrcp.pop %v1227
      %v1276 = vmul.f32 1.0, %v1275
      %v1277 = vrcp.pop %v1228
      %v1278 = vmul.f32 1.0, %v1277
      %v1279 = vrcp.pop %v1229
      %v1280 = vmul.f32 1.0, %v1279
      %v1281 = vrcp.pop %v1230
      %v1282 = vmul.f32 1.0, %v1281
      %v1283 = vrcp.pop %v1231
      %v1284 = vmul.f32 1.0, %v1283
      %v1285 = vrcp.pop %v1232
      %v1286 = vmul.f32 1.0, %v1285
      %v1287 = vrcp.pop %v1233
      %v1288 = vmul.f32 1.0, %v1287
      %v1289 = vrcp.pop %v1234
      %v1290 = vmul.f32 1.0, %v1289
      %v1291 = vrcp.pop %v1235
      %v1292 = vmul.f32 1.0, %v1291
      %v1293 = vrcp.pop %v1236
      %v1294 = vmul.f32 1.0, %v1293
      %v1295 = vrcp.pop %v1237
      %v1296 = vmul.f32 1.0, %v1295
      %v1297 = vrcp.pop %v1238
      %v1298 = vmul.f32 1.0, %v1297
      %v1299 = vrcp.pop %v1239
      %v1300 = vmul.f32 1.0, %v1299
      %v1301 = vrcp.pop %v1240
      %v1302 = vmul.f32 1.0, %v1301
      %v1303 = vrcp.pop %v1241
      %v1304 = vmul.f32 1.0, %v1303
      %v1305 = vrcp.pop %v1242
      %v1306 = vmul.f32 1.0, %v1305
      %1307 = vst [vmem:[%s286] sm:$0xff] %v1244
      %1308 = vst [vmem:[%s286 + $0x8] sm:$0xff] %v1246
      %1309 = vst [vmem:[%s286 + $0x10] sm:$0xff] %v1248
      %1310 = vst [vmem:[%s286 + $0x18] sm:$0xff] %v1250
      %1311 = vst [vmem:[%s286 + $0x20] sm:$0xff] %v1252
      %1312 = vst [vmem:[%s286 + $0x28] sm:$0xff] %v1254
      %1313 = vst [vmem:[%s286 + $0x30] sm:$0xff] %v1256
      %1314 = vst [vmem:[%s286 + $0x38] sm:$0xff] %v1258
      %1315 = vst [vmem:[%s286 + $0x40] sm:$0xff] %v1260
      %1316 = vst [vmem:[%s286 + $0x48] sm:$0xff] %v1262
      %1317 = vst [vmem:[%s286 + $0x50] sm:$0xff] %v1264
      %1318 = vst [vmem:[%s286 + $0x58] sm:$0xff] %v1266
      %1319 = vst [vmem:[%s286 + $0x60] sm:$0xff] %v1268
      %1320 = vst [vmem:[%s286 + $0x68] sm:$0xff] %v1270
      %1321 = vst [vmem:[%s286 + $0x70] sm:$0xff] %v1272
      %1322 = vst [vmem:[%s286 + $0x78] sm:$0xff] %v1274
      %1323 = vst [vmem:[%s286 + $0x80] sm:$0xff] %v1276
      %1324 = vst [vmem:[%s286 + $0x88] sm:$0xff] %v1278
      %1325 = vst [vmem:[%s286 + $0x90] sm:$0xff] %v1280
      %1326 = vst [vmem:[%s286 + $0x98] sm:$0xff] %v1282
      %1327 = vst [vmem:[%s286 + $0xa0] sm:$0xff] %v1284
      %1328 = vst [vmem:[%s286 + $0xa8] sm:$0xff] %v1286
      %1329 = vst [vmem:[%s286 + $0xb0] sm:$0xff] %v1288
      %1330 = vst [vmem:[%s286 + $0xb8] sm:$0xff] %v1290
      %1331 = vst [vmem:[%s286 + $0xc0] sm:$0xff] %v1292
      %1332 = vst [vmem:[%s286 + $0xc8] sm:$0xff] %v1294
      %1333 = vst [vmem:[%s286 + $0xd0] sm:$0xff] %v1296
      %1334 = vst [vmem:[%s286 + $0xd8] sm:$0xff] %v1298
      %1335 = vst [vmem:[%s286 + $0xe0] sm:$0xff] %v1300
      %1336 = vst [vmem:[%s286 + $0xe8] sm:$0xff] %v1302
      %1337 = vst [vmem:[%s286 + $0xf0] sm:$0xff] %v1304
      %1338 = vst [vmem:[%s286 + $0xf8] sm:$0xff] %v1306
      %s1339 = smul.u32 32, %s20
      %p1340 = scmp.lt.s32.totalorder %s19, 0
      %s1341 = scalar_select %p1340, %s19, 0
      %p1342 = scmp.lt.s32.totalorder %s1339, 63
      %s1343 = scalar_select %p1342, %s1339, 63
      %s1344 = smul.addr %s1341, 64
      %s1345 = sadd.s32 %s1343, %s1344
      %s1346 = smul.addr %s1345, 8
      %s1347 = scalar_lea.vmem %s4, %s1346
      // Predicated region
      $region37: #{degcnn_forward.11} parent=35 // pred_check
        %p1348 = pneg %p153
      $region38: #{degcnn_forward.11} parent=35 // pred_check_branch
        %1350 = sbr.rel (%p1348) target = $region40
      $region39: #{degcnn_forward.11} parent=35 // pred_region
        %s1351 = smul.u32 32, %s20
      $region40: #{degcnn_forward.11} parent=35 // pred_fallthru
        _
    $region36: #{degcnn_forward.11} parent=5 // pred_fallthru
      _
    %p1352 = scmp.le.s32.totalorder 2, %s10
    // Predicated region
    $region41: #{degcnn_forward.11} parent=5 // pred_check
      %p1353 = pneg %p1352
    $region42: #{degcnn_forward.11} parent=5 // pred_check_branch
      %1355 = sbr.rel (%p1353) target = $region44
    $region43: #{degcnn_forward.11} parent=5 // pred_region
      %s1356 = ssub.s32 %s10, 2
      // Predicated region
      $region45: #{degcnn_forward.11} parent=43 // pred_check
        %p1357 = pneg %p159
      $region46: #{degcnn_forward.11} parent=43 // pred_check_branch
        %1359 = sbr.rel (%p1357) target = $region48
      $region47: #{degcnn_forward.11} parent=43 // pred_region
        %s1360 = smul.u32 32, %s22
        %p1361 = scmp.lt.s32.totalorder %s21, 0
        %s1362 = scalar_select %p1361, %s21, 0
        %p1363 = scmp.lt.s32.totalorder %s1360, 63
        %s1364 = scalar_select %p1363, %s1360, 63
        %s1365 = smul.addr %s1362, 64
        %s1366 = sadd.s32 %s1364, %s1365
        %s1367 = smul.addr %s1366, 8
        %s1368 = scalar_lea.vmem %s4, %s1367
      $region48: #{degcnn_forward.11} parent=43 // pred_fallthru
        _
    $region44: #{degcnn_forward.11} parent=5 // pred_fallthru
      _
  $region6: #{degcnn_forward.11} parent=0 // loop_footer
    %s14 = sadd.s32 1, %s10
  $region7: #{degcnn_forward.11} parent=0 // loop_footer_branch
    %9 = sbr.rel target = $region3
  $region8: #{degcnn_forward.11} parent=0 // loop_exit
    _

</llo_original>
